<compile_context>
chip_gen: v7x
topology: tpu7x:2x2x1
jax: 0.10.0
libtpu: 0.0.40
codegen_flags: <defaults>
</compile_context>

<pallas_src>
import jax
import jax.numpy as jnp
from jax.experimental import pallas as pl
from jax.experimental.pallas import tpu as pltpu


def _round_up(x, m):
    return ((x + m - 1) // m) * m


# ----------------------------------------------------------------------------
# Glue: dense GCN normalization  A_hat = D^{-1/2} (A + I) D^{-1/2}
# (scatter of a sparse edge list has no clean Pallas equivalent; plain JAX)
# ----------------------------------------------------------------------------
def gcn_norm_dense(edge_index, edge_weight, num_nodes, improved=False,
                   add_self_loops=True):
    src = edge_index[0]
    dst = edge_index[1]
    if edge_weight is None:
        edge_weight = jnp.ones(src.shape[0], dtype=jnp.float32)
    # PyG message passing: message flows source -> target, so A[dst, src] = w
    a = jnp.zeros((num_nodes, num_nodes), dtype=jnp.float32)
    a = a.at[dst, src].add(edge_weight)
    if add_self_loops:
        fill = 2.0 if improved else 1.0
        a = a + fill * jnp.eye(num_nodes, dtype=jnp.float32)
    deg = a.sum(axis=1)
    dinv = jnp.where(deg > 0.0, deg ** -0.5, 0.0)
    return dinv[:, None] * a * dinv[None, :]


# ----------------------------------------------------------------------------
# Trace-time parameter composition / lane-dense packing (plain JAX, runs once)
# ----------------------------------------------------------------------------
def pack_params(p, f_in, f_out):
    """Fold the Linear x-path into the GCN weights and pack lane-dense slabs.

    Returns
      w_big : [F_IN_PAD + F_OUT_PAD, 4*F_OUT_PAD]
              rows    = [ padded (A_hat@X) features | padded h ]
              columns = 4 segments of width F_OUT_PAD (=128):
                        [ z-gate | r-gate | tanh-arg | residual (raw conv_h) ]
              The h-rows of the tanh-arg / residual segments are zero (the
              h*r path stays a separate small matmul).
      b_big : [1, 4*F_OUT_PAD]   matching biases
      lhh   : [F_OUT_PAD, F_OUT_PAD]  Lh_bot, zero-padded (for (h*r) @ Lh_bot)
    """
    hp = jax.lax.Precision.HIGHEST
    fin_p = _round_up(f_in, 128)
    fout_p = _round_up(f_out, 128)
    eye = jnp.eye(f_out, dtype=jnp.float32)

    lz_top, lz_bot = p["lz"][:f_out], p["lz"][f_out:]
    lr_top, lr_bot = p["lr"][:f_out], p["lr"][f_out:]
    lh_top, lh_bot = p["lh"][:f_out], p["lh"][f_out:]

    # xz @ Lz_top + xz == ax @ (Wz @ (Lz_top+I)) + bz @ (Lz_top+I)
    wz_eff = jnp.dot(p["wz"], lz_top + eye, precision=hp)
    wr_eff = jnp.dot(p["wr"], lr_top + eye, precision=hp)
    wh_tanh = jnp.dot(p["wh"], lh_top, precision=hp)

    bz_eff = jnp.dot(p["bz"], lz_top + eye, precision=hp) + p["lbz"]
    br_eff = jnp.dot(p["br"], lr_top + eye, precision=hp) + p["lbr"]
    bh_tanh = jnp.dot(p["bh"], lh_top, precision=hp) + p["lbh"]

    w_big = jnp.zeros((fin_p + fout_p, 4 * fout_p), jnp.float32)
    # x-path rows (fed by A_hat @ X, zero beyond f_in)
    w_big = w_big.at[:f_in, 0 * fout_p:0 * fout_p + f_out].set(wz_eff)
    w_big = w_big.at[:f_in, 1 * fout_p:1 * fout_p + f_out].set(wr_eff)
    w_big = w_big.at[:f_in, 2 * fout_p:2 * fout_p + f_out].set(wh_tanh)
    w_big = w_big.at[:f_in, 3 * fout_p:3 * fout_p + f_out].set(p["wh"])
    # h-path rows for the z / r gates (folded into the same matmul)
    w_big = w_big.at[fin_p:fin_p + f_out, 0 * fout_p:0 * fout_p + f_out].set(lz_bot)
    w_big = w_big.at[fin_p:fin_p + f_out, 1 * fout_p:1 * fout_p + f_out].set(lr_bot)

    b_big = jnp.zeros((1, 4 * fout_p), jnp.float32)
    b_big = b_big.at[:, 0 * fout_p:0 * fout_p + f_out].set(bz_eff)
    b_big = b_big.at[:, 1 * fout_p:1 * fout_p + f_out].set(br_eff)
    b_big = b_big.at[:, 2 * fout_p:2 * fout_p + f_out].set(bh_tanh)
    b_big = b_big.at[:, 3 * fout_p:3 * fout_p + f_out].set(p["bh"])

    lhh = jnp.zeros((fout_p, fout_p), jnp.float32)
    lhh = lhh.at[:f_out, :f_out].set(lh_bot)
    return w_big, b_big, lhh


# ----------------------------------------------------------------------------
# Pallas kernel: ResTGCN cell, iterated over the time grid (3 MXU dots / step)
# ----------------------------------------------------------------------------
def restgcn_seq_kernel(a_ref, x_ref, h0_ref, wbig_ref, bbig_ref, lhh_ref,
                       o_ref, h_scr, xh_scr):
    f32 = jnp.float32
    hp = jax.lax.Precision.HIGHEST
    fin_p = x_ref.shape[-1]          # 128-padded input feature width
    fout_p = h0_ref.shape[-1]        # 128-padded hidden width
    t = pl.program_id(0)

    @pl.when(t == 0)
    def _():
        h_scr[...] = h0_ref[...]     # initial hidden state (zero-padded)

    # Shared graph aggregation: A_hat @ X_t   (lane-dense, zero-padded cols)
    ax = jnp.dot(a_ref[...], x_ref[...],
                 preferred_element_type=f32, precision=hp)

    h = h_scr[...]

    # Assemble [ax | h] in a lane-dense VMEM slab -> single fused x/h matmul.
    xh_scr[:, :fin_p] = ax
    xh_scr[:, fin_p:] = h
    gx = jnp.dot(xh_scr[...], wbig_ref[...],
                 preferred_element_type=f32, precision=hp) + bbig_ref[...]

    # All slices below are at 128-lane boundaries -> free vreg views.
    z = jax.nn.sigmoid(gx[:, 0 * fout_p:1 * fout_p])
    r = jax.nn.sigmoid(gx[:, 1 * fout_p:2 * fout_p])

    # Candidate state: the (h*r) path depends on r, stays a separate dot.
    hr = h * r
    ht = jnp.tanh(
        gx[:, 2 * fout_p:3 * fout_p]
        + jnp.dot(hr, lhh_ref[...], preferred_element_type=f32, precision=hp)
    ) + gx[:, 3 * fout_p:]           # residual (= raw conv_h output)

    # New hidden state: z*h + (1-z)*ht  ==  ht + z*(h - ht)
    h_new = ht + z * (h - ht)
    h_scr[...] = h_new

    @pl.when(t == pl.num_programs(0) - 1)
    def _():
        o_ref[...] = h_new.astype(o_ref.dtype)


def restgcn_forward_seq(a_hat, x_seq, h0, w_big, b_big, lhh, f_in, f_out):
    """Run the ResTGCN cell over a whole time sequence in ONE pallas_call.

    a_hat : [N, N]        normalized dense adjacency (shared across steps)
    x_seq : [T, N, F_IN]  node features per time step
    h0    : [N, F_OUT]    initial hidden state
    Returns the final hidden state [N, F_OUT].
    """
    T, n, _ = x_seq.shape
    fin_p = _round_up(f_in, 128)
    fout_p = _round_up(f_out, 128)
    n_pad = _round_up(n, 8)

    # Zero-pad to lane-dense (128) feature widths and sublane-aligned rows.
    a_pad = jnp.zeros((n_pad, n_pad), jnp.float32).at[:n, :n].set(a_hat)
    x_pad = jnp.zeros((T, n_pad, fin_p), jnp.float32).at[:, :n, :f_in].set(x_seq)
    h0_pad = jnp.zeros((n_pad, fout_p), jnp.float32).at[:n, :f_out].set(h0)

    out = pl.pallas_call(
        restgcn_seq_kernel,
        out_shape=jax.ShapeDtypeStruct((n_pad, fout_p), jnp.float32),
        grid=(T,),
        in_specs=[
            pl.BlockSpec((n_pad, n_pad), lambda t: (0, 0)),            # A_hat (resident)
            pl.BlockSpec((None, n_pad, fin_p), lambda t: (t, 0, 0)),   # X_t   (streamed)
            pl.BlockSpec((n_pad, fout_p), lambda t: (0, 0)),           # h0    (resident)
            pl.BlockSpec((fin_p + fout_p, 4 * fout_p), lambda t: (0, 0)),  # W_big
            pl.BlockSpec((1, 4 * fout_p), lambda t: (0, 0)),           # bias
            pl.BlockSpec((fout_p, fout_p), lambda t: (0, 0)),          # Lh_bot
        ],
        out_specs=pl.BlockSpec((n_pad, fout_p), lambda t: (0, 0)),     # final H
        scratch_shapes=[
            pltpu.VMEM((n_pad, fout_p), jnp.float32),          # h carry
            pltpu.VMEM((n_pad, fin_p + fout_p), jnp.float32),  # [ax | h] slab
        ],
        compiler_params=pltpu.CompilerParams(
            dimension_semantics=("arbitrary",)),   # recurrent time axis
    )(a_pad, x_pad, h0_pad, w_big, b_big, lhh)
    return out[:n, :f_out]


# ----------------------------------------------------------------------------
# Pure-JAX reference (mirrors the PyTorch forward, unfused) for validation
# ----------------------------------------------------------------------------
def restgcn_reference_seq(a_hat, x_seq, h0, p):
    hp = jax.lax.Precision.HIGHEST

    def step(h, x):
        ax = jnp.dot(a_hat, x, precision=hp)
        xz = jnp.dot(ax, p["wz"], precision=hp) + p["bz"]
        xr = jnp.dot(ax, p["wr"], precision=hp) + p["br"]
        xh = jnp.dot(ax, p["wh"], precision=hp) + p["bh"]
        z = jax.nn.sigmoid(
            jnp.dot(jnp.concatenate([xz, h], axis=1), p["lz"], precision=hp)
            + p["lbz"] + xz)
        r = jax.nn.sigmoid(
            jnp.dot(jnp.concatenate([xr, h], axis=1), p["lr"], precision=hp)
            + p["lbr"] + xr)
        ht = jnp.tanh(
            jnp.dot(jnp.concatenate([xh, h * r], axis=1), p["lh"], precision=hp)
            + p["lbh"]) + xh
        h_new = z * h + (1.0 - z) * ht
        return h_new, None

    h_final, _ = jax.lax.scan(step, h0, x_seq)
    return h_final


# ----------------------------------------------------------------------------
# Main
# ----------------------------------------------------------------------------
if __name__ == "__main__":
    key = jax.random.PRNGKey(0)
    N = 16            # number of graph nodes
    F_IN = 8          # in_channels
    F_OUT = 16        # out_channels
    T = 8             # time steps (one cell application per step)

    ks = jax.random.split(key, 20)

    def init(k, shape, scale=0.1):
        return (scale * jax.random.normal(k, shape)).astype(jnp.float32)

    # GCN weights stored as [Fin, Fout]; Linear weights pre-transposed
    # as [2*Fout, Fout] (so cat([a, b]) @ L == a @ L[:Fout] + b @ L[Fout:]).
    params = {
        "wz": init(ks[0], (F_IN, F_OUT)),
        "wr": init(ks[1], (F_IN, F_OUT)),
        "wh": init(ks[2], (F_IN, F_OUT)),
        "bz": init(ks[3], (1, F_OUT)),
        "br": init(ks[4], (1, F_OUT)),
        "bh": init(ks[5], (1, F_OUT)),
        "lz": init(ks[6], (2 * F_OUT, F_OUT)),
        "lr": init(ks[7], (2 * F_OUT, F_OUT)),
        "lh": init(ks[8], (2 * F_OUT, F_OUT)),
        "lbz": init(ks[9], (1, F_OUT)),
        "lbr": init(ks[10], (1, F_OUT)),
        "lbh": init(ks[11], (1, F_OUT)),
    }

    # Inputs: per-step node features, ring-graph edges (both directions),
    # edge weights, and an initial hidden state.
    x_seq = jax.random.normal(ks[12], (T, N, F_IN)).astype(jnp.float32)
    src = jnp.arange(N, dtype=jnp.int32)
    dst = (src + 1) % N
    edge_index = jnp.stack(
        [jnp.concatenate([src, dst]), jnp.concatenate([dst, src])], axis=0
    )
    edge_weight = jnp.abs(
        jax.random.normal(ks[13], (edge_index.shape[1],))
    ).astype(jnp.float32) + 0.5
    h0 = init(ks[14], (N, F_OUT))

    # Dense normalized adjacency (glue) + composed / lane-dense-packed params.
    a_hat = gcn_norm_dense(edge_index, edge_weight, N,
                           improved=False, add_self_loops=True)
    w_big, b_big, lhh = pack_params(params, F_IN, F_OUT)

    out = restgcn_forward_seq(a_hat, x_seq, h0, w_big, b_big, lhh, F_IN, F_OUT)
    out = jax.block_until_ready(out)

    ref = restgcn_reference_seq(a_hat, x_seq, h0, params)
    assert out.shape == (N, F_OUT)
    assert bool(jnp.all(jnp.isfinite(out))), "non-finite output"
    assert jnp.allclose(out, ref, atol=1e-3, rtol=1e-3), "mismatch vs reference"

    print("KERNEL_OK")
</pallas_src>

<mosaic_0001>
module attributes {stable_mosaic.version = 11 : i64} {
  func.func @restgcn_seq_kernel(%arg0: i32, %arg1: memref<16x16xf32, #tpu.memory_space<vmem>>, %arg2: memref<1x16x128xf32, #tpu.memory_space<vmem>>, %arg3: memref<16x128xf32, #tpu.memory_space<vmem>>, %arg4: memref<256x512xf32, #tpu.memory_space<vmem>>, %arg5: memref<1x512xf32, #tpu.memory_space<vmem>>, %arg6: memref<128x128xf32, #tpu.memory_space<vmem>>, %arg7: memref<16x128xf32, #tpu.memory_space<vmem>>, %arg8: memref<16x128xf32, #tpu.memory_space<vmem>>, %arg9: memref<16x256xf32, #tpu.memory_space<vmem>>) attributes {dimension_semantics = [#tpu.dimension_semantics<arbitrary>], iteration_bounds = array<i64: 8>, scalar_prefetch = 0 : i64, scratch_operands = 2 : i64, tpu.core_type = #tpu.core_type<tc>, window_params = [{pipeline_mode = #tpu.pipeline_mode<synchronous>, transform_indices = @transform_0, window_bounds = array<i64: 16, 16>}, {transform_indices = @transform_1, window_bounds = array<i64: 1, 16, 128>}, {pipeline_mode = #tpu.pipeline_mode<synchronous>, transform_indices = @transform_2, window_bounds = array<i64: 16, 128>}, {pipeline_mode = #tpu.pipeline_mode<synchronous>, transform_indices = @transform_3, window_bounds = array<i64: 256, 512>}, {pipeline_mode = #tpu.pipeline_mode<synchronous>, transform_indices = @transform_4, window_bounds = array<i64: 1, 512>}, {pipeline_mode = #tpu.pipeline_mode<synchronous>, transform_indices = @transform_5, window_bounds = array<i64: 128, 128>}, {pipeline_mode = #tpu.pipeline_mode<synchronous>, transform_indices = @transform_6, window_bounds = array<i64: 16, 128>}]} {
    %c0_i32 = arith.constant 0 : i32
    %0 = arith.cmpi eq, %arg0, %c0_i32 : i32
    %1 = arith.extui %0 : i1 to i32
    %c0_i32_0 = arith.constant 0 : i32
    %2 = arith.cmpi ne, %1, %c0_i32_0 : i32
    scf.if %2 {
      %c0_25 = arith.constant 0 : index
      %c0_26 = arith.constant 0 : index
      %43 = vector.load %arg3[%c0_25, %c0_26] : memref<16x128xf32, #tpu.memory_space<vmem>>, vector<16x128xf32>
      %c0_27 = arith.constant 0 : index
      %c0_28 = arith.constant 0 : index
      %44 = vector.load %arg8[%c0_27, %c0_28] : memref<16x128xf32, #tpu.memory_space<vmem>>, vector<16x128xf32>
      tpu.vector_store %arg8[%c0_27, %c0_28], %43 {strides = array<i32>} : memref<16x128xf32, #tpu.memory_space<vmem>>, vector<16x128xf32>,
    } else {
    }
    %c0 = arith.constant 0 : index
    %c0_1 = arith.constant 0 : index
    %3 = vector.load %arg1[%c0, %c0_1] : memref<16x16xf32, #tpu.memory_space<vmem>>, vector<16x16xf32>
    %c0_2 = arith.constant 0 : index
    %c0_3 = arith.constant 0 : index
    %c0_4 = arith.constant 0 : index
    %4 = vector.load %arg2[%c0_2, %c0_3, %c0_4] : memref<1x16x128xf32, #tpu.memory_space<vmem>>, vector<1x16x128xf32>
    %5 = vector.shape_cast %4 : vector<1x16x128xf32> to vector<16x128xf32>
    %cst = arith.constant dense<0.000000e+00> : vector<16x128xf32>
    %6 = tpu.matmul %3, %5, %cst {dimension_numbers = #tpu.dot_dimension_numbers<[1], [0], [0], [1], [0, 0, 1, 1], [], []>, precision = #tpu.contract_precision<fp32>} : vector<16x16xf32>, vector<16x128xf32>, vector<16x128xf32> -> vector<16x128xf32>
    %c0_5 = arith.constant 0 : index
    %c0_6 = arith.constant 0 : index
    %7 = vector.load %arg8[%c0_5, %c0_6] : memref<16x128xf32, #tpu.memory_space<vmem>>, vector<16x128xf32>
    %c0_7 = arith.constant 0 : index
    %c0_8 = arith.constant 0 : index
    %8 = vector.load %arg9[%c0_7, %c0_8] : memref<16x256xf32, #tpu.memory_space<vmem>>, vector<16x128xf32>
    tpu.vector_store %arg9[%c0_7, %c0_8], %6 {strides = array<i32>} : memref<16x256xf32, #tpu.memory_space<vmem>>, vector<16x128xf32>,
    %c0_9 = arith.constant 0 : index
    %c128 = arith.constant 128 : index
    %9 = vector.load %arg9[%c0_9, %c128] : memref<16x256xf32, #tpu.memory_space<vmem>>, vector<16x128xf32>
    tpu.vector_store %arg9[%c0_9, %c128], %7 {strides = array<i32>} : memref<16x256xf32, #tpu.memory_space<vmem>>, vector<16x128xf32>,
    %c0_10 = arith.constant 0 : index
    %c0_11 = arith.constant 0 : index
    %10 = vector.load %arg9[%c0_10, %c0_11] : memref<16x256xf32, #tpu.memory_space<vmem>>, vector<16x256xf32>
    %c0_12 = arith.constant 0 : index
    %c0_13 = arith.constant 0 : index
    %11 = vector.load %arg4[%c0_12, %c0_13] : memref<256x512xf32, #tpu.memory_space<vmem>>, vector<256x512xf32>
    %cst_14 = arith.constant dense<0.000000e+00> : vector<16x512xf32>
    %12 = tpu.matmul %10, %11, %cst_14 {dimension_numbers = #tpu.dot_dimension_numbers<[1], [0], [0], [1], [0, 0, 1, 1], [], []>, precision = #tpu.contract_precision<fp32>} : vector<16x256xf32>, vector<256x512xf32>, vector<16x512xf32> -> vector<16x512xf32>
    %c0_15 = arith.constant 0 : index
    %c0_16 = arith.constant 0 : index
    %13 = vector.load %arg5[%c0_15, %c0_16] : memref<1x512xf32, #tpu.memory_space<vmem>>, vector<1x512xf32>
    %14 = vector.broadcast %13 : vector<1x512xf32> to vector<16x512xf32>
    %15 = arith.addf %12, %14 : vector<16x512xf32>
    %16 = vector.extract_strided_slice %15 {offsets = [0, 0], sizes = [16, 128], strides = [1, 1]} : vector<16x512xf32> to vector<16x128xf32>
    %17 = arith.negf %16 : vector<16x128xf32>
    %18 = math.exp %17 : vector<16x128xf32>
    %cst_17 = arith.constant 1.000000e+00 : f32
    %19 = vector.broadcast %cst_17 : f32 to vector<16x128xf32>
    %20 = arith.addf %19, %18 : vector<16x128xf32>
    %21 = arith.divf %19, %20 : vector<16x128xf32>
    %22 = vector.extract_strided_slice %15 {offsets = [0, 128], sizes = [16, 128], strides = [1, 1]} : vector<16x512xf32> to vector<16x128xf32>
    %23 = arith.negf %22 : vector<16x128xf32>
    %24 = math.exp %23 : vector<16x128xf32>
    %cst_18 = arith.constant 1.000000e+00 : f32
    %25 = vector.broadcast %cst_18 : f32 to vector<16x128xf32>
    %26 = arith.addf %25, %24 : vector<16x128xf32>
    %27 = arith.divf %25, %26 : vector<16x128xf32>
    %28 = arith.mulf %7, %27 : vector<16x128xf32>
    %29 = vector.extract_strided_slice %15 {offsets = [0, 256], sizes = [16, 128], strides = [1, 1]} : vector<16x512xf32> to vector<16x128xf32>
    %c0_19 = arith.constant 0 : index
    %c0_20 = arith.constant 0 : index
    %30 = vector.load %arg6[%c0_19, %c0_20] : memref<128x128xf32, #tpu.memory_space<vmem>>, vector<128x128xf32>
    %cst_21 = arith.constant dense<0.000000e+00> : vector<16x128xf32>
    %31 = tpu.matmul %28, %30, %cst_21 {dimension_numbers = #tpu.dot_dimension_numbers<[1], [0], [0], [1], [0, 0, 1, 1], [], []>, precision = #tpu.contract_precision<fp32>} : vector<16x128xf32>, vector<128x128xf32>, vector<16x128xf32> -> vector<16x128xf32>
    %32 = arith.addf %29, %31 : vector<16x128xf32>
    %33 = math.tanh %32 : vector<16x128xf32>
    %34 = vector.extract_strided_slice %15 {offsets = [0, 384], sizes = [16, 128], strides = [1, 1]} : vector<16x512xf32> to vector<16x128xf32>
    %35 = arith.addf %33, %34 : vector<16x128xf32>
    %36 = arith.subf %7, %35 : vector<16x128xf32>
    %37 = arith.mulf %21, %36 : vector<16x128xf32>
    %38 = arith.addf %35, %37 : vector<16x128xf32>
    %c0_22 = arith.constant 0 : index
    %c0_23 = arith.constant 0 : index
    %39 = vector.load %arg8[%c0_22, %c0_23] : memref<16x128xf32, #tpu.memory_space<vmem>>, vector<16x128xf32>
    tpu.vector_store %arg8[%c0_22, %c0_23], %38 {strides = array<i32>} : memref<16x128xf32, #tpu.memory_space<vmem>>, vector<16x128xf32>,
    %c7_i32 = arith.constant 7 : i32
    %40 = arith.cmpi eq, %arg0, %c7_i32 : i32
    %41 = arith.extui %40 : i1 to i32
    %c0_i32_24 = arith.constant 0 : i32
    %42 = arith.cmpi ne, %41, %c0_i32_24 : i32
    scf.if %42 {
      %c0_25 = arith.constant 0 : index
      %c0_26 = arith.constant 0 : index
      %43 = vector.load %arg7[%c0_25, %c0_26] : memref<16x128xf32, #tpu.memory_space<vmem>>, vector<16x128xf32>
      tpu.vector_store %arg7[%c0_25, %c0_26], %38 {strides = array<i32>} : memref<16x128xf32, #tpu.memory_space<vmem>>, vector<16x128xf32>,
    } else {
    }
    return
  }
  func.func @transform_0(%arg0: i32) -> (i32, i32) {
    %c0_i32 = arith.constant 0 : i32
    %c0_i32_0 = arith.constant 0 : i32
    %c0_i32_1 = arith.constant 0 : i32
    return %c0_i32, %c0_i32_0 : i32, i32
  }
  func.func @transform_1(%arg0: i32) -> (i32, i32, i32) {
    %c0_i32 = arith.constant 0 : i32
    %c0_i32_0 = arith.constant 0 : i32
    %c0_i32_1 = arith.constant 0 : i32
    return %arg0, %c0_i32, %c0_i32_0 : i32, i32, i32
  }
  func.func @transform_2(%arg0: i32) -> (i32, i32) {
    %c0_i32 = arith.constant 0 : i32
    %c0_i32_0 = arith.constant 0 : i32
    %c0_i32_1 = arith.constant 0 : i32
    return %c0_i32, %c0_i32_0 : i32, i32
  }
  func.func @transform_3(%arg0: i32) -> (i32, i32) {
    %c0_i32 = arith.constant 0 : i32
    %c0_i32_0 = arith.constant 0 : i32
    %c0_i32_1 = arith.constant 0 : i32
    return %c0_i32, %c0_i32_0 : i32, i32
  }
  func.func @transform_4(%arg0: i32) -> (i32, i32) {
    %c0_i32 = arith.constant 0 : i32
    %c0_i32_0 = arith.constant 0 : i32
    %c0_i32_1 = arith.constant 0 : i32
    return %c0_i32, %c0_i32_0 : i32, i32
  }
  func.func @transform_5(%arg0: i32) -> (i32, i32) {
    %c0_i32 = arith.constant 0 : i32
    %c0_i32_0 = arith.constant 0 : i32
    %c0_i32_1 = arith.constant 0 : i32
    return %c0_i32, %c0_i32_0 : i32, i32
  }
  func.func @transform_6(%arg0: i32) -> (i32, i32) {
    %c0_i32 = arith.constant 0 : i32
    %c0_i32_0 = arith.constant 0 : i32
    %c0_i32_1 = arith.constant 0 : i32
    return %c0_i32, %c0_i32_0 : i32, i32
  }
}

</mosaic_0001>

<llo_original>
// kernel: tpu_custom_call.1
$region0: #{tpu_custom_call.1}
  #allocation0 [shape = 'u32[]', space=smem, size = 0x4, offset = 0x4, fixed_abs, tag = 'smem constant byte address 0x4 - core index']
  #allocation1 [shape = 'u32[144,128]{1,0:T(1,128)}', space=vmem, size = 0x12000, scoped, tag = 'internal scratch']
  #allocation2 [shape = 'f32[16,128]{1,0:T(8,128)}', space=vmem, size = 0x2000, scoped, tag = 'scratch operand']
  #allocation3 [shape = 'f32[16,256]{1,0:T(8,128)}', space=vmem, size = 0x4000, scoped, tag = 'scratch operand']
  %s0 = inlined_call_operand.hbm [shape: f32[16,16], index: 0, kind: input, shape index: {}]
  %s1 = inlined_call_operand.hbm [shape: f32[8,16,128], index: 1, kind: input, shape index: {}]
  %s2 = inlined_call_operand.hbm [shape: f32[16,128], index: 2, kind: input, shape index: {}]
  %s3 = inlined_call_operand.hbm [shape: f32[256,512], index: 3, kind: input, shape index: {}]
  %s4 = inlined_call_operand.vmem [shape: f32[1,512], index: 4, kind: input, shape index: {}]
  %s5 = inlined_call_operand.hbm [shape: f32[128,128], index: 5, kind: input, shape index: {}]
  %s6 = inlined_call_operand.hbm [shape: f32[16,128], index: 6, kind: output, shape index: {}]
  %s7 = sld [smem:[#allocation0]]
  $region85: #{tpu_custom_call.1} parent=0
    _
  %s9 = ssub.s32 1, %s7
  %s10 = scalar_select 0, %s9, %s7
  $region1: #{tpu_custom_call.1} parent=0
    #allocation4 [shape = 'u8[8192]{0}', space=vmem, size = 0x2000, scoped, tag = 'input window, operand 0, single buffered']
    #allocation5 [shape = 's32[2]{0}', space=sflag, size = 0x8, scoped, tag = 'scoped memory for tpu_custom_call.1']
    #allocation6 [shape = 's32[2]{0}', space=sflag, size = 0x8, scoped, tag = 'scoped memory for tpu_custom_call.1']
    #allocation7 [shape = 'u8[16384]{0}', space=vmem, size = 0x4000, scoped, tag = 'input window, operand 1']
    #allocation8 [shape = 's32[2]{0}', space=sflag, size = 0x8, scoped, tag = 'scoped memory for tpu_custom_call.1']
    #allocation9 [shape = 'u8[8192]{0}', space=vmem, size = 0x2000, scoped, tag = 'input window, operand 2, single buffered']
    #allocation10 [shape = 'u8[524288]{0}', space=vmem, size = 0x80000, scoped, tag = 'input window, operand 3, single buffered']
    #allocation11 [shape = 's32[1]{0}', space=sflag, size = 0x4, scoped, tag = 'scoped memory for tpu_custom_call.1']
    #allocation12 [shape = 'u8[65536]{0}', space=vmem, size = 0x10000, scoped, tag = 'input window, operand 5, single buffered']
    #allocation13 [shape = 'u8[8192]{0}', space=vmem, size = 0x2000, scoped, tag = 'output window, operand 0, single buffered']
    %11 = vsyncpa [#allocation5], 0
    %12 = vsyncpa [#allocation8], 0
    %s13 = scalar_lea.sflag [#allocation8], 1
    %14 = vsyncpa %s13, 0
    %15 = vsyncpa [#allocation11], 0
    %16 = vsyncpa [#allocation6], 0
    loop: start=0, step=1, limit=10
    $region2: #{tpu_custom_call.1} parent=1 // loop_pre_header
      _
    $region3: #{tpu_custom_call.1} parent=1 // loop_header
      %s18 = sphi 0, %s22
      %p19 = scmp.ge.s32.totalorder %s18, 10
      %s26 = sphi 0, %s26
      %s28 = sphi 0, %s26
      %s29 = sphi 0, %s28
      %s43 = sphi 0, %s29
      %s49 = sphi 0, %s51
      %s52 = sphi 0, %s49
      %s53 = sphi 0, %s52
      %s69 = sphi 0, %s53
      %s73 = sphi 0, %s73
      %s75 = sphi 0, %s73
      %s76 = sphi 0, %s75
      %s90 = sphi 0, %s76
      %s94 = sphi 0, %s94
      %s96 = sphi 0, %s94
      %s97 = sphi 0, %s96
      %s111 = sphi 0, %s97
      %s115 = sphi 0, %s115
      %s117 = sphi 0, %s115
      %s118 = sphi 0, %s117
      %s132 = sphi 0, %s118
      %s136 = sphi 0, %s136
      %s138 = sphi 0, %s136
      %s139 = sphi 0, %s138
      %s153 = sphi 0, %s139
      %s157 = sphi 0, %s157
      %s159 = sphi 0, %s157
      %s160 = sphi 0, %s159
      %s174 = sphi 0, %s160
    $region4: #{tpu_custom_call.1} parent=1 // loop_header_branch
      %21 = sbr.rel (%p19) target = $region8
    $region5: #{tpu_custom_call.1} parent=1 // loop_body
      %s23 = ssub.s32 %s18, 1
      %s24 = ssub.s32 %s18, 2
      %s25 = sadd.s32 %s18, 1
      %s27 = sadd.s32 %s26, 1
      %p30 = scmp.eq.s32.totalorder %s18, 7
      %p31 = scmp.ne.s32.totalorder %s26, %s28
      %p32 = scmp.eq.s32.totalorder %s18, 0
      %p33 = por %p31, %p32
      %p34 = scmp.ne.s32.totalorder %s26, %s28
      %p35 = scmp.eq.s32.totalorder %s23, 7
      %p36 = por %p34, %p35
      %p37 = scmp.ne.s32.totalorder %s28, %s29
      %p38 = scmp.eq.s32.totalorder %s23, 0
      %p39 = por %p37, %p38
      %p40 = scmp.ne.s32.totalorder %s28, %s29
      %p41 = scmp.eq.s32.totalorder %s24, 7
      %p42 = por %p40, %p41
      %p44 = scmp.ne.s32.totalorder %s29, %s43
      %p45 = scmp.eq.s32.totalorder %s24, 0
      %p46 = por %p44, %p45
      %s47 = ssub.s32 %s18, %s25
      %p48 = scmp.eq.s32.totalorder %s47, 0
      %s50 = sadd.s32 %s49, 1
      %s51 = scalar_select %p48, %s49, %s50
      %p54 = pneg %p48
      %p55 = scmp.eq.s32.totalorder %s18, 7
      %p56 = por %p54, %p55
      %p57 = scmp.ne.s32.totalorder %s49, %s52
      %p58 = scmp.eq.s32.totalorder %s18, 0
      %p59 = por %p57, %p58
      %p60 = scmp.ne.s32.totalorder %s49, %s52
      %p61 = scmp.eq.s32.totalorder %s23, 7
      %p62 = por %p60, %p61
      %p63 = scmp.ne.s32.totalorder %s52, %s53
      %p64 = scmp.eq.s32.totalorder %s23, 0
      %p65 = por %p63, %p64
      %p66 = scmp.ne.s32.totalorder %s52, %s53
      %p67 = scmp.eq.s32.totalorder %s24, 7
      %p68 = por %p66, %p67
      %p70 = scmp.ne.s32.totalorder %s53, %s69
      %p71 = scmp.eq.s32.totalorder %s24, 0
      %p72 = por %p70, %p71
      %s74 = sadd.s32 %s73, 1
      %p77 = scmp.eq.s32.totalorder %s18, 7
      %p78 = scmp.ne.s32.totalorder %s73, %s75
      %p79 = scmp.eq.s32.totalorder %s18, 0
      %p80 = por %p78, %p79
      %p81 = scmp.ne.s32.totalorder %s73, %s75
      %p82 = scmp.eq.s32.totalorder %s23, 7
      %p83 = por %p81, %p82
      %p84 = scmp.ne.s32.totalorder %s75, %s76
      %p85 = scmp.eq.s32.totalorder %s23, 0
      %p86 = por %p84, %p85
      %p87 = scmp.ne.s32.totalorder %s75, %s76
      %p88 = scmp.eq.s32.totalorder %s24, 7
      %p89 = por %p87, %p88
      %p91 = scmp.ne.s32.totalorder %s76, %s90
      %p92 = scmp.eq.s32.totalorder %s24, 0
      %p93 = por %p91, %p92
      %s95 = sadd.s32 %s94, 1
      %p98 = scmp.eq.s32.totalorder %s18, 7
      %p99 = scmp.ne.s32.totalorder %s94, %s96
      %p100 = scmp.eq.s32.totalorder %s18, 0
      %p101 = por %p99, %p100
      %p102 = scmp.ne.s32.totalorder %s94, %s96
      %p103 = scmp.eq.s32.totalorder %s23, 7
      %p104 = por %p102, %p103
      %p105 = scmp.ne.s32.totalorder %s96, %s97
      %p106 = scmp.eq.s32.totalorder %s23, 0
      %p107 = por %p105, %p106
      %p108 = scmp.ne.s32.totalorder %s96, %s97
      %p109 = scmp.eq.s32.totalorder %s24, 7
      %p110 = por %p108, %p109
      %p112 = scmp.ne.s32.totalorder %s97, %s111
      %p113 = scmp.eq.s32.totalorder %s24, 0
      %p114 = por %p112, %p113
      %s116 = sadd.s32 %s115, 1
      %p119 = scmp.eq.s32.totalorder %s18, 7
      %p120 = scmp.ne.s32.totalorder %s115, %s117
      %p121 = scmp.eq.s32.totalorder %s18, 0
      %p122 = por %p120, %p121
      %p123 = scmp.ne.s32.totalorder %s115, %s117
      %p124 = scmp.eq.s32.totalorder %s23, 7
      %p125 = por %p123, %p124
      %p126 = scmp.ne.s32.totalorder %s117, %s118
      %p127 = scmp.eq.s32.totalorder %s23, 0
      %p128 = por %p126, %p127
      %p129 = scmp.ne.s32.totalorder %s117, %s118
      %p130 = scmp.eq.s32.totalorder %s24, 7
      %p131 = por %p129, %p130
      %p133 = scmp.ne.s32.totalorder %s118, %s132
      %p134 = scmp.eq.s32.totalorder %s24, 0
      %p135 = por %p133, %p134
      %s137 = sadd.s32 %s136, 1
      %p140 = scmp.eq.s32.totalorder %s18, 7
      %p141 = scmp.ne.s32.totalorder %s136, %s138
      %p142 = scmp.eq.s32.totalorder %s18, 0
      %p143 = por %p141, %p142
      %p144 = scmp.ne.s32.totalorder %s136, %s138
      %p145 = scmp.eq.s32.totalorder %s23, 7
      %p146 = por %p144, %p145
      %p147 = scmp.ne.s32.totalorder %s138, %s139
      %p148 = scmp.eq.s32.totalorder %s23, 0
      %p149 = por %p147, %p148
      %p150 = scmp.ne.s32.totalorder %s138, %s139
      %p151 = scmp.eq.s32.totalorder %s24, 7
      %p152 = por %p150, %p151
      %p154 = scmp.ne.s32.totalorder %s139, %s153
      %p155 = scmp.eq.s32.totalorder %s24, 0
      %p156 = por %p154, %p155
      %s158 = sadd.s32 %s157, 1
      %p161 = scmp.eq.s32.totalorder %s18, 7
      %p162 = scmp.ne.s32.totalorder %s157, %s159
      %p163 = scmp.eq.s32.totalorder %s18, 0
      %p164 = por %p162, %p163
      %p165 = scmp.ne.s32.totalorder %s157, %s159
      %p166 = scmp.eq.s32.totalorder %s23, 7
      %p167 = por %p165, %p166
      %p168 = scmp.ne.s32.totalorder %s159, %s160
      %p169 = scmp.eq.s32.totalorder %s23, 0
      %p170 = por %p168, %p169
      %p171 = scmp.ne.s32.totalorder %s159, %s160
      %p172 = scmp.eq.s32.totalorder %s24, 7
      %p173 = por %p171, %p172
      %p175 = scmp.ne.s32.totalorder %s160, %s174
      %p176 = scmp.eq.s32.totalorder %s24, 0
      %p177 = por %p175, %p176
      %p178 = scmp.le.s32.totalorder 1, %s18
      %p179 = scmp.lt.s32.totalorder %s18, 9
      %p180 = pnand %p178, %p179
      %p181 = pneg %p180
      // Predicated region
      $region9: #{tpu_custom_call.1} parent=5 // pred_check
        _
      $region10: #{tpu_custom_call.1} parent=5 // pred_check_branch
        %183 = sbr.rel (%p180) target = $region12
      $region11: #{tpu_custom_call.1} parent=5 // pred_region
        %s184 = ssub.s32 %s18, 1
        // Predicated region
        $region13: #{tpu_custom_call.1} parent=11 // pred_check
          %p185 = pneg %p39
        $region14: #{tpu_custom_call.1} parent=11 // pred_check_branch
          %187 = sbr.rel (%p185) target = $region16
        $region15: #{tpu_custom_call.1} parent=11 // pred_region
          %s189 = ssub.s32 256, 256
          %190 = vsyncadd [#allocation5], %s189
          %s191 = sshll.u32 [#allocation4], 4
          %s192 = int_to_ptr.vmem [resolvable:$true] %s191
          %197 = dma.hbm_to_vmem [thread:$0]  %s0, 256, %s192, [#allocation5], 128, 128, 8
        $region16: #{tpu_custom_call.1} parent=11 // pred_fallthru
          _
        // Predicated region
        $region17: #{tpu_custom_call.1} parent=11 // pred_check
          %p198 = pneg %p86
        $region18: #{tpu_custom_call.1} parent=11 // pred_check_branch
          %200 = sbr.rel (%p198) target = $region20
        $region19: #{tpu_custom_call.1} parent=11 // pred_region
          %s202 = ssub.s32 256, 256
          %203 = vsyncadd [#allocation8], %s202
          %s204 = sshll.u32 [#allocation9], 4
          %s205 = int_to_ptr.vmem [resolvable:$true] %s204
          %210 = dma.hbm_to_vmem [thread:$0]  %s2, 256, %s205, [#allocation8], 128, 128, 8
        $region20: #{tpu_custom_call.1} parent=11 // pred_fallthru
          _
        // Predicated region
        $region21: #{tpu_custom_call.1} parent=11 // pred_check
          %p211 = pneg %p107
        $region22: #{tpu_custom_call.1} parent=11 // pred_check_branch
          %213 = sbr.rel (%p211) target = $region24
        $region23: #{tpu_custom_call.1} parent=11 // pred_region
          %s215 = ssub.s32 16384, 16384
          %216 = vsyncadd [#allocation11], %s215
          %s217 = sshll.u32 [#allocation10], 4
          %s218 = int_to_ptr.vmem [resolvable:$true] %s217
          %223 = dma.hbm_to_vmem [thread:$0]  %s3, 16384, %s218, [#allocation11], 512, 512, 32
        $region24: #{tpu_custom_call.1} parent=11 // pred_fallthru
          _
        // Predicated region
        $region25: #{tpu_custom_call.1} parent=11 // pred_check
          %p224 = pneg %p128
        $region26: #{tpu_custom_call.1} parent=11 // pred_check_branch
          %226 = sbr.rel (%p224) target = $region28
        $region27: #{tpu_custom_call.1} parent=11 // pred_region
          _
        $region28: #{tpu_custom_call.1} parent=11 // pred_fallthru
          _
        // Predicated region
        $region29: #{tpu_custom_call.1} parent=11 // pred_check
          %p227 = pneg %p149
        $region30: #{tpu_custom_call.1} parent=11 // pred_check_branch
          %229 = sbr.rel (%p227) target = $region32
        $region31: #{tpu_custom_call.1} parent=11 // pred_region
          %s231 = ssub.s32 2048, 2048
          %232 = vsyncadd [#allocation11], %s231
          %s233 = sshll.u32 [#allocation12], 4
          %s234 = int_to_ptr.vmem [resolvable:$true] %s233
          %239 = dma.hbm_to_vmem [thread:$0]  %s5, 2048, %s234, [#allocation11], 128, 128, 8
        $region32: #{tpu_custom_call.1} parent=11 // pred_fallthru
          _
      $region12: #{tpu_custom_call.1} parent=5 // pred_fallthru
        _
      %p240 = scmp.lt.s32.totalorder %s18, 8
      // Predicated region
      $region33: #{tpu_custom_call.1} parent=5 // pred_check
        %p241 = pneg %p240
      $region34: #{tpu_custom_call.1} parent=5 // pred_check_branch
        %243 = sbr.rel (%p241) target = $region36
      $region35: #{tpu_custom_call.1} parent=5 // pred_region
        // Predicated region
        $region37: #{tpu_custom_call.1} parent=35 // pred_check
          %p244 = pneg %p59
        $region38: #{tpu_custom_call.1} parent=35 // pred_check_branch
          %246 = sbr.rel (%p244) target = $region40
        $region39: #{tpu_custom_call.1} parent=35 // pred_region
          %s247 = sand.u32 %s18, 1
          %s248 = scalar_lea.sflag [#allocation8], %s247
          %s249 = sand.u32 %s49, 1
          %s250 = smul.addr %s249, 16
          %s251 = scalar_lea.vmem [#allocation7], %s250
          %s253 = ssub.s32 256, 256
          %254 = vsyncadd %s248, %s253
          %s255 = smul.addr %s18, 2
          %s256 = smul.addr %s255, 128
          %s257 = scalar_lea.hbm %s1, %s256
          %s258 = sshll.u32 %s251, 4
          %s259 = int_to_ptr.vmem [resolvable:$true] %s258
          %264 = dma.hbm_to_vmem [thread:$0]  %s257, 256, %s259, %s248, 128, 128, 8
        $region40: #{tpu_custom_call.1} parent=35 // pred_fallthru
          _
      $region36: #{tpu_custom_call.1} parent=5 // pred_fallthru
        _
      %p265 = scmp.le.s32.totalorder 1, %s18
      %p266 = scmp.lt.s32.totalorder %s18, 9
      %p267 = pnand %p265, %p266
      %p268 = pneg %p267
      // Predicated region
      $region41: #{tpu_custom_call.1} parent=5 // pred_check
        _
      $region42: #{tpu_custom_call.1} parent=5 // pred_check_branch
        %270 = sbr.rel (%p267) target = $region44
      $region43: #{tpu_custom_call.1} parent=5 // pred_region
        %s271 = ssub.s32 %s18, 1
        // Predicated region
        $region45: #{tpu_custom_call.1} parent=43 // pred_check
          %p272 = pneg %p39
        $region46: #{tpu_custom_call.1} parent=43 // pred_check_branch
          %274 = sbr.rel (%p272) target = $region48
        $region47: #{tpu_custom_call.1} parent=43 // pred_region
          %275 = dma.done [#allocation5], 256
        $region48: #{tpu_custom_call.1} parent=43 // pred_fallthru
          _
        %s276 = sand.u32 %s23, 1
        %s277 = scalar_lea.sflag [#allocation8], %s276
        %s278 = sand.u32 %s52, 1
        %s279 = smul.addr %s278, 16
        %s280 = scalar_lea.vmem [#allocation7], %s279
        // Predicated region
        $region49: #{tpu_custom_call.1} parent=43 // pred_check
          %p281 = pneg %p65
        $region50: #{tpu_custom_call.1} parent=43 // pred_check_branch
          %283 = sbr.rel (%p281) target = $region52
        $region51: #{tpu_custom_call.1} parent=43 // pred_region
          %284 = dma.done %s277, 256
        $region52: #{tpu_custom_call.1} parent=43 // pred_fallthru
          _
        // Predicated region
        $region53: #{tpu_custom_call.1} parent=43 // pred_check
          %p285 = pneg %p86
        $region54: #{tpu_custom_call.1} parent=43 // pred_check_branch
          %287 = sbr.rel (%p285) target = $region56
        $region55: #{tpu_custom_call.1} parent=43 // pred_region
          %288 = dma.done [#allocation8], 256
        $region56: #{tpu_custom_call.1} parent=43 // pred_fallthru
          _
        // Predicated region
        $region57: #{tpu_custom_call.1} parent=43 // pred_check
          %p289 = pneg %p107
        $region58: #{tpu_custom_call.1} parent=43 // pred_check_branch
          %291 = sbr.rel (%p289) target = $region60
        $region59: #{tpu_custom_call.1} parent=43 // pred_region
          %292 = dma.done [#allocation11], 16384
        $region60: #{tpu_custom_call.1} parent=43 // pred_fallthru
          _
        // Predicated region
        $region61: #{tpu_custom_call.1} parent=43 // pred_check
          %p293 = pneg %p149
        $region62: #{tpu_custom_call.1} parent=43 // pred_check_branch
          %295 = sbr.rel (%p293) target = $region64
        $region63: #{tpu_custom_call.1} parent=43 // pred_region
          %296 = dma.done [#allocation11], 2048
        $region64: #{tpu_custom_call.1} parent=43 // pred_fallthru
          _
        %p297 = pneg %p39
        %p298 = pneg %p36
        %s299 = sand.u32 %s23, 1
        %s300 = scalar_lea.sflag [#allocation8], %s299
        %s301 = sand.u32 %s52, 1
        %s302 = smul.addr %s301, 16
        %s303 = scalar_lea.vmem [#allocation7], %s302
        %p304 = pneg %p65
        %p305 = pneg %p62
        %p306 = pneg %p86
        %p307 = pneg %p83
        %p308 = pneg %p107
        %p309 = pneg %p104
        %p310 = pneg %p128
        %p311 = pneg %p125
        %p312 = pneg %p149
        %p313 = pneg %p146
        %p314 = pneg %p170
        %p315 = pneg %p167
        %p316 = scmp.eq.s32.totalorder %s23, 0
        // Predicated region
        $region65: #{tpu_custom_call.1} parent=43 // pred_check
          %p317 = pneg %p316
        $region66: #{tpu_custom_call.1} parent=43 // pred_check_branch
          %319 = sbr.rel (%p317) target = $region68
        $region67: #{tpu_custom_call.1} parent=43 // pred_region
          %v320 = vld [vmem:[#allocation9] sm:$0xff]
          %v321 = vld [vmem:[#allocation9 + $0x8] sm:$0xff]
          %322 = vst [vmem:[#allocation2] sm:$0xff] %v320
          %323 = vst [vmem:[#allocation2 + $0x8] sm:$0xff] %v321
        $region68: #{tpu_custom_call.1} parent=43 // pred_fallthru
          _
        %v324 = vld [vmem:[#allocation4] sm:$0xff]
        %v325 = vld [vmem:[#allocation4 + $0x8] sm:$0xff]
        %v326 = vld [vmem:[%s280] sm:$0xff]
        %v327 = vld [vmem:[%s280 + $0x8] sm:$0xff]
        %vm328 = vcmask 130048
        %v330 = vsel %vm328, %v324, 0
        %v333 = vsel %vm328, %v325, 0
        %335 = vmatprep.subr.mxu0 0.0
        %v336 = vand.u32 %v326, 4294901760
        %337 = vmatpush1.msra.mxu0 %v336
        %338 = vmatprep.subr.mxu0 0.0
        %v339 = vand.u32 %v327, 4294901760
        %340 = vmatpush1.msra.mxu0 %v339
        %341 = vmatprep.subr.mxu0 0.0
        %342 = vmatpush1.msra.mxu0 0.0
        %343 = vmatprep.subr.mxu0 0.0
        %344 = vmatpush1.msra.mxu0 0.0
        %345 = vmatprep.subr.mxu0 0.0
        %346 = vmatpush1.msra.mxu0 0.0
        %347 = vmatprep.subr.mxu0 0.0
        %348 = vmatpush1.msra.mxu0 0.0
        %349 = vmatprep.subr.mxu0 0.0
        %350 = vmatpush1.msra.mxu0 0.0
        %351 = vmatprep.subr.mxu0 0.0
        %352 = vmatpush1.msra.mxu0 0.0
        %353 = vmatprep.subr.mxu0 0.0
        %354 = vmatpush1.msra.mxu0 0.0
        %355 = vmatprep.subr.mxu0 0.0
        %356 = vmatpush1.msra.mxu0 0.0
        %357 = vmatprep.subr.mxu0 0.0
        %358 = vmatpush1.msra.mxu0 0.0
        %359 = vmatprep.subr.mxu0 0.0
        %360 = vmatpush1.msra.mxu0 0.0
        %361 = vmatprep.subr.mxu0 0.0
        %362 = vmatpush1.msra.mxu0 0.0
        %363 = vmatprep.subr.mxu0 0.0
        %364 = vmatpush1.msra.mxu0 0.0
        %365 = vmatprep.subr.mxu0 0.0
        %366 = vmatpush1.msra.mxu0 0.0
        %367 = vmatprep.subr.mxu0 0.0
        %368 = vmatpush1.msra.mxu0 0.0
        %369 = vmatprep.subr.mxu0 0.0
        %370 = vmatpush1.msra.mxu0 0.0
        %371 = vmatprep.subr.mxu0 0.0
        %372 = vmatpush1.msra.mxu0 0.0
        %373 = vmatprep.subr.mxu0 0.0
        %374 = vmatpush1.msra.mxu0 0.0
        %375 = vmatprep.subr.mxu0 0.0
        %376 = vmatpush1.msra.mxu0 0.0
        %377 = vmatprep.subr.mxu0 0.0
        %378 = vmatpush1.msra.mxu0 0.0
        %379 = vmatprep.subr.mxu0 0.0
        %380 = vmatpush1.msra.mxu0 0.0
        %381 = vmatprep.subr.mxu0 0.0
        %382 = vmatpush1.msra.mxu0 0.0
        %383 = vmatprep.subr.mxu0 0.0
        %384 = vmatpush1.msra.mxu0 0.0
        %385 = vmatprep.subr.mxu0 0.0
        %386 = vmatpush1.msra.mxu0 0.0
        %387 = vmatprep.subr.mxu0 0.0
        %388 = vmatpush1.msra.mxu0 0.0
        %389 = vmatprep.subr.mxu0 0.0
        %390 = vmatpush1.msra.mxu0 0.0
        %391 = vmatprep.subr.mxu0 0.0
        %392 = vmatpush1.msra.mxu0 0.0
        %393 = vmatprep.subr.mxu0 0.0
        %394 = vmatpush1.msra.mxu0 0.0
        %395 = vmatprep.subr.mxu0 0.0
        %396 = vmatpush1.msra.mxu0 0.0
        %397 = vmatprep.subr.mxu0 0.0
        %398 = vmatpush1.msra.mxu0 0.0
        %399 = vmatprep.subr.mxu0 0.0
        %400 = vmatpush1.msra.mxu0 0.0
        %401 = vmatprep.mubr.f32.mxu0 0.0
        %v402 = vand.u32 %v330, 4294901760
        %v403 = vsub.f32 %v330, %v402
        %v404 = vand.u32 %v403, 4294901760
        %v405 = vsub.f32 %v403, %v404
        %v406 = vand.u32 %v405, 4294901760
        %407 = vmatmul.mubr.f32.gmra.mrb[0].mxu0 %v406
        %v408 = vpop.f32.mrb[0].mxu0
        %v409 = vadd.f32 0.0, %v408
        %v410 = vpop.f32.mrb[0].mxu0
        %411 = vmatprep.mubr.f32.mxu0 0.0
        %v412 = vand.u32 %v333, 4294901760
        %v413 = vsub.f32 %v333, %v412
        %v414 = vand.u32 %v413, 4294901760
        %v415 = vsub.f32 %v413, %v414
        %v416 = vand.u32 %v415, 4294901760
        %417 = vmatmul.mubr.f32.gmra.mrb[0].mxu0 %v416
        %v418 = vpop.f32.mrb[0].mxu0
        %v419 = vadd.f32 0.0, %v418
        %v420 = vpop.f32.mrb[0].mxu0
        %421 = vdwg.mxu0
        %422 = vmatprep.subr.mxu0 0.0
        %v423 = vand.u32 %v326, 4294901760
        %v424 = vsub.f32 %v326, %v423
        %v425 = vand.u32 %v424, 4294901760
        %v426 = vsub.f32 %v424, %v425
        %v427 = vand.u32 %v426, 4294901760
        %428 = vmatpush1.msra.mxu0 %v427
        %429 = vmatprep.subr.mxu0 0.0
        %v430 = vand.u32 %v327, 4294901760
        %v431 = vsub.f32 %v327, %v430
        %v432 = vand.u32 %v431, 4294901760
        %v433 = vsub.f32 %v431, %v432
        %v434 = vand.u32 %v433, 4294901760
        %435 = vmatpush1.msra.mxu0 %v434
        %436 = vmatprep.subr.mxu0 0.0
        %437 = vmatpush1.msra.mxu0 0.0
        %438 = vmatprep.subr.mxu0 0.0
        %439 = vmatpush1.msra.mxu0 0.0
        %440 = vmatprep.subr.mxu0 0.0
        %441 = vmatpush1.msra.mxu0 0.0
        %442 = vmatprep.subr.mxu0 0.0
        %443 = vmatpush1.msra.mxu0 0.0
        %444 = vmatprep.subr.mxu0 0.0
        %445 = vmatpush1.msra.mxu0 0.0
        %446 = vmatprep.subr.mxu0 0.0
        %447 = vmatpush1.msra.mxu0 0.0
        %448 = vmatprep.subr.mxu0 0.0
        %449 = vmatpush1.msra.mxu0 0.0
        %450 = vmatprep.subr.mxu0 0.0
        %451 = vmatpush1.msra.mxu0 0.0
        %452 = vmatprep.subr.mxu0 0.0
        %453 = vmatpush1.msra.mxu0 0.0
        %454 = vmatprep.subr.mxu0 0.0
        %455 = vmatpush1.msra.mxu0 0.0
        %456 = vmatprep.subr.mxu0 0.0
        %457 = vmatpush1.msra.mxu0 0.0
        %458 = vmatprep.subr.mxu0 0.0
        %459 = vmatpush1.msra.mxu0 0.0
        %460 = vmatprep.subr.mxu0 0.0
        %461 = vmatpush1.msra.mxu0 0.0
        %462 = vmatprep.subr.mxu0 0.0
        %463 = vmatpush1.msra.mxu0 0.0
        %464 = vmatprep.subr.mxu0 0.0
        %465 = vmatpush1.msra.mxu0 0.0
        %466 = vmatprep.subr.mxu0 0.0
        %467 = vmatpush1.msra.mxu0 0.0
        %468 = vmatprep.subr.mxu0 0.0
        %469 = vmatpush1.msra.mxu0 0.0
        %470 = vmatprep.subr.mxu0 0.0
        %471 = vmatpush1.msra.mxu0 0.0
        %472 = vmatprep.subr.mxu0 0.0
        %473 = vmatpush1.msra.mxu0 0.0
        %474 = vmatprep.subr.mxu0 0.0
        %475 = vmatpush1.msra.mxu0 0.0
        %476 = vmatprep.subr.mxu0 0.0
        %477 = vmatpush1.msra.mxu0 0.0
        %478 = vmatprep.subr.mxu0 0.0
        %479 = vmatpush1.msra.mxu0 0.0
        %480 = vmatprep.subr.mxu0 0.0
        %481 = vmatpush1.msra.mxu0 0.0
        %482 = vmatprep.subr.mxu0 0.0
        %483 = vmatpush1.msra.mxu0 0.0
        %484 = vmatprep.subr.mxu0 0.0
        %485 = vmatpush1.msra.mxu0 0.0
        %486 = vmatprep.subr.mxu0 0.0
        %487 = vmatpush1.msra.mxu0 0.0
        %488 = vmatprep.subr.mxu0 0.0
        %489 = vmatpush1.msra.mxu0 0.0
        %490 = vmatprep.subr.mxu0 0.0
        %491 = vmatpush1.msra.mxu0 0.0
        %492 = vmatprep.subr.mxu0 0.0
        %493 = vmatpush1.msra.mxu0 0.0
        %494 = vmatprep.subr.mxu0 0.0
        %495 = vmatpush1.msra.mxu0 0.0
        %496 = vmatprep.mubr.f32.mxu0 0.0
        %v497 = vand.u32 %v330, 4294901760
        %498 = vmatmul.mubr.f32.gmra.mrb[0].mxu0 %v497
        %v499 = vpop.f32.mrb[0].mxu0
        %v500 = vadd.f32 %v409, %v499
        %v501 = vpop.f32.mrb[0].mxu0
        %502 = vmatprep.mubr.f32.mxu0 0.0
        %v503 = vand.u32 %v333, 4294901760
        %504 = vmatmul.mubr.f32.gmra.mrb[0].mxu0 %v503
        %v505 = vpop.f32.mrb[0].mxu0
        %v506 = vadd.f32 %v419, %v505
        %v507 = vpop.f32.mrb[0].mxu0
        %508 = vdwg.mxu0
        %509 = vmatprep.subr.mxu0 0.0
        %v510 = vand.u32 %v326, 4294901760
        %v511 = vsub.f32 %v326, %v510
        %512 = vmatpush1.msra.mxu0 %v511
        %513 = vmatprep.subr.mxu0 0.0
        %v514 = vand.u32 %v327, 4294901760
        %v515 = vsub.f32 %v327, %v514
        %516 = vmatpush1.msra.mxu0 %v515
        %517 = vmatprep.subr.mxu0 0.0
        %518 = vmatpush1.msra.mxu0 0.0
        %519 = vmatprep.subr.mxu0 0.0
        %520 = vmatpush1.msra.mxu0 0.0
        %521 = vmatprep.subr.mxu0 0.0
        %522 = vmatpush1.msra.mxu0 0.0
        %523 = vmatprep.subr.mxu0 0.0
        %524 = vmatpush1.msra.mxu0 0.0
        %525 = vmatprep.subr.mxu0 0.0
        %526 = vmatpush1.msra.mxu0 0.0
        %527 = vmatprep.subr.mxu0 0.0
        %528 = vmatpush1.msra.mxu0 0.0
        %529 = vmatprep.subr.mxu0 0.0
        %530 = vmatpush1.msra.mxu0 0.0
        %531 = vmatprep.subr.mxu0 0.0
        %532 = vmatpush1.msra.mxu0 0.0
        %533 = vmatprep.subr.mxu0 0.0
        %534 = vmatpush1.msra.mxu0 0.0
        %535 = vmatprep.subr.mxu0 0.0
        %536 = vmatpush1.msra.mxu0 0.0
        %537 = vmatprep.subr.mxu0 0.0
        %538 = vmatpush1.msra.mxu0 0.0
        %539 = vmatprep.subr.mxu0 0.0
        %540 = vmatpush1.msra.mxu0 0.0
        %541 = vmatprep.subr.mxu0 0.0
        %542 = vmatpush1.msra.mxu0 0.0
        %543 = vmatprep.subr.mxu0 0.0
        %544 = vmatpush1.msra.mxu0 0.0
        %545 = vmatprep.subr.mxu0 0.0
        %546 = vmatpush1.msra.mxu0 0.0
        %547 = vmatprep.subr.mxu0 0.0
        %548 = vmatpush1.msra.mxu0 0.0
        %549 = vmatprep.subr.mxu0 0.0
        %550 = vmatpush1.msra.mxu0 0.0
        %551 = vmatprep.subr.mxu0 0.0
        %552 = vmatpush1.msra.mxu0 0.0
        %553 = vmatprep.subr.mxu0 0.0
        %554 = vmatpush1.msra.mxu0 0.0
        %555 = vmatprep.subr.mxu0 0.0
        %556 = vmatpush1.msra.mxu0 0.0
        %557 = vmatprep.subr.mxu0 0.0
        %558 = vmatpush1.msra.mxu0 0.0
        %559 = vmatprep.subr.mxu0 0.0
        %560 = vmatpush1.msra.mxu0 0.0
        %561 = vmatprep.subr.mxu0 0.0
        %562 = vmatpush1.msra.mxu0 0.0
        %563 = vmatprep.subr.mxu0 0.0
        %564 = vmatpush1.msra.mxu0 0.0
        %565 = vmatprep.subr.mxu0 0.0
        %566 = vmatpush1.msra.mxu0 0.0
        %567 = vmatprep.subr.mxu0 0.0
        %568 = vmatpush1.msra.mxu0 0.0
        %569 = vmatprep.subr.mxu0 0.0
        %570 = vmatpush1.msra.mxu0 0.0
        %571 = vmatprep.subr.mxu0 0.0
        %572 = vmatpush1.msra.mxu0 0.0
        %573 = vmatprep.subr.mxu0 0.0
        %574 = vmatpush1.msra.mxu0 0.0
        %575 = vmatprep.subr.mxu0 0.0
        %576 = vmatpush1.msra.mxu0 0.0
        %577 = vmatprep.mubr.f32.mxu0 0.0
        %v578 = vand.u32 %v330, 4294901760
        %v579 = vsub.f32 %v330, %v578
        %580 = vmatmul.mubr.f32.gmra.mrb[0].mxu0 %v579
        %v581 = vpop.f32.mrb[0].mxu0
        %v582 = vadd.f32 %v500, %v581
        %v583 = vpop.f32.mrb[0].mxu0
        %584 = vmatprep.mubr.f32.mxu0 0.0
        %v585 = vand.u32 %v333, 4294901760
        %v586 = vsub.f32 %v333, %v585
        %587 = vmatmul.mubr.f32.gmra.mrb[0].mxu0 %v586
        %v588 = vpop.f32.mrb[0].mxu0
        %v589 = vadd.f32 %v506, %v588
        %v590 = vpop.f32.mrb[0].mxu0
        %591 = vdwg.mxu0
        %592 = vmatprep.subr.mxu0 0.0
        %v593 = vand.u32 %v326, 4294901760
        %594 = vmatpush1.msra.mxu0 %v593
        %595 = vmatprep.subr.mxu0 0.0
        %v596 = vand.u32 %v327, 4294901760
        %597 = vmatpush1.msra.mxu0 %v596
        %598 = vmatprep.subr.mxu0 0.0
        %599 = vmatpush1.msra.mxu0 0.0
        %600 = vmatprep.subr.mxu0 0.0
        %601 = vmatpush1.msra.mxu0 0.0
        %602 = vmatprep.subr.mxu0 0.0
        %603 = vmatpush1.msra.mxu0 0.0
        %604 = vmatprep.subr.mxu0 0.0
        %605 = vmatpush1.msra.mxu0 0.0
        %606 = vmatprep.subr.mxu0 0.0
        %607 = vmatpush1.msra.mxu0 0.0
        %608 = vmatprep.subr.mxu0 0.0
        %609 = vmatpush1.msra.mxu0 0.0
        %610 = vmatprep.subr.mxu0 0.0
        %611 = vmatpush1.msra.mxu0 0.0
        %612 = vmatprep.subr.mxu0 0.0
        %613 = vmatpush1.msra.mxu0 0.0
        %614 = vmatprep.subr.mxu0 0.0
        %615 = vmatpush1.msra.mxu0 0.0
        %616 = vmatprep.subr.mxu0 0.0
        %617 = vmatpush1.msra.mxu0 0.0
        %618 = vmatprep.subr.mxu0 0.0
        %619 = vmatpush1.msra.mxu0 0.0
        %620 = vmatprep.subr.mxu0 0.0
        %621 = vmatpush1.msra.mxu0 0.0
        %622 = vmatprep.subr.mxu0 0.0
        %623 = vmatpush1.msra.mxu0 0.0
        %624 = vmatprep.subr.mxu0 0.0
        %625 = vmatpush1.msra.mxu0 0.0
        %626 = vmatprep.subr.mxu0 0.0
        %627 = vmatpush1.msra.mxu0 0.0
        %628 = vmatprep.subr.mxu0 0.0
        %629 = vmatpush1.msra.mxu0 0.0
        %630 = vmatprep.subr.mxu0 0.0
        %631 = vmatpush1.msra.mxu0 0.0
        %632 = vmatprep.subr.mxu0 0.0
        %633 = vmatpush1.msra.mxu0 0.0
        %634 = vmatprep.subr.mxu0 0.0
        %635 = vmatpush1.msra.mxu0 0.0
        %636 = vmatprep.subr.mxu0 0.0
        %637 = vmatpush1.msra.mxu0 0.0
        %638 = vmatprep.subr.mxu0 0.0
        %639 = vmatpush1.msra.mxu0 0.0
        %640 = vmatprep.subr.mxu0 0.0
        %641 = vmatpush1.msra.mxu0 0.0
        %642 = vmatprep.subr.mxu0 0.0
        %643 = vmatpush1.msra.mxu0 0.0
        %644 = vmatprep.subr.mxu0 0.0
        %645 = vmatpush1.msra.mxu0 0.0
        %646 = vmatprep.subr.mxu0 0.0
        %647 = vmatpush1.msra.mxu0 0.0
        %648 = vmatprep.subr.mxu0 0.0
        %649 = vmatpush1.msra.mxu0 0.0
        %650 = vmatprep.subr.mxu0 0.0
        %651 = vmatpush1.msra.mxu0 0.0
        %652 = vmatprep.subr.mxu0 0.0
        %653 = vmatpush1.msra.mxu0 0.0
        %654 = vmatprep.subr.mxu0 0.0
        %655 = vmatpush1.msra.mxu0 0.0
        %656 = vmatprep.subr.mxu0 0.0
        %657 = vmatpush1.msra.mxu0 0.0
        %658 = vmatprep.mubr.f32.mxu0 0.0
        %v659 = vand.u32 %v330, 4294901760
        %v660 = vsub.f32 %v330, %v659
        %v661 = vand.u32 %v660, 4294901760
        %662 = vmatmul.mubr.f32.gmra.mrb[0].mxu0 %v661
        %v663 = vpop.f32.mrb[0].mxu0
        %v664 = vadd.f32 %v582, %v663
        %v665 = vpop.f32.mrb[0].mxu0
        %666 = vmatprep.mubr.f32.mxu0 0.0
        %v667 = vand.u32 %v333, 4294901760
        %v668 = vsub.f32 %v333, %v667
        %v669 = vand.u32 %v668, 4294901760
        %670 = vmatmul.mubr.f32.gmra.mrb[0].mxu0 %v669
        %v671 = vpop.f32.mrb[0].mxu0
        %v672 = vadd.f32 %v589, %v671
        %v673 = vpop.f32.mrb[0].mxu0
        %674 = vdwg.mxu0
        %675 = vmatprep.subr.mxu0 0.0
        %v676 = vand.u32 %v326, 4294901760
        %v677 = vsub.f32 %v326, %v676
        %v678 = vand.u32 %v677, 4294901760
        %679 = vmatpush1.msra.mxu0 %v678
        %680 = vmatprep.subr.mxu0 0.0
        %v681 = vand.u32 %v327, 4294901760
        %v682 = vsub.f32 %v327, %v681
        %v683 = vand.u32 %v682, 4294901760
        %684 = vmatpush1.msra.mxu0 %v683
        %685 = vmatprep.subr.mxu0 0.0
        %686 = vmatpush1.msra.mxu0 0.0
        %687 = vmatprep.subr.mxu0 0.0
        %688 = vmatpush1.msra.mxu0 0.0
        %689 = vmatprep.subr.mxu0 0.0
        %690 = vmatpush1.msra.mxu0 0.0
        %691 = vmatprep.subr.mxu0 0.0
        %692 = vmatpush1.msra.mxu0 0.0
        %693 = vmatprep.subr.mxu0 0.0
        %694 = vmatpush1.msra.mxu0 0.0
        %695 = vmatprep.subr.mxu0 0.0
        %696 = vmatpush1.msra.mxu0 0.0
        %697 = vmatprep.subr.mxu0 0.0
        %698 = vmatpush1.msra.mxu0 0.0
        %699 = vmatprep.subr.mxu0 0.0
        %700 = vmatpush1.msra.mxu0 0.0
        %701 = vmatprep.subr.mxu0 0.0
        %702 = vmatpush1.msra.mxu0 0.0
        %703 = vmatprep.subr.mxu0 0.0
        %704 = vmatpush1.msra.mxu0 0.0
        %705 = vmatprep.subr.mxu0 0.0
        %706 = vmatpush1.msra.mxu0 0.0
        %707 = vmatprep.subr.mxu0 0.0
        %708 = vmatpush1.msra.mxu0 0.0
        %709 = vmatprep.subr.mxu0 0.0
        %710 = vmatpush1.msra.mxu0 0.0
        %711 = vmatprep.subr.mxu0 0.0
        %712 = vmatpush1.msra.mxu0 0.0
        %713 = vmatprep.subr.mxu0 0.0
        %714 = vmatpush1.msra.mxu0 0.0
        %715 = vmatprep.subr.mxu0 0.0
        %716 = vmatpush1.msra.mxu0 0.0
        %717 = vmatprep.subr.mxu0 0.0
        %718 = vmatpush1.msra.mxu0 0.0
        %719 = vmatprep.subr.mxu0 0.0
        %720 = vmatpush1.msra.mxu0 0.0
        %721 = vmatprep.subr.mxu0 0.0
        %722 = vmatpush1.msra.mxu0 0.0
        %723 = vmatprep.subr.mxu0 0.0
        %724 = vmatpush1.msra.mxu0 0.0
        %725 = vmatprep.subr.mxu0 0.0
        %726 = vmatpush1.msra.mxu0 0.0
        %727 = vmatprep.subr.mxu0 0.0
        %728 = vmatpush1.msra.mxu0 0.0
        %729 = vmatprep.subr.mxu0 0.0
        %730 = vmatpush1.msra.mxu0 0.0
        %731 = vmatprep.subr.mxu0 0.0
        %732 = vmatpush1.msra.mxu0 0.0
        %733 = vmatprep.subr.mxu0 0.0
        %734 = vmatpush1.msra.mxu0 0.0
        %735 = vmatprep.subr.mxu0 0.0
        %736 = vmatpush1.msra.mxu0 0.0
        %737 = vmatprep.subr.mxu0 0.0
        %738 = vmatpush1.msra.mxu0 0.0
        %739 = vmatprep.subr.mxu0 0.0
        %740 = vmatpush1.msra.mxu0 0.0
        %741 = vmatprep.subr.mxu0 0.0
        %742 = vmatpush1.msra.mxu0 0.0
        %743 = vmatprep.subr.mxu0 0.0
        %744 = vmatpush1.msra.mxu0 0.0
        %745 = vmatprep.mubr.f32.mxu0 0.0
        %v746 = vand.u32 %v330, 4294901760
        %747 = vmatmul.mubr.f32.gmra.mrb[0].mxu0 %v746
        %v748 = vpop.f32.mrb[0].mxu0
        %v749 = vadd.f32 %v664, %v748
        %v750 = vpop.f32.mrb[0].mxu0
        %751 = vmatprep.mubr.f32.mxu0 0.0
        %v752 = vand.u32 %v333, 4294901760
        %753 = vmatmul.mubr.f32.gmra.mrb[0].mxu0 %v752
        %v754 = vpop.f32.mrb[0].mxu0
        %v755 = vadd.f32 %v672, %v754
        %v756 = vpop.f32.mrb[0].mxu0
        %757 = vdwg.mxu0
        %758 = vmatprep.subr.mxu0 0.0
        %v759 = vand.u32 %v326, 4294901760
        %760 = vmatpush1.msra.mxu0 %v759
        %761 = vmatprep.subr.mxu0 0.0
        %v762 = vand.u32 %v327, 4294901760
        %763 = vmatpush1.msra.mxu0 %v762
        %764 = vmatprep.subr.mxu0 0.0
        %765 = vmatpush1.msra.mxu0 0.0
        %766 = vmatprep.subr.mxu0 0.0
        %767 = vmatpush1.msra.mxu0 0.0
        %768 = vmatprep.subr.mxu0 0.0
        %769 = vmatpush1.msra.mxu0 0.0
        %770 = vmatprep.subr.mxu0 0.0
        %771 = vmatpush1.msra.mxu0 0.0
        %772 = vmatprep.subr.mxu0 0.0
        %773 = vmatpush1.msra.mxu0 0.0
        %774 = vmatprep.subr.mxu0 0.0
        %775 = vmatpush1.msra.mxu0 0.0
        %776 = vmatprep.subr.mxu0 0.0
        %777 = vmatpush1.msra.mxu0 0.0
        %778 = vmatprep.subr.mxu0 0.0
        %779 = vmatpush1.msra.mxu0 0.0
        %780 = vmatprep.subr.mxu0 0.0
        %781 = vmatpush1.msra.mxu0 0.0
        %782 = vmatprep.subr.mxu0 0.0
        %783 = vmatpush1.msra.mxu0 0.0
        %784 = vmatprep.subr.mxu0 0.0
        %785 = vmatpush1.msra.mxu0 0.0
        %786 = vmatprep.subr.mxu0 0.0
        %787 = vmatpush1.msra.mxu0 0.0
        %788 = vmatprep.subr.mxu0 0.0
        %789 = vmatpush1.msra.mxu0 0.0
        %790 = vmatprep.subr.mxu0 0.0
        %791 = vmatpush1.msra.mxu0 0.0
        %792 = vmatprep.subr.mxu0 0.0
        %793 = vmatpush1.msra.mxu0 0.0
        %794 = vmatprep.subr.mxu0 0.0
        %795 = vmatpush1.msra.mxu0 0.0
        %796 = vmatprep.subr.mxu0 0.0
        %797 = vmatpush1.msra.mxu0 0.0
        %798 = vmatprep.subr.mxu0 0.0
        %799 = vmatpush1.msra.mxu0 0.0
        %800 = vmatprep.subr.mxu0 0.0
        %801 = vmatpush1.msra.mxu0 0.0
        %802 = vmatprep.subr.mxu0 0.0
        %803 = vmatpush1.msra.mxu0 0.0
        %804 = vmatprep.subr.mxu0 0.0
        %805 = vmatpush1.msra.mxu0 0.0
        %806 = vmatprep.subr.mxu0 0.0
        %807 = vmatpush1.msra.mxu0 0.0
        %808 = vmatprep.subr.mxu0 0.0
        %809 = vmatpush1.msra.mxu0 0.0
        %810 = vmatprep.subr.mxu0 0.0
        %811 = vmatpush1.msra.mxu0 0.0
        %812 = vmatprep.subr.mxu0 0.0
        %813 = vmatpush1.msra.mxu0 0.0
        %814 = vmatprep.subr.mxu0 0.0
        %815 = vmatpush1.msra.mxu0 0.0
        %816 = vmatprep.subr.mxu0 0.0
        %817 = vmatpush1.msra.mxu0 0.0
        %818 = vmatprep.subr.mxu0 0.0
        %819 = vmatpush1.msra.mxu0 0.0
        %820 = vmatprep.subr.mxu0 0.0
        %821 = vmatpush1.msra.mxu0 0.0
        %822 = vmatprep.subr.mxu0 0.0
        %823 = vmatpush1.msra.mxu0 0.0
        %824 = vmatprep.mubr.f32.mxu0 0.0
        %v825 = vand.u32 %v330, 4294901760
        %826 = vmatmul.mubr.f32.gmra.mrb[0].mxu0 %v825
        %v827 = vpop.f32.mrb[0].mxu0
        %v828 = vadd.f32 %v749, %v827
        %v829 = vpop.f32.mrb[0].mxu0
        %830 = vmatprep.mubr.f32.mxu0 0.0
        %v831 = vand.u32 %v333, 4294901760
        %832 = vmatmul.mubr.f32.gmra.mrb[0].mxu0 %v831
        %v833 = vpop.f32.mrb[0].mxu0
        %v834 = vadd.f32 %v755, %v833
        %v835 = vpop.f32.mrb[0].mxu0
        %836 = vdwg.mxu0
        %v837 = vld [vmem:[#allocation2] sm:$0xff]
        %v838 = vld [vmem:[#allocation2 + $0x8] sm:$0xff]
        %839 = vst [vmem:[#allocation3] sm:$0xff] %v828
        %840 = vst [vmem:[#allocation3 + $0x10] sm:$0xff] %v834
        %841 = vst [vmem:[#allocation3 + $0x8] sm:$0xff] %v837
        %842 = vst [vmem:[#allocation3 + $0x18] sm:$0xff] %v838
        %v843 = vld [vmem:[#allocation3] sm:$0xff]
        %v844 = vld [vmem:[#allocation3 + $0x8] sm:$0xff]
        %v845 = vld [vmem:[#allocation3 + $0x10] sm:$0xff]
        %v846 = vld [vmem:[#allocation3 + $0x18] sm:$0xff]
        %v847 = vld [vmem:[#allocation10] sm:$0xff]
        %v848 = vld [vmem:[#allocation10 + $0x8] sm:$0xff]
        %v849 = vld [vmem:[#allocation10 + $0x10] sm:$0xff]
        %v850 = vld [vmem:[#allocation10 + $0x18] sm:$0xff]
        %v851 = vld [vmem:[#allocation10 + $0x20] sm:$0xff]
        %v852 = vld [vmem:[#allocation10 + $0x28] sm:$0xff]
        %v853 = vld [vmem:[#allocation10 + $0x30] sm:$0xff]
        %v854 = vld [vmem:[#allocation10 + $0x38] sm:$0xff]
        %v855 = vld [vmem:[#allocation10 + $0x40] sm:$0xff]
        %v856 = vld [vmem:[#allocation10 + $0x48] sm:$0xff]
        %v857 = vld [vmem:[#allocation10 + $0x50] sm:$0xff]
        %v858 = vld [vmem:[#allocation10 + $0x58] sm:$0xff]
        %v859 = vld [vmem:[#allocation10 + $0x60] sm:$0xff]
        %v860 = vld [vmem:[#allocation10 + $0x68] sm:$0xff]
        %v861 = vld [vmem:[#allocation10 + $0x70] sm:$0xff]
        %v862 = vld [vmem:[#allocation10 + $0x78] sm:$0xff]
        %v863 = vld [vmem:[#allocation10 + $0x80] sm:$0xff]
        %v864 = vld [vmem:[#allocation10 + $0x88] sm:$0xff]
        %v865 = vld [vmem:[#allocation10 + $0x90] sm:$0xff]
        %v866 = vld [vmem:[#allocation10 + $0x98] sm:$0xff]
        %v867 = vld [vmem:[#allocation10 + $0xa0] sm:$0xff]
        %v868 = vld [vmem:[#allocation10 + $0xa8] sm:$0xff]
        %v869 = vld [vmem:[#allocation10 + $0xb0] sm:$0xff]
        %v870 = vld [vmem:[#allocation10 + $0xb8] sm:$0xff]
        %v871 = vld [vmem:[#allocation10 + $0xc0] sm:$0xff]
        %v872 = vld [vmem:[#allocation10 + $0xc8] sm:$0xff]
        %v873 = vld [vmem:[#allocation10 + $0xd0] sm:$0xff]
        %v874 = vld [vmem:[#allocation10 + $0xd8] sm:$0xff]
        %v875 = vld [vmem:[#allocation10 + $0xe0] sm:$0xff]
        %v876 = vld [vmem:[#allocation10 + $0xe8] sm:$0xff]
        %v877 = vld [vmem:[#allocation10 + $0xf0] sm:$0xff]
        %v878 = vld [vmem:[#allocation10 + $0xf8] sm:$0xff]
        %v879 = vld [vmem:[#allocation10 + $0x100] sm:$0xff]
        %v880 = vld [vmem:[#allocation10 + $0x108] sm:$0xff]
        %v881 = vld [vmem:[#allocation10 + $0x110] sm:$0xff]
        %v882 = vld [vmem:[#allocation10 + $0x118] sm:$0xff]
        %v883 = vld [vmem:[#allocation10 + $0x120] sm:$0xff]
        %v884 = vld [vmem:[#allocation10 + $0x128] sm:$0xff]
        %v885 = vld [vmem:[#allocation10 + $0x130] sm:$0xff]
        %v886 = vld [vmem:[#allocation10 + $0x138] sm:$0xff]
        %v887 = vld [vmem:[#allocation10 + $0x140] sm:$0xff]
        %v888 = vld [vmem:[#allocation10 + $0x148] sm:$0xff]
        %v889 = vld [vmem:[#allocation10 + $0x150] sm:$0xff]
        %v890 = vld [vmem:[#allocation10 + $0x158] sm:$0xff]
        %v891 = vld [vmem:[#allocation10 + $0x160] sm:$0xff]
        %v892 = vld [vmem:[#allocation10 + $0x168] sm:$0xff]
        %v893 = vld [vmem:[#allocation10 + $0x170] sm:$0xff]
        %v894 = vld [vmem:[#allocation10 + $0x178] sm:$0xff]
        %v895 = vld [vmem:[#allocation10 + $0x180] sm:$0xff]
        %v896 = vld [vmem:[#allocation10 + $0x188] sm:$0xff]
        %v897 = vld [vmem:[#allocation10 + $0x190] sm:$0xff]
        %v898 = vld [vmem:[#allocation10 + $0x198] sm:$0xff]
        %v899 = vld [vmem:[#allocation10 + $0x1a0] sm:$0xff]
        %v900 = vld [vmem:[#allocation10 + $0x1a8] sm:$0xff]
        %v901 = vld [vmem:[#allocation10 + $0x1b0] sm:$0xff]
        %v902 = vld [vmem:[#allocation10 + $0x1b8] sm:$0xff]
        %v903 = vld [vmem:[#allocation10 + $0x1c0] sm:$0xff]
        %v904 = vld [vmem:[#allocation10 + $0x1c8] sm:$0xff]
        %v905 = vld [vmem:[#allocation10 + $0x1d0] sm:$0xff]
        %v906 = vld [vmem:[#allocation10 + $0x1d8] sm:$0xff]
        %v907 = vld [vmem:[#allocation10 + $0x1e0] sm:$0xff]
        %v908 = vld [vmem:[#allocation10 + $0x1e8] sm:$0xff]
        %v909 = vld [vmem:[#allocation10 + $0x1f0] sm:$0xff]
        %v910 = vld [vmem:[#allocation10 + $0x1f8] sm:$0xff]
        %v911 = vld [vmem:[#allocation10 + $0x200] sm:$0xff]
        %v912 = vld [vmem:[#allocation10 + $0x208] sm:$0xff]
        %v913 = vld [vmem:[#allocation10 + $0x210] sm:$0xff]
        %v914 = vld [vmem:[#allocation10 + $0x218] sm:$0xff]
        %v915 = vld [vmem:[#allocation10 + $0x220] sm:$0xff]
        %v916 = vld [vmem:[#allocation10 + $0x228] sm:$0xff]
        %v917 = vld [vmem:[#allocation10 + $0x230] sm:$0xff]
        %v918 = vld [vmem:[#allocation10 + $0x238] sm:$0xff]
        %v919 = vld [vmem:[#allocation10 + $0x240] sm:$0xff]
        %v920 = vld [vmem:[#allocation10 + $0x248] sm:$0xff]
        %v921 = vld [vmem:[#allocation10 + $0x250] sm:$0xff]
        %v922 = vld [vmem:[#allocation10 + $0x258] sm:$0xff]
        %v923 = vld [vmem:[#allocation10 + $0x260] sm:$0xff]
        %v924 = vld [vmem:[#allocation10 + $0x268] sm:$0xff]
        %v925 = vld [vmem:[#allocation10 + $0x270] sm:$0xff]
        %v926 = vld [vmem:[#allocation10 + $0x278] sm:$0xff]
        %v927 = vld [vmem:[#allocation10 + $0x280] sm:$0xff]
        %v928 = vld [vmem:[#allocation10 + $0x288] sm:$0xff]
        %v929 = vld [vmem:[#allocation10 + $0x290] sm:$0xff]
        %v930 = vld [vmem:[#allocation10 + $0x298] sm:$0xff]
        %v931 = vld [vmem:[#allocation10 + $0x2a0] sm:$0xff]
        %v932 = vld [vmem:[#allocation10 + $0x2a8] sm:$0xff]
        %v933 = vld [vmem:[#allocation10 + $0x2b0] sm:$0xff]
        %v934 = vld [vmem:[#allocation10 + $0x2b8] sm:$0xff]
        %v935 = vld [vmem:[#allocation10 + $0x2c0] sm:$0xff]
        %v936 = vld [vmem:[#allocation10 + $0x2c8] sm:$0xff]
        %v937 = vld [vmem:[#allocation10 + $0x2d0] sm:$0xff]
        %v938 = vld [vmem:[#allocation10 + $0x2d8] sm:$0xff]
        %v939 = vld [vmem:[#allocation10 + $0x2e0] sm:$0xff]
        %v940 = vld [vmem:[#allocation10 + $0x2e8] sm:$0xff]
        %v941 = vld [vmem:[#allocation10 + $0x2f0] sm:$0xff]
        %v942 = vld [vmem:[#allocation10 + $0x2f8] sm:$0xff]
        %v943 = vld [vmem:[#allocation10 + $0x300] sm:$0xff]
        %v944 = vld [vmem:[#allocation10 + $0x308] sm:$0xff]
        %v945 = vld [vmem:[#allocation10 + $0x310] sm:$0xff]
        %v946 = vld [vmem:[#allocation10 + $0x318] sm:$0xff]
        %v947 = vld [vmem:[#allocation10 + $0x320] sm:$0xff]
        %v948 = vld [vmem:[#allocation10 + $0x328] sm:$0xff]
        %v949 = vld [vmem:[#allocation10 + $0x330] sm:$0xff]
        %v950 = vld [vmem:[#allocation10 + $0x338] sm:$0xff]
        %v951 = vld [vmem:[#allocation10 + $0x340] sm:$0xff]
        %v952 = vld [vmem:[#allocation10 + $0x348] sm:$0xff]
        %v953 = vld [vmem:[#allocation10 + $0x350] sm:$0xff]
        %v954 = vld [vmem:[#allocation10 + $0x358] sm:$0xff]
        %v955 = vld [vmem:[#allocation10 + $0x360] sm:$0xff]
        %v956 = vld [vmem:[#allocation10 + $0x368] sm:$0xff]
        %v957 = vld [vmem:[#allocation10 + $0x370] sm:$0xff]
        %v958 = vld [vmem:[#allocation10 + $0x378] sm:$0xff]
        %v959 = vld [vmem:[#allocation10 + $0x380] sm:$0xff]
        %v960 = vld [vmem:[#allocation10 + $0x388] sm:$0xff]
        %v961 = vld [vmem:[#allocation10 + $0x390] sm:$0xff]
        %v962 = vld [vmem:[#allocation10 + $0x398] sm:$0xff]
        %v963 = vld [vmem:[#allocation10 + $0x3a0] sm:$0xff]
        %v964 = vld [vmem:[#allocation10 + $0x3a8] sm:$0xff]
        %v965 = vld [vmem:[#allocation10 + $0x3b0] sm:$0xff]
        %v966 = vld [vmem:[#allocation10 + $0x3b8] sm:$0xff]
        %v967 = vld [vmem:[#allocation10 + $0x3c0] sm:$0xff]
        %v968 = vld [vmem:[#allocation10 + $0x3c8] sm:$0xff]
        %v969 = vld [vmem:[#allocation10 + $0x3d0] sm:$0xff]
        %v970 = vld [vmem:[#allocation10 + $0x3d8] sm:$0xff]
        %v971 = vld [vmem:[#allocation10 + $0x3e0] sm:$0xff]
        %v972 = vld [vmem:[#allocation10 + $0x3e8] sm:$0xff]
        %v973 = vld [vmem:[#allocation10 + $0x3f0] sm:$0xff]
        %v974 = vld [vmem:[#allocation10 + $0x3f8] sm:$0xff]
        %v975 = vld [vmem:[%s4] sm:$0xf]
        %v977 = vlaneseq
        %v978 = vshrl.u32 %v977, 7
        %v979 = vsub.s32 0, %v978
        %v980 = vrot.slane %v975, %v979
        %v981 = vlaneseq
        %v982 = vshrl.u32 %v981, 7
        %v983 = vsub.s32 1, %v982
        %v984 = vrot.slane %v975, %v983
        %v985 = vlaneseq
        %v986 = vshrl.u32 %v985, 7
        %v987 = vsub.s32 2, %v986
        %v988 = vrot.slane %v975, %v987
        %v989 = vlaneseq
        %v990 = vshrl.u32 %v989, 7
        %v991 = vsub.s32 3, %v990
        %v992 = vrot.slane %v975, %v991
        %v997 = vand.u32 %v848, 4294901760
        %998 = vmatprep.subr.mxu0 %v997
        %v999 = vand.u32 %v847, 4294901760
        %1000 = vmatpush1.msra.mxu0 %v999
        %v1001 = vand.u32 %v852, 4294901760
        %1002 = vmatprep.subr.mxu0 %v1001
        %v1003 = vand.u32 %v851, 4294901760
        %1004 = vmatpush1.msra.mxu0 %v1003
        %v1005 = vand.u32 %v856, 4294901760
        %1006 = vmatprep.subr.mxu0 %v1005
        %v1007 = vand.u32 %v855, 4294901760
        %1008 = vmatpush1.msra.mxu0 %v1007
        %v1009 = vand.u32 %v860, 4294901760
        %1010 = vmatprep.subr.mxu0 %v1009
        %v1011 = vand.u32 %v859, 4294901760
        %1012 = vmatpush1.msra.mxu0 %v1011
        %v1013 = vand.u32 %v864, 4294901760
        %1014 = vmatprep.subr.mxu0 %v1013
        %v1015 = vand.u32 %v863, 4294901760
        %1016 = vmatpush1.msra.mxu0 %v1015
        %v1017 = vand.u32 %v868, 4294901760
        %1018 = vmatprep.subr.mxu0 %v1017
        %v1019 = vand.u32 %v867, 4294901760
        %1020 = vmatpush1.msra.mxu0 %v1019
        %v1021 = vand.u32 %v872, 4294901760
        %1022 = vmatprep.subr.mxu0 %v1021
        %v1023 = vand.u32 %v871, 4294901760
        %1024 = vmatpush1.msra.mxu0 %v1023
        %v1025 = vand.u32 %v876, 4294901760
        %1026 = vmatprep.subr.mxu0 %v1025
        %v1027 = vand.u32 %v875, 4294901760
        %1028 = vmatpush1.msra.mxu0 %v1027
        %v1029 = vand.u32 %v880, 4294901760
        %1030 = vmatprep.subr.mxu0 %v1029
        %v1031 = vand.u32 %v879, 4294901760
        %1032 = vmatpush1.msra.mxu0 %v1031
        %v1033 = vand.u32 %v884, 4294901760
        %1034 = vmatprep.subr.mxu0 %v1033
        %v1035 = vand.u32 %v883, 4294901760
        %1036 = vmatpush1.msra.mxu0 %v1035
        %v1037 = vand.u32 %v888, 4294901760
        %1038 = vmatprep.subr.mxu0 %v1037
        %v1039 = vand.u32 %v887, 4294901760
        %1040 = vmatpush1.msra.mxu0 %v1039
        %v1041 = vand.u32 %v892, 4294901760
        %1042 = vmatprep.subr.mxu0 %v1041
        %v1043 = vand.u32 %v891, 4294901760
        %1044 = vmatpush1.msra.mxu0 %v1043
        %v1045 = vand.u32 %v896, 4294901760
        %1046 = vmatprep.subr.mxu0 %v1045
        %v1047 = vand.u32 %v895, 4294901760
        %1048 = vmatpush1.msra.mxu0 %v1047
        %v1049 = vand.u32 %v900, 4294901760
        %1050 = vmatprep.subr.mxu0 %v1049
        %v1051 = vand.u32 %v899, 4294901760
        %1052 = vmatpush1.msra.mxu0 %v1051
        %v1053 = vand.u32 %v904, 4294901760
        %1054 = vmatprep.subr.mxu0 %v1053
        %v1055 = vand.u32 %v903, 4294901760
        %1056 = vmatpush1.msra.mxu0 %v1055
        %v1057 = vand.u32 %v908, 4294901760
        %1058 = vmatprep.subr.mxu0 %v1057
        %v1059 = vand.u32 %v907, 4294901760
        %1060 = vmatpush1.msra.mxu0 %v1059
        %v1061 = vand.u32 %v912, 4294901760
        %1062 = vmatprep.subr.mxu0 %v1061
        %v1063 = vand.u32 %v911, 4294901760
        %1064 = vmatpush1.msra.mxu0 %v1063
        %v1065 = vand.u32 %v916, 4294901760
        %1066 = vmatprep.subr.mxu0 %v1065
        %v1067 = vand.u32 %v915, 4294901760
        %1068 = vmatpush1.msra.mxu0 %v1067
        %v1069 = vand.u32 %v920, 4294901760
        %1070 = vmatprep.subr.mxu0 %v1069
        %v1071 = vand.u32 %v919, 4294901760
        %1072 = vmatpush1.msra.mxu0 %v1071
        %v1073 = vand.u32 %v924, 4294901760
        %1074 = vmatprep.subr.mxu0 %v1073
        %v1075 = vand.u32 %v923, 4294901760
        %1076 = vmatpush1.msra.mxu0 %v1075
        %v1077 = vand.u32 %v928, 4294901760
        %1078 = vmatprep.subr.mxu0 %v1077
        %v1079 = vand.u32 %v927, 4294901760
        %1080 = vmatpush1.msra.mxu0 %v1079
        %v1081 = vand.u32 %v932, 4294901760
        %1082 = vmatprep.subr.mxu0 %v1081
        %v1083 = vand.u32 %v931, 4294901760
        %1084 = vmatpush1.msra.mxu0 %v1083
        %v1085 = vand.u32 %v936, 4294901760
        %1086 = vmatprep.subr.mxu0 %v1085
        %v1087 = vand.u32 %v935, 4294901760
        %1088 = vmatpush1.msra.mxu0 %v1087
        %v1089 = vand.u32 %v940, 4294901760
        %1090 = vmatprep.subr.mxu0 %v1089
        %v1091 = vand.u32 %v939, 4294901760
        %1092 = vmatpush1.msra.mxu0 %v1091
        %v1093 = vand.u32 %v944, 4294901760
        %1094 = vmatprep.subr.mxu0 %v1093
        %v1095 = vand.u32 %v943, 4294901760
        %1096 = vmatpush1.msra.mxu0 %v1095
        %v1097 = vand.u32 %v948, 4294901760
        %1098 = vmatprep.subr.mxu0 %v1097
        %v1099 = vand.u32 %v947, 4294901760
        %1100 = vmatpush1.msra.mxu0 %v1099
        %v1101 = vand.u32 %v952, 4294901760
        %1102 = vmatprep.subr.mxu0 %v1101
        %v1103 = vand.u32 %v951, 4294901760
        %1104 = vmatpush1.msra.mxu0 %v1103
        %v1105 = vand.u32 %v956, 4294901760
        %1106 = vmatprep.subr.mxu0 %v1105
        %v1107 = vand.u32 %v955, 4294901760
        %1108 = vmatpush1.msra.mxu0 %v1107
        %v1109 = vand.u32 %v960, 4294901760
        %1110 = vmatprep.subr.mxu0 %v1109
        %v1111 = vand.u32 %v959, 4294901760
        %1112 = vmatpush1.msra.mxu0 %v1111
        %v1113 = vand.u32 %v964, 4294901760
        %1114 = vmatprep.subr.mxu0 %v1113
        %v1115 = vand.u32 %v963, 4294901760
        %1116 = vmatpush1.msra.mxu0 %v1115
        %v1117 = vand.u32 %v968, 4294901760
        %1118 = vmatprep.subr.mxu0 %v1117
        %v1119 = vand.u32 %v967, 4294901760
        %1120 = vmatpush1.msra.mxu0 %v1119
        %v1121 = vand.u32 %v972, 4294901760
        %1122 = vmatprep.subr.mxu0 %v1121
        %v1123 = vand.u32 %v971, 4294901760
        %1124 = vmatpush1.msra.mxu0 %v1123
        %v1125 = vand.u32 %v844, 4294901760
        %v1126 = vsub.f32 %v844, %v1125
        %v1127 = vand.u32 %v1126, 4294901760
        %v1128 = vsub.f32 %v1126, %v1127
        %v1129 = vand.u32 %v1128, 4294901760
        %1130 = vmatprep.mubr.f32.mxu0 %v1129
        %v1131 = vand.u32 %v843, 4294901760
        %v1132 = vsub.f32 %v843, %v1131
        %v1133 = vand.u32 %v1132, 4294901760
        %v1134 = vsub.f32 %v1132, %v1133
        %v1135 = vand.u32 %v1134, 4294901760
        %1136 = vmatmul.mubr.f32.gmra.mrb[0].mxu0 %v1135
        %v1137 = vpop.f32.mrb[0].mxu0
        %v1138 = vadd.f32 %v980, %v1137
        %v1139 = vpop.f32.mrb[0].mxu0
        %v1140 = vadd.f32 %v984, %v1139
        %v1141 = vand.u32 %v846, 4294901760
        %v1142 = vsub.f32 %v846, %v1141
        %v1143 = vand.u32 %v1142, 4294901760
        %v1144 = vsub.f32 %v1142, %v1143
        %v1145 = vand.u32 %v1144, 4294901760
        %1146 = vmatprep.mubr.f32.mxu0 %v1145
        %v1147 = vand.u32 %v845, 4294901760
        %v1148 = vsub.f32 %v845, %v1147
        %v1149 = vand.u32 %v1148, 4294901760
        %v1150 = vsub.f32 %v1148, %v1149
        %v1151 = vand.u32 %v1150, 4294901760
        %1152 = vmatmul.mubr.f32.gmra.mrb[0].mxu0 %v1151
        %v1153 = vpop.f32.mrb[0].mxu0
        %v1154 = vadd.f32 %v980, %v1153
        %v1155 = vpop.f32.mrb[0].mxu0
        %v1156 = vadd.f32 %v984, %v1155
        %1157 = vdwg.mxu0
        %v1158 = vand.u32 %v848, 4294901760
        %v1159 = vsub.f32 %v848, %v1158
        %v1160 = vand.u32 %v1159, 4294901760
        %v1161 = vsub.f32 %v1159, %v1160
        %v1162 = vand.u32 %v1161, 4294901760
        %1163 = vmatprep.subr.mxu0 %v1162
        %v1164 = vand.u32 %v847, 4294901760
        %v1165 = vsub.f32 %v847, %v1164
        %v1166 = vand.u32 %v1165, 4294901760
        %v1167 = vsub.f32 %v1165, %v1166
        %v1168 = vand.u32 %v1167, 4294901760
        %1169 = vmatpush1.msra.mxu0 %v1168
        %v1170 = vand.u32 %v852, 4294901760
        %v1171 = vsub.f32 %v852, %v1170
        %v1172 = vand.u32 %v1171, 4294901760
        %v1173 = vsub.f32 %v1171, %v1172
        %v1174 = vand.u32 %v1173, 4294901760
        %1175 = vmatprep.subr.mxu0 %v1174
        %v1176 = vand.u32 %v851, 4294901760
        %v1177 = vsub.f32 %v851, %v1176
        %v1178 = vand.u32 %v1177, 4294901760
        %v1179 = vsub.f32 %v1177, %v1178
        %v1180 = vand.u32 %v1179, 4294901760
        %1181 = vmatpush1.msra.mxu0 %v1180
        %v1182 = vand.u32 %v856, 4294901760
        %v1183 = vsub.f32 %v856, %v1182
        %v1184 = vand.u32 %v1183, 4294901760
        %v1185 = vsub.f32 %v1183, %v1184
        %v1186 = vand.u32 %v1185, 4294901760
        %1187 = vmatprep.subr.mxu0 %v1186
        %v1188 = vand.u32 %v855, 4294901760
        %v1189 = vsub.f32 %v855, %v1188
        %v1190 = vand.u32 %v1189, 4294901760
        %v1191 = vsub.f32 %v1189, %v1190
        %v1192 = vand.u32 %v1191, 4294901760
        %1193 = vmatpush1.msra.mxu0 %v1192
        %v1194 = vand.u32 %v860, 4294901760
        %v1195 = vsub.f32 %v860, %v1194
        %v1196 = vand.u32 %v1195, 4294901760
        %v1197 = vsub.f32 %v1195, %v1196
        %v1198 = vand.u32 %v1197, 4294901760
        %1199 = vmatprep.subr.mxu0 %v1198
        %v1200 = vand.u32 %v859, 4294901760
        %v1201 = vsub.f32 %v859, %v1200
        %v1202 = vand.u32 %v1201, 4294901760
        %v1203 = vsub.f32 %v1201, %v1202
        %v1204 = vand.u32 %v1203, 4294901760
        %1205 = vmatpush1.msra.mxu0 %v1204
        %v1206 = vand.u32 %v864, 4294901760
        %v1207 = vsub.f32 %v864, %v1206
        %v1208 = vand.u32 %v1207, 4294901760
        %v1209 = vsub.f32 %v1207, %v1208
        %v1210 = vand.u32 %v1209, 4294901760
        %1211 = vmatprep.subr.mxu0 %v1210
        %v1212 = vand.u32 %v863, 4294901760
        %v1213 = vsub.f32 %v863, %v1212
        %v1214 = vand.u32 %v1213, 4294901760
        %v1215 = vsub.f32 %v1213, %v1214
        %v1216 = vand.u32 %v1215, 4294901760
        %1217 = vmatpush1.msra.mxu0 %v1216
        %v1218 = vand.u32 %v868, 4294901760
        %v1219 = vsub.f32 %v868, %v1218
        %v1220 = vand.u32 %v1219, 4294901760
        %v1221 = vsub.f32 %v1219, %v1220
        %v1222 = vand.u32 %v1221, 4294901760
        %1223 = vmatprep.subr.mxu0 %v1222
        %v1224 = vand.u32 %v867, 4294901760
        %v1225 = vsub.f32 %v867, %v1224
        %v1226 = vand.u32 %v1225, 4294901760
        %v1227 = vsub.f32 %v1225, %v1226
        %v1228 = vand.u32 %v1227, 4294901760
        %1229 = vmatpush1.msra.mxu0 %v1228
        %v1230 = vand.u32 %v872, 4294901760
        %v1231 = vsub.f32 %v872, %v1230
        %v1232 = vand.u32 %v1231, 4294901760
        %v1233 = vsub.f32 %v1231, %v1232
        %v1234 = vand.u32 %v1233, 4294901760
        %1235 = vmatprep.subr.mxu0 %v1234
        %v1236 = vand.u32 %v871, 4294901760
        %v1237 = vsub.f32 %v871, %v1236
        %v1238 = vand.u32 %v1237, 4294901760
        %v1239 = vsub.f32 %v1237, %v1238
        %v1240 = vand.u32 %v1239, 4294901760
        %1241 = vmatpush1.msra.mxu0 %v1240
        %v1242 = vand.u32 %v876, 4294901760
        %v1243 = vsub.f32 %v876, %v1242
        %v1244 = vand.u32 %v1243, 4294901760
        %v1245 = vsub.f32 %v1243, %v1244
        %v1246 = vand.u32 %v1245, 4294901760
        %1247 = vmatprep.subr.mxu0 %v1246
        %v1248 = vand.u32 %v875, 4294901760
        %v1249 = vsub.f32 %v875, %v1248
        %v1250 = vand.u32 %v1249, 4294901760
        %v1251 = vsub.f32 %v1249, %v1250
        %v1252 = vand.u32 %v1251, 4294901760
        %1253 = vmatpush1.msra.mxu0 %v1252
        %v1254 = vand.u32 %v880, 4294901760
        %v1255 = vsub.f32 %v880, %v1254
        %v1256 = vand.u32 %v1255, 4294901760
        %v1257 = vsub.f32 %v1255, %v1256
        %v1258 = vand.u32 %v1257, 4294901760
        %1259 = vmatprep.subr.mxu0 %v1258
        %v1260 = vand.u32 %v879, 4294901760
        %v1261 = vsub.f32 %v879, %v1260
        %v1262 = vand.u32 %v1261, 4294901760
        %v1263 = vsub.f32 %v1261, %v1262
        %v1264 = vand.u32 %v1263, 4294901760
        %1265 = vmatpush1.msra.mxu0 %v1264
        %v1266 = vand.u32 %v884, 4294901760
        %v1267 = vsub.f32 %v884, %v1266
        %v1268 = vand.u32 %v1267, 4294901760
        %v1269 = vsub.f32 %v1267, %v1268
        %v1270 = vand.u32 %v1269, 4294901760
        %1271 = vmatprep.subr.mxu0 %v1270
        %v1272 = vand.u32 %v883, 4294901760
        %v1273 = vsub.f32 %v883, %v1272
        %v1274 = vand.u32 %v1273, 4294901760
        %v1275 = vsub.f32 %v1273, %v1274
        %v1276 = vand.u32 %v1275, 4294901760
        %1277 = vmatpush1.msra.mxu0 %v1276
        %v1278 = vand.u32 %v888, 4294901760
        %v1279 = vsub.f32 %v888, %v1278
        %v1280 = vand.u32 %v1279, 4294901760
        %v1281 = vsub.f32 %v1279, %v1280
        %v1282 = vand.u32 %v1281, 4294901760
        %1283 = vmatprep.subr.mxu0 %v1282
        %v1284 = vand.u32 %v887, 4294901760
        %v1285 = vsub.f32 %v887, %v1284
        %v1286 = vand.u32 %v1285, 4294901760
        %v1287 = vsub.f32 %v1285, %v1286
        %v1288 = vand.u32 %v1287, 4294901760
        %1289 = vmatpush1.msra.mxu0 %v1288
        %v1290 = vand.u32 %v892, 4294901760
        %v1291 = vsub.f32 %v892, %v1290
        %v1292 = vand.u32 %v1291, 4294901760
        %v1293 = vsub.f32 %v1291, %v1292
        %v1294 = vand.u32 %v1293, 4294901760
        %1295 = vmatprep.subr.mxu0 %v1294
        %v1296 = vand.u32 %v891, 4294901760
        %v1297 = vsub.f32 %v891, %v1296
        %v1298 = vand.u32 %v1297, 4294901760
        %v1299 = vsub.f32 %v1297, %v1298
        %v1300 = vand.u32 %v1299, 4294901760
        %1301 = vmatpush1.msra.mxu0 %v1300
        %v1302 = vand.u32 %v896, 4294901760
        %v1303 = vsub.f32 %v896, %v1302
        %v1304 = vand.u32 %v1303, 4294901760
        %v1305 = vsub.f32 %v1303, %v1304
        %v1306 = vand.u32 %v1305, 4294901760
        %1307 = vmatprep.subr.mxu0 %v1306
        %v1308 = vand.u32 %v895, 4294901760
        %v1309 = vsub.f32 %v895, %v1308
        %v1310 = vand.u32 %v1309, 4294901760
        %v1311 = vsub.f32 %v1309, %v1310
        %v1312 = vand.u32 %v1311, 4294901760
        %1313 = vmatpush1.msra.mxu0 %v1312
        %v1314 = vand.u32 %v900, 4294901760
        %v1315 = vsub.f32 %v900, %v1314
        %v1316 = vand.u32 %v1315, 4294901760
        %v1317 = vsub.f32 %v1315, %v1316
        %v1318 = vand.u32 %v1317, 4294901760
        %1319 = vmatprep.subr.mxu0 %v1318
        %v1320 = vand.u32 %v899, 4294901760
        %v1321 = vsub.f32 %v899, %v1320
        %v1322 = vand.u32 %v1321, 4294901760
        %v1323 = vsub.f32 %v1321, %v1322
        %v1324 = vand.u32 %v1323, 4294901760
        %1325 = vmatpush1.msra.mxu0 %v1324
        %v1326 = vand.u32 %v904, 4294901760
        %v1327 = vsub.f32 %v904, %v1326
        %v1328 = vand.u32 %v1327, 4294901760
        %v1329 = vsub.f32 %v1327, %v1328
        %v1330 = vand.u32 %v1329, 4294901760
        %1331 = vmatprep.subr.mxu0 %v1330
        %v1332 = vand.u32 %v903, 4294901760
        %v1333 = vsub.f32 %v903, %v1332
        %v1334 = vand.u32 %v1333, 4294901760
        %v1335 = vsub.f32 %v1333, %v1334
        %v1336 = vand.u32 %v1335, 4294901760
        %1337 = vmatpush1.msra.mxu0 %v1336
        %v1338 = vand.u32 %v908, 4294901760
        %v1339 = vsub.f32 %v908, %v1338
        %v1340 = vand.u32 %v1339, 4294901760
        %v1341 = vsub.f32 %v1339, %v1340
        %v1342 = vand.u32 %v1341, 4294901760
        %1343 = vmatprep.subr.mxu0 %v1342
        %v1344 = vand.u32 %v907, 4294901760
        %v1345 = vsub.f32 %v907, %v1344
        %v1346 = vand.u32 %v1345, 4294901760
        %v1347 = vsub.f32 %v1345, %v1346
        %v1348 = vand.u32 %v1347, 4294901760
        %1349 = vmatpush1.msra.mxu0 %v1348
        %v1350 = vand.u32 %v912, 4294901760
        %v1351 = vsub.f32 %v912, %v1350
        %v1352 = vand.u32 %v1351, 4294901760
        %v1353 = vsub.f32 %v1351, %v1352
        %v1354 = vand.u32 %v1353, 4294901760
        %1355 = vmatprep.subr.mxu0 %v1354
        %v1356 = vand.u32 %v911, 4294901760
        %v1357 = vsub.f32 %v911, %v1356
        %v1358 = vand.u32 %v1357, 4294901760
        %v1359 = vsub.f32 %v1357, %v1358
        %v1360 = vand.u32 %v1359, 4294901760
        %1361 = vmatpush1.msra.mxu0 %v1360
        %v1362 = vand.u32 %v916, 4294901760
        %v1363 = vsub.f32 %v916, %v1362
        %v1364 = vand.u32 %v1363, 4294901760
        %v1365 = vsub.f32 %v1363, %v1364
        %v1366 = vand.u32 %v1365, 4294901760
        %1367 = vmatprep.subr.mxu0 %v1366
        %v1368 = vand.u32 %v915, 4294901760
        %v1369 = vsub.f32 %v915, %v1368
        %v1370 = vand.u32 %v1369, 4294901760
        %v1371 = vsub.f32 %v1369, %v1370
        %v1372 = vand.u32 %v1371, 4294901760
        %1373 = vmatpush1.msra.mxu0 %v1372
        %v1374 = vand.u32 %v920, 4294901760
        %v1375 = vsub.f32 %v920, %v1374
        %v1376 = vand.u32 %v1375, 4294901760
        %v1377 = vsub.f32 %v1375, %v1376
        %v1378 = vand.u32 %v1377, 4294901760
        %1379 = vmatprep.subr.mxu0 %v1378
        %v1380 = vand.u32 %v919, 4294901760
        %v1381 = vsub.f32 %v919, %v1380
        %v1382 = vand.u32 %v1381, 4294901760
        %v1383 = vsub.f32 %v1381, %v1382
        %v1384 = vand.u32 %v1383, 4294901760
        %1385 = vmatpush1.msra.mxu0 %v1384
        %v1386 = vand.u32 %v924, 4294901760
        %v1387 = vsub.f32 %v924, %v1386
        %v1388 = vand.u32 %v1387, 4294901760
        %v1389 = vsub.f32 %v1387, %v1388
        %v1390 = vand.u32 %v1389, 4294901760
        %1391 = vmatprep.subr.mxu0 %v1390
        %v1392 = vand.u32 %v923, 4294901760
        %v1393 = vsub.f32 %v923, %v1392
        %v1394 = vand.u32 %v1393, 4294901760
        %v1395 = vsub.f32 %v1393, %v1394
        %v1396 = vand.u32 %v1395, 4294901760
        %1397 = vmatpush1.msra.mxu0 %v1396
        %v1398 = vand.u32 %v928, 4294901760
        %v1399 = vsub.f32 %v928, %v1398
        %v1400 = vand.u32 %v1399, 4294901760
        %v1401 = vsub.f32 %v1399, %v1400
        %v1402 = vand.u32 %v1401, 4294901760
        %1403 = vmatprep.subr.mxu0 %v1402
        %v1404 = vand.u32 %v927, 4294901760
        %v1405 = vsub.f32 %v927, %v1404
        %v1406 = vand.u32 %v1405, 4294901760
        %v1407 = vsub.f32 %v1405, %v1406
        %v1408 = vand.u32 %v1407, 4294901760
        %1409 = vmatpush1.msra.mxu0 %v1408
        %v1410 = vand.u32 %v932, 4294901760
        %v1411 = vsub.f32 %v932, %v1410
        %v1412 = vand.u32 %v1411, 4294901760
        %v1413 = vsub.f32 %v1411, %v1412
        %v1414 = vand.u32 %v1413, 4294901760
        %1415 = vmatprep.subr.mxu0 %v1414
        %v1416 = vand.u32 %v931, 4294901760
        %v1417 = vsub.f32 %v931, %v1416
        %v1418 = vand.u32 %v1417, 4294901760
        %v1419 = vsub.f32 %v1417, %v1418
        %v1420 = vand.u32 %v1419, 4294901760
        %1421 = vmatpush1.msra.mxu0 %v1420
        %v1422 = vand.u32 %v936, 4294901760
        %v1423 = vsub.f32 %v936, %v1422
        %v1424 = vand.u32 %v1423, 4294901760
        %v1425 = vsub.f32 %v1423, %v1424
        %v1426 = vand.u32 %v1425, 4294901760
        %1427 = vmatprep.subr.mxu0 %v1426
        %v1428 = vand.u32 %v935, 4294901760
        %v1429 = vsub.f32 %v935, %v1428
        %v1430 = vand.u32 %v1429, 4294901760
        %v1431 = vsub.f32 %v1429, %v1430
        %v1432 = vand.u32 %v1431, 4294901760
        %1433 = vmatpush1.msra.mxu0 %v1432
        %v1434 = vand.u32 %v940, 4294901760
        %v1435 = vsub.f32 %v940, %v1434
        %v1436 = vand.u32 %v1435, 4294901760
        %v1437 = vsub.f32 %v1435, %v1436
        %v1438 = vand.u32 %v1437, 4294901760
        %1439 = vmatprep.subr.mxu0 %v1438
        %v1440 = vand.u32 %v939, 4294901760
        %v1441 = vsub.f32 %v939, %v1440
        %v1442 = vand.u32 %v1441, 4294901760
        %v1443 = vsub.f32 %v1441, %v1442
        %v1444 = vand.u32 %v1443, 4294901760
        %1445 = vmatpush1.msra.mxu0 %v1444
        %v1446 = vand.u32 %v944, 4294901760
        %v1447 = vsub.f32 %v944, %v1446
        %v1448 = vand.u32 %v1447, 4294901760
        %v1449 = vsub.f32 %v1447, %v1448
        %v1450 = vand.u32 %v1449, 4294901760
        %1451 = vmatprep.subr.mxu0 %v1450
        %v1452 = vand.u32 %v943, 4294901760
        %v1453 = vsub.f32 %v943, %v1452
        %v1454 = vand.u32 %v1453, 4294901760
        %v1455 = vsub.f32 %v1453, %v1454
        %v1456 = vand.u32 %v1455, 4294901760
        %1457 = vmatpush1.msra.mxu0 %v1456
        %v1458 = vand.u32 %v948, 4294901760
        %v1459 = vsub.f32 %v948, %v1458
        %v1460 = vand.u32 %v1459, 4294901760
        %v1461 = vsub.f32 %v1459, %v1460
        %v1462 = vand.u32 %v1461, 4294901760
        %1463 = vmatprep.subr.mxu0 %v1462
        %v1464 = vand.u32 %v947, 4294901760
        %v1465 = vsub.f32 %v947, %v1464
        %v1466 = vand.u32 %v1465, 4294901760
        %v1467 = vsub.f32 %v1465, %v1466
        %v1468 = vand.u32 %v1467, 4294901760
        %1469 = vmatpush1.msra.mxu0 %v1468
        %v1470 = vand.u32 %v952, 4294901760
        %v1471 = vsub.f32 %v952, %v1470
        %v1472 = vand.u32 %v1471, 4294901760
        %v1473 = vsub.f32 %v1471, %v1472
        %v1474 = vand.u32 %v1473, 4294901760
        %1475 = vmatprep.subr.mxu0 %v1474
        %v1476 = vand.u32 %v951, 4294901760
        %v1477 = vsub.f32 %v951, %v1476
        %v1478 = vand.u32 %v1477, 4294901760
        %v1479 = vsub.f32 %v1477, %v1478
        %v1480 = vand.u32 %v1479, 4294901760
        %1481 = vmatpush1.msra.mxu0 %v1480
        %v1482 = vand.u32 %v956, 4294901760
        %v1483 = vsub.f32 %v956, %v1482
        %v1484 = vand.u32 %v1483, 4294901760
        %v1485 = vsub.f32 %v1483, %v1484
        %v1486 = vand.u32 %v1485, 4294901760
        %1487 = vmatprep.subr.mxu0 %v1486
        %v1488 = vand.u32 %v955, 4294901760
        %v1489 = vsub.f32 %v955, %v1488
        %v1490 = vand.u32 %v1489, 4294901760
        %v1491 = vsub.f32 %v1489, %v1490
        %v1492 = vand.u32 %v1491, 4294901760
        %1493 = vmatpush1.msra.mxu0 %v1492
        %v1494 = vand.u32 %v960, 4294901760
        %v1495 = vsub.f32 %v960, %v1494
        %v1496 = vand.u32 %v1495, 4294901760
        %v1497 = vsub.f32 %v1495, %v1496
        %v1498 = vand.u32 %v1497, 4294901760
        %1499 = vmatprep.subr.mxu0 %v1498
        %v1500 = vand.u32 %v959, 4294901760
        %v1501 = vsub.f32 %v959, %v1500
        %v1502 = vand.u32 %v1501, 4294901760
        %v1503 = vsub.f32 %v1501, %v1502
        %v1504 = vand.u32 %v1503, 4294901760
        %1505 = vmatpush1.msra.mxu0 %v1504
        %v1506 = vand.u32 %v964, 4294901760
        %v1507 = vsub.f32 %v964, %v1506
        %v1508 = vand.u32 %v1507, 4294901760
        %v1509 = vsub.f32 %v1507, %v1508
        %v1510 = vand.u32 %v1509, 4294901760
        %1511 = vmatprep.subr.mxu0 %v1510
        %v1512 = vand.u32 %v963, 4294901760
        %v1513 = vsub.f32 %v963, %v1512
        %v1514 = vand.u32 %v1513, 4294901760
        %v1515 = vsub.f32 %v1513, %v1514
        %v1516 = vand.u32 %v1515, 4294901760
        %1517 = vmatpush1.msra.mxu0 %v1516
        %v1518 = vand.u32 %v968, 4294901760
        %v1519 = vsub.f32 %v968, %v1518
        %v1520 = vand.u32 %v1519, 4294901760
        %v1521 = vsub.f32 %v1519, %v1520
        %v1522 = vand.u32 %v1521, 4294901760
        %1523 = vmatprep.subr.mxu0 %v1522
        %v1524 = vand.u32 %v967, 4294901760
        %v1525 = vsub.f32 %v967, %v1524
        %v1526 = vand.u32 %v1525, 4294901760
        %v1527 = vsub.f32 %v1525, %v1526
        %v1528 = vand.u32 %v1527, 4294901760
        %1529 = vmatpush1.msra.mxu0 %v1528
        %v1530 = vand.u32 %v972, 4294901760
        %v1531 = vsub.f32 %v972, %v1530
        %v1532 = vand.u32 %v1531, 4294901760
        %v1533 = vsub.f32 %v1531, %v1532
        %v1534 = vand.u32 %v1533, 4294901760
        %1535 = vmatprep.subr.mxu0 %v1534
        %v1536 = vand.u32 %v971, 4294901760
        %v1537 = vsub.f32 %v971, %v1536
        %v1538 = vand.u32 %v1537, 4294901760
        %v1539 = vsub.f32 %v1537, %v1538
        %v1540 = vand.u32 %v1539, 4294901760
        %1541 = vmatpush1.msra.mxu0 %v1540
        %v1542 = vand.u32 %v844, 4294901760
        %1543 = vmatprep.mubr.f32.mxu0 %v1542
        %v1544 = vand.u32 %v843, 4294901760
        %1545 = vmatmul.mubr.f32.gmra.mrb[0].mxu0 %v1544
        %v1546 = vpop.f32.mrb[0].mxu0
        %v1547 = vadd.f32 %v1138, %v1546
        %v1548 = vpop.f32.mrb[0].mxu0
        %v1549 = vadd.f32 %v1140, %v1548
        %v1550 = vand.u32 %v846, 4294901760
        %1551 = vmatprep.mubr.f32.mxu0 %v1550
        %v1552 = vand.u32 %v845, 4294901760
        %1553 = vmatmul.mubr.f32.gmra.mrb[0].mxu0 %v1552
        %v1554 = vpop.f32.mrb[0].mxu0
        %v1555 = vadd.f32 %v1154, %v1554
        %v1556 = vpop.f32.mrb[0].mxu0
        %v1557 = vadd.f32 %v1156, %v1556
        %1558 = vdwg.mxu0
        %v1559 = vand.u32 %v848, 4294901760
        %v1560 = vsub.f32 %v848, %v1559
        %1561 = vmatprep.subr.mxu0 %v1560
        %v1562 = vand.u32 %v847, 4294901760
        %v1563 = vsub.f32 %v847, %v1562
        %1564 = vmatpush1.msra.mxu0 %v1563
        %v1565 = vand.u32 %v852, 4294901760
        %v1566 = vsub.f32 %v852, %v1565
        %1567 = vmatprep.subr.mxu0 %v1566
        %v1568 = vand.u32 %v851, 4294901760
        %v1569 = vsub.f32 %v851, %v1568
        %1570 = vmatpush1.msra.mxu0 %v1569
        %v1571 = vand.u32 %v856, 4294901760
        %v1572 = vsub.f32 %v856, %v1571
        %1573 = vmatprep.subr.mxu0 %v1572
        %v1574 = vand.u32 %v855, 4294901760
        %v1575 = vsub.f32 %v855, %v1574
        %1576 = vmatpush1.msra.mxu0 %v1575
        %v1577 = vand.u32 %v860, 4294901760
        %v1578 = vsub.f32 %v860, %v1577
        %1579 = vmatprep.subr.mxu0 %v1578
        %v1580 = vand.u32 %v859, 4294901760
        %v1581 = vsub.f32 %v859, %v1580
        %1582 = vmatpush1.msra.mxu0 %v1581
        %v1583 = vand.u32 %v864, 4294901760
        %v1584 = vsub.f32 %v864, %v1583
        %1585 = vmatprep.subr.mxu0 %v1584
        %v1586 = vand.u32 %v863, 4294901760
        %v1587 = vsub.f32 %v863, %v1586
        %1588 = vmatpush1.msra.mxu0 %v1587
        %v1589 = vand.u32 %v868, 4294901760
        %v1590 = vsub.f32 %v868, %v1589
        %1591 = vmatprep.subr.mxu0 %v1590
        %v1592 = vand.u32 %v867, 4294901760
        %v1593 = vsub.f32 %v867, %v1592
        %1594 = vmatpush1.msra.mxu0 %v1593
        %v1595 = vand.u32 %v872, 4294901760
        %v1596 = vsub.f32 %v872, %v1595
        %1597 = vmatprep.subr.mxu0 %v1596
        %v1598 = vand.u32 %v871, 4294901760
        %v1599 = vsub.f32 %v871, %v1598
        %1600 = vmatpush1.msra.mxu0 %v1599
        %v1601 = vand.u32 %v876, 4294901760
        %v1602 = vsub.f32 %v876, %v1601
        %1603 = vmatprep.subr.mxu0 %v1602
        %v1604 = vand.u32 %v875, 4294901760
        %v1605 = vsub.f32 %v875, %v1604
        %1606 = vmatpush1.msra.mxu0 %v1605
        %v1607 = vand.u32 %v880, 4294901760
        %v1608 = vsub.f32 %v880, %v1607
        %1609 = vmatprep.subr.mxu0 %v1608
        %v1610 = vand.u32 %v879, 4294901760
        %v1611 = vsub.f32 %v879, %v1610
        %1612 = vmatpush1.msra.mxu0 %v1611
        %v1613 = vand.u32 %v884, 4294901760
        %v1614 = vsub.f32 %v884, %v1613
        %1615 = vmatprep.subr.mxu0 %v1614
        %v1616 = vand.u32 %v883, 4294901760
        %v1617 = vsub.f32 %v883, %v1616
        %1618 = vmatpush1.msra.mxu0 %v1617
        %v1619 = vand.u32 %v888, 4294901760
        %v1620 = vsub.f32 %v888, %v1619
        %1621 = vmatprep.subr.mxu0 %v1620
        %v1622 = vand.u32 %v887, 4294901760
        %v1623 = vsub.f32 %v887, %v1622
        %1624 = vmatpush1.msra.mxu0 %v1623
        %v1625 = vand.u32 %v892, 4294901760
        %v1626 = vsub.f32 %v892, %v1625
        %1627 = vmatprep.subr.mxu0 %v1626
        %v1628 = vand.u32 %v891, 4294901760
        %v1629 = vsub.f32 %v891, %v1628
        %1630 = vmatpush1.msra.mxu0 %v1629
        %v1631 = vand.u32 %v896, 4294901760
        %v1632 = vsub.f32 %v896, %v1631
        %1633 = vmatprep.subr.mxu0 %v1632
        %v1634 = vand.u32 %v895, 4294901760
        %v1635 = vsub.f32 %v895, %v1634
        %1636 = vmatpush1.msra.mxu0 %v1635
        %v1637 = vand.u32 %v900, 4294901760
        %v1638 = vsub.f32 %v900, %v1637
        %1639 = vmatprep.subr.mxu0 %v1638
        %v1640 = vand.u32 %v899, 4294901760
        %v1641 = vsub.f32 %v899, %v1640
        %1642 = vmatpush1.msra.mxu0 %v1641
        %v1643 = vand.u32 %v904, 4294901760
        %v1644 = vsub.f32 %v904, %v1643
        %1645 = vmatprep.subr.mxu0 %v1644
        %v1646 = vand.u32 %v903, 4294901760
        %v1647 = vsub.f32 %v903, %v1646
        %1648 = vmatpush1.msra.mxu0 %v1647
        %v1649 = vand.u32 %v908, 4294901760
        %v1650 = vsub.f32 %v908, %v1649
        %1651 = vmatprep.subr.mxu0 %v1650
        %v1652 = vand.u32 %v907, 4294901760
        %v1653 = vsub.f32 %v907, %v1652
        %1654 = vmatpush1.msra.mxu0 %v1653
        %v1655 = vand.u32 %v912, 4294901760
        %v1656 = vsub.f32 %v912, %v1655
        %1657 = vmatprep.subr.mxu0 %v1656
        %v1658 = vand.u32 %v911, 4294901760
        %v1659 = vsub.f32 %v911, %v1658
        %1660 = vmatpush1.msra.mxu0 %v1659
        %v1661 = vand.u32 %v916, 4294901760
        %v1662 = vsub.f32 %v916, %v1661
        %1663 = vmatprep.subr.mxu0 %v1662
        %v1664 = vand.u32 %v915, 4294901760
        %v1665 = vsub.f32 %v915, %v1664
        %1666 = vmatpush1.msra.mxu0 %v1665
        %v1667 = vand.u32 %v920, 4294901760
        %v1668 = vsub.f32 %v920, %v1667
        %1669 = vmatprep.subr.mxu0 %v1668
        %v1670 = vand.u32 %v919, 4294901760
        %v1671 = vsub.f32 %v919, %v1670
        %1672 = vmatpush1.msra.mxu0 %v1671
        %v1673 = vand.u32 %v924, 4294901760
        %v1674 = vsub.f32 %v924, %v1673
        %1675 = vmatprep.subr.mxu0 %v1674
        %v1676 = vand.u32 %v923, 4294901760
        %v1677 = vsub.f32 %v923, %v1676
        %1678 = vmatpush1.msra.mxu0 %v1677
        %v1679 = vand.u32 %v928, 4294901760
        %v1680 = vsub.f32 %v928, %v1679
        %1681 = vmatprep.subr.mxu0 %v1680
        %v1682 = vand.u32 %v927, 4294901760
        %v1683 = vsub.f32 %v927, %v1682
        %1684 = vmatpush1.msra.mxu0 %v1683
        %v1685 = vand.u32 %v932, 4294901760
        %v1686 = vsub.f32 %v932, %v1685
        %1687 = vmatprep.subr.mxu0 %v1686
        %v1688 = vand.u32 %v931, 4294901760
        %v1689 = vsub.f32 %v931, %v1688
        %1690 = vmatpush1.msra.mxu0 %v1689
        %v1691 = vand.u32 %v936, 4294901760
        %v1692 = vsub.f32 %v936, %v1691
        %1693 = vmatprep.subr.mxu0 %v1692
        %v1694 = vand.u32 %v935, 4294901760
        %v1695 = vsub.f32 %v935, %v1694
        %1696 = vmatpush1.msra.mxu0 %v1695
        %v1697 = vand.u32 %v940, 4294901760
        %v1698 = vsub.f32 %v940, %v1697
        %1699 = vmatprep.subr.mxu0 %v1698
        %v1700 = vand.u32 %v939, 4294901760
        %v1701 = vsub.f32 %v939, %v1700
        %1702 = vmatpush1.msra.mxu0 %v1701
        %v1703 = vand.u32 %v944, 4294901760
        %v1704 = vsub.f32 %v944, %v1703
        %1705 = vmatprep.subr.mxu0 %v1704
        %v1706 = vand.u32 %v943, 4294901760
        %v1707 = vsub.f32 %v943, %v1706
        %1708 = vmatpush1.msra.mxu0 %v1707
        %v1709 = vand.u32 %v948, 4294901760
        %v1710 = vsub.f32 %v948, %v1709
        %1711 = vmatprep.subr.mxu0 %v1710
        %v1712 = vand.u32 %v947, 4294901760
        %v1713 = vsub.f32 %v947, %v1712
        %1714 = vmatpush1.msra.mxu0 %v1713
        %v1715 = vand.u32 %v952, 4294901760
        %v1716 = vsub.f32 %v952, %v1715
        %1717 = vmatprep.subr.mxu0 %v1716
        %v1718 = vand.u32 %v951, 4294901760
        %v1719 = vsub.f32 %v951, %v1718
        %1720 = vmatpush1.msra.mxu0 %v1719
        %v1721 = vand.u32 %v956, 4294901760
        %v1722 = vsub.f32 %v956, %v1721
        %1723 = vmatprep.subr.mxu0 %v1722
        %v1724 = vand.u32 %v955, 4294901760
        %v1725 = vsub.f32 %v955, %v1724
        %1726 = vmatpush1.msra.mxu0 %v1725
        %v1727 = vand.u32 %v960, 4294901760
        %v1728 = vsub.f32 %v960, %v1727
        %1729 = vmatprep.subr.mxu0 %v1728
        %v1730 = vand.u32 %v959, 4294901760
        %v1731 = vsub.f32 %v959, %v1730
        %1732 = vmatpush1.msra.mxu0 %v1731
        %v1733 = vand.u32 %v964, 4294901760
        %v1734 = vsub.f32 %v964, %v1733
        %1735 = vmatprep.subr.mxu0 %v1734
        %v1736 = vand.u32 %v963, 4294901760
        %v1737 = vsub.f32 %v963, %v1736
        %1738 = vmatpush1.msra.mxu0 %v1737
        %v1739 = vand.u32 %v968, 4294901760
        %v1740 = vsub.f32 %v968, %v1739
        %1741 = vmatprep.subr.mxu0 %v1740
        %v1742 = vand.u32 %v967, 4294901760
        %v1743 = vsub.f32 %v967, %v1742
        %1744 = vmatpush1.msra.mxu0 %v1743
        %v1745 = vand.u32 %v972, 4294901760
        %v1746 = vsub.f32 %v972, %v1745
        %1747 = vmatprep.subr.mxu0 %v1746
        %v1748 = vand.u32 %v971, 4294901760
        %v1749 = vsub.f32 %v971, %v1748
        %1750 = vmatpush1.msra.mxu0 %v1749
        %v1751 = vand.u32 %v844, 4294901760
        %v1752 = vsub.f32 %v844, %v1751
        %1753 = vmatprep.mubr.f32.mxu0 %v1752
        %v1754 = vand.u32 %v843, 4294901760
        %v1755 = vsub.f32 %v843, %v1754
        %1756 = vmatmul.mubr.f32.gmra.mrb[0].mxu0 %v1755
        %v1757 = vpop.f32.mrb[0].mxu0
        %v1758 = vadd.f32 %v1547, %v1757
        %v1759 = vpop.f32.mrb[0].mxu0
        %v1760 = vadd.f32 %v1549, %v1759
        %v1761 = vand.u32 %v846, 4294901760
        %v1762 = vsub.f32 %v846, %v1761
        %1763 = vmatprep.mubr.f32.mxu0 %v1762
        %v1764 = vand.u32 %v845, 4294901760
        %v1765 = vsub.f32 %v845, %v1764
        %1766 = vmatmul.mubr.f32.gmra.mrb[0].mxu0 %v1765
        %v1767 = vpop.f32.mrb[0].mxu0
        %v1768 = vadd.f32 %v1555, %v1767
        %v1769 = vpop.f32.mrb[0].mxu0
        %v1770 = vadd.f32 %v1557, %v1769
        %1771 = vdwg.mxu0
        %v1772 = vand.u32 %v848, 4294901760
        %1773 = vmatprep.subr.mxu0 %v1772
        %v1774 = vand.u32 %v847, 4294901760
        %1775 = vmatpush1.msra.mxu0 %v1774
        %v1776 = vand.u32 %v852, 4294901760
        %1777 = vmatprep.subr.mxu0 %v1776
        %v1778 = vand.u32 %v851, 4294901760
        %1779 = vmatpush1.msra.mxu0 %v1778
        %v1780 = vand.u32 %v856, 4294901760
        %1781 = vmatprep.subr.mxu0 %v1780
        %v1782 = vand.u32 %v855, 4294901760
        %1783 = vmatpush1.msra.mxu0 %v1782
        %v1784 = vand.u32 %v860, 4294901760
        %1785 = vmatprep.subr.mxu0 %v1784
        %v1786 = vand.u32 %v859, 4294901760
        %1787 = vmatpush1.msra.mxu0 %v1786
        %v1788 = vand.u32 %v864, 4294901760
        %1789 = vmatprep.subr.mxu0 %v1788
        %v1790 = vand.u32 %v863, 4294901760
        %1791 = vmatpush1.msra.mxu0 %v1790
        %v1792 = vand.u32 %v868, 4294901760
        %1793 = vmatprep.subr.mxu0 %v1792
        %v1794 = vand.u32 %v867, 4294901760
        %1795 = vmatpush1.msra.mxu0 %v1794
        %v1796 = vand.u32 %v872, 4294901760
        %1797 = vmatprep.subr.mxu0 %v1796
        %v1798 = vand.u32 %v871, 4294901760
        %1799 = vmatpush1.msra.mxu0 %v1798
        %v1800 = vand.u32 %v876, 4294901760
        %1801 = vmatprep.subr.mxu0 %v1800
        %v1802 = vand.u32 %v875, 4294901760
        %1803 = vmatpush1.msra.mxu0 %v1802
        %v1804 = vand.u32 %v880, 4294901760
        %1805 = vmatprep.subr.mxu0 %v1804
        %v1806 = vand.u32 %v879, 4294901760
        %1807 = vmatpush1.msra.mxu0 %v1806
        %v1808 = vand.u32 %v884, 4294901760
        %1809 = vmatprep.subr.mxu0 %v1808
        %v1810 = vand.u32 %v883, 4294901760
        %1811 = vmatpush1.msra.mxu0 %v1810
        %v1812 = vand.u32 %v888, 4294901760
        %1813 = vmatprep.subr.mxu0 %v1812
        %v1814 = vand.u32 %v887, 4294901760
        %1815 = vmatpush1.msra.mxu0 %v1814
        %v1816 = vand.u32 %v892, 4294901760
        %1817 = vmatprep.subr.mxu0 %v1816
        %v1818 = vand.u32 %v891, 4294901760
        %1819 = vmatpush1.msra.mxu0 %v1818
        %v1820 = vand.u32 %v896, 4294901760
        %1821 = vmatprep.subr.mxu0 %v1820
        %v1822 = vand.u32 %v895, 4294901760
        %1823 = vmatpush1.msra.mxu0 %v1822
        %v1824 = vand.u32 %v900, 4294901760
        %1825 = vmatprep.subr.mxu0 %v1824
        %v1826 = vand.u32 %v899, 4294901760
        %1827 = vmatpush1.msra.mxu0 %v1826
        %v1828 = vand.u32 %v904, 4294901760
        %1829 = vmatprep.subr.mxu0 %v1828
        %v1830 = vand.u32 %v903, 4294901760
        %1831 = vmatpush1.msra.mxu0 %v1830
        %v1832 = vand.u32 %v908, 4294901760
        %1833 = vmatprep.subr.mxu0 %v1832
        %v1834 = vand.u32 %v907, 4294901760
        %1835 = vmatpush1.msra.mxu0 %v1834
        %v1836 = vand.u32 %v912, 4294901760
        %1837 = vmatprep.subr.mxu0 %v1836
        %v1838 = vand.u32 %v911, 4294901760
        %1839 = vmatpush1.msra.mxu0 %v1838
        %v1840 = vand.u32 %v916, 4294901760
        %1841 = vmatprep.subr.mxu0 %v1840
        %v1842 = vand.u32 %v915, 4294901760
        %1843 = vmatpush1.msra.mxu0 %v1842
        %v1844 = vand.u32 %v920, 4294901760
        %1845 = vmatprep.subr.mxu0 %v1844
        %v1846 = vand.u32 %v919, 4294901760
        %1847 = vmatpush1.msra.mxu0 %v1846
        %v1848 = vand.u32 %v924, 4294901760
        %1849 = vmatprep.subr.mxu0 %v1848
        %v1850 = vand.u32 %v923, 4294901760
        %1851 = vmatpush1.msra.mxu0 %v1850
        %v1852 = vand.u32 %v928, 4294901760
        %1853 = vmatprep.subr.mxu0 %v1852
        %v1854 = vand.u32 %v927, 4294901760
        %1855 = vmatpush1.msra.mxu0 %v1854
        %v1856 = vand.u32 %v932, 4294901760
        %1857 = vmatprep.subr.mxu0 %v1856
        %v1858 = vand.u32 %v931, 4294901760
        %1859 = vmatpush1.msra.mxu0 %v1858
        %v1860 = vand.u32 %v936, 4294901760
        %1861 = vmatprep.subr.mxu0 %v1860
        %v1862 = vand.u32 %v935, 4294901760
        %1863 = vmatpush1.msra.mxu0 %v1862
        %v1864 = vand.u32 %v940, 4294901760
        %1865 = vmatprep.subr.mxu0 %v1864
        %v1866 = vand.u32 %v939, 4294901760
        %1867 = vmatpush1.msra.mxu0 %v1866
        %v1868 = vand.u32 %v944, 4294901760
        %1869 = vmatprep.subr.mxu0 %v1868
        %v1870 = vand.u32 %v943, 4294901760
        %1871 = vmatpush1.msra.mxu0 %v1870
        %v1872 = vand.u32 %v948, 4294901760
        %1873 = vmatprep.subr.mxu0 %v1872
        %v1874 = vand.u32 %v947, 4294901760
        %1875 = vmatpush1.msra.mxu0 %v1874
        %v1876 = vand.u32 %v952, 4294901760
        %1877 = vmatprep.subr.mxu0 %v1876
        %v1878 = vand.u32 %v951, 4294901760
        %1879 = vmatpush1.msra.mxu0 %v1878
        %v1880 = vand.u32 %v956, 4294901760
        %1881 = vmatprep.subr.mxu0 %v1880
        %v1882 = vand.u32 %v955, 4294901760
        %1883 = vmatpush1.msra.mxu0 %v1882
        %v1884 = vand.u32 %v960, 4294901760
        %1885 = vmatprep.subr.mxu0 %v1884
        %v1886 = vand.u32 %v959, 4294901760
        %1887 = vmatpush1.msra.mxu0 %v1886
        %v1888 = vand.u32 %v964, 4294901760
        %1889 = vmatprep.subr.mxu0 %v1888
        %v1890 = vand.u32 %v963, 4294901760
        %1891 = vmatpush1.msra.mxu0 %v1890
        %v1892 = vand.u32 %v968, 4294901760
        %1893 = vmatprep.subr.mxu0 %v1892
        %v1894 = vand.u32 %v967, 4294901760
        %1895 = vmatpush1.msra.mxu0 %v1894
        %v1896 = vand.u32 %v972, 4294901760
        %1897 = vmatprep.subr.mxu0 %v1896
        %v1898 = vand.u32 %v971, 4294901760
        %1899 = vmatpush1.msra.mxu0 %v1898
        %v1900 = vand.u32 %v844, 4294901760
        %v1901 = vsub.f32 %v844, %v1900
        %v1902 = vand.u32 %v1901, 4294901760
        %1903 = vmatprep.mubr.f32.mxu0 %v1902
        %v1904 = vand.u32 %v843, 4294901760
        %v1905 = vsub.f32 %v843, %v1904
        %v1906 = vand.u32 %v1905, 4294901760
        %1907 = vmatmul.mubr.f32.gmra.mrb[0].mxu0 %v1906
        %v1908 = vpop.f32.mrb[0].mxu0
        %v1909 = vadd.f32 %v1758, %v1908
        %v1910 = vpop.f32.mrb[0].mxu0
        %v1911 = vadd.f32 %v1760, %v1910
        %v1912 = vand.u32 %v846, 4294901760
        %v1913 = vsub.f32 %v846, %v1912
        %v1914 = vand.u32 %v1913, 4294901760
        %1915 = vmatprep.mubr.f32.mxu0 %v1914
        %v1916 = vand.u32 %v845, 4294901760
        %v1917 = vsub.f32 %v845, %v1916
        %v1918 = vand.u32 %v1917, 4294901760
        %1919 = vmatmul.mubr.f32.gmra.mrb[0].mxu0 %v1918
        %v1920 = vpop.f32.mrb[0].mxu0
        %v1921 = vadd.f32 %v1768, %v1920
        %v1922 = vpop.f32.mrb[0].mxu0
        %v1923 = vadd.f32 %v1770, %v1922
        %1924 = vdwg.mxu0
        %v1925 = vand.u32 %v848, 4294901760
        %v1926 = vsub.f32 %v848, %v1925
        %v1927 = vand.u32 %v1926, 4294901760
        %1928 = vmatprep.subr.mxu0 %v1927
        %v1929 = vand.u32 %v847, 4294901760
        %v1930 = vsub.f32 %v847, %v1929
        %v1931 = vand.u32 %v1930, 4294901760
        %1932 = vmatpush1.msra.mxu0 %v1931
        %v1933 = vand.u32 %v852, 4294901760
        %v1934 = vsub.f32 %v852, %v1933
        %v1935 = vand.u32 %v1934, 4294901760
        %1936 = vmatprep.subr.mxu0 %v1935
        %v1937 = vand.u32 %v851, 4294901760
        %v1938 = vsub.f32 %v851, %v1937
        %v1939 = vand.u32 %v1938, 4294901760
        %1940 = vmatpush1.msra.mxu0 %v1939
        %v1941 = vand.u32 %v856, 4294901760
        %v1942 = vsub.f32 %v856, %v1941
        %v1943 = vand.u32 %v1942, 4294901760
        %1944 = vmatprep.subr.mxu0 %v1943
        %v1945 = vand.u32 %v855, 4294901760
        %v1946 = vsub.f32 %v855, %v1945
        %v1947 = vand.u32 %v1946, 4294901760
        %1948 = vmatpush1.msra.mxu0 %v1947
        %v1949 = vand.u32 %v860, 4294901760
        %v1950 = vsub.f32 %v860, %v1949
        %v1951 = vand.u32 %v1950, 4294901760
        %1952 = vmatprep.subr.mxu0 %v1951
        %v1953 = vand.u32 %v859, 4294901760
        %v1954 = vsub.f32 %v859, %v1953
        %v1955 = vand.u32 %v1954, 4294901760
        %1956 = vmatpush1.msra.mxu0 %v1955
        %v1957 = vand.u32 %v864, 4294901760
        %v1958 = vsub.f32 %v864, %v1957
        %v1959 = vand.u32 %v1958, 4294901760
        %1960 = vmatprep.subr.mxu0 %v1959
        %v1961 = vand.u32 %v863, 4294901760
        %v1962 = vsub.f32 %v863, %v1961
        %v1963 = vand.u32 %v1962, 4294901760
        %1964 = vmatpush1.msra.mxu0 %v1963
        %v1965 = vand.u32 %v868, 4294901760
        %v1966 = vsub.f32 %v868, %v1965
        %v1967 = vand.u32 %v1966, 4294901760
        %1968 = vmatprep.subr.mxu0 %v1967
        %v1969 = vand.u32 %v867, 4294901760
        %v1970 = vsub.f32 %v867, %v1969
        %v1971 = vand.u32 %v1970, 4294901760
        %1972 = vmatpush1.msra.mxu0 %v1971
        %v1973 = vand.u32 %v872, 4294901760
        %v1974 = vsub.f32 %v872, %v1973
        %v1975 = vand.u32 %v1974, 4294901760
        %1976 = vmatprep.subr.mxu0 %v1975
        %v1977 = vand.u32 %v871, 4294901760
        %v1978 = vsub.f32 %v871, %v1977
        %v1979 = vand.u32 %v1978, 4294901760
        %1980 = vmatpush1.msra.mxu0 %v1979
        %v1981 = vand.u32 %v876, 4294901760
        %v1982 = vsub.f32 %v876, %v1981
        %v1983 = vand.u32 %v1982, 4294901760
        %1984 = vmatprep.subr.mxu0 %v1983
        %v1985 = vand.u32 %v875, 4294901760
        %v1986 = vsub.f32 %v875, %v1985
        %v1987 = vand.u32 %v1986, 4294901760
        %1988 = vmatpush1.msra.mxu0 %v1987
        %v1989 = vand.u32 %v880, 4294901760
        %v1990 = vsub.f32 %v880, %v1989
        %v1991 = vand.u32 %v1990, 4294901760
        %1992 = vmatprep.subr.mxu0 %v1991
        %v1993 = vand.u32 %v879, 4294901760
        %v1994 = vsub.f32 %v879, %v1993
        %v1995 = vand.u32 %v1994, 4294901760
        %1996 = vmatpush1.msra.mxu0 %v1995
        %v1997 = vand.u32 %v884, 4294901760
        %v1998 = vsub.f32 %v884, %v1997
        %v1999 = vand.u32 %v1998, 4294901760
        %2000 = vmatprep.subr.mxu0 %v1999
        %v2001 = vand.u32 %v883, 4294901760
        %v2002 = vsub.f32 %v883, %v2001
        %v2003 = vand.u32 %v2002, 4294901760
        %2004 = vmatpush1.msra.mxu0 %v2003
        %v2005 = vand.u32 %v888, 4294901760
        %v2006 = vsub.f32 %v888, %v2005
        %v2007 = vand.u32 %v2006, 4294901760
        %2008 = vmatprep.subr.mxu0 %v2007
        %v2009 = vand.u32 %v887, 4294901760
        %v2010 = vsub.f32 %v887, %v2009
        %v2011 = vand.u32 %v2010, 4294901760
        %2012 = vmatpush1.msra.mxu0 %v2011
        %v2013 = vand.u32 %v892, 4294901760
        %v2014 = vsub.f32 %v892, %v2013
        %v2015 = vand.u32 %v2014, 4294901760
        %2016 = vmatprep.subr.mxu0 %v2015
        %v2017 = vand.u32 %v891, 4294901760
        %v2018 = vsub.f32 %v891, %v2017
        %v2019 = vand.u32 %v2018, 4294901760
        %2020 = vmatpush1.msra.mxu0 %v2019
        %v2021 = vand.u32 %v896, 4294901760
        %v2022 = vsub.f32 %v896, %v2021
        %v2023 = vand.u32 %v2022, 4294901760
        %2024 = vmatprep.subr.mxu0 %v2023
        %v2025 = vand.u32 %v895, 4294901760
        %v2026 = vsub.f32 %v895, %v2025
        %v2027 = vand.u32 %v2026, 4294901760
        %2028 = vmatpush1.msra.mxu0 %v2027
        %v2029 = vand.u32 %v900, 4294901760
        %v2030 = vsub.f32 %v900, %v2029
        %v2031 = vand.u32 %v2030, 4294901760
        %2032 = vmatprep.subr.mxu0 %v2031
        %v2033 = vand.u32 %v899, 4294901760
        %v2034 = vsub.f32 %v899, %v2033
        %v2035 = vand.u32 %v2034, 4294901760
        %2036 = vmatpush1.msra.mxu0 %v2035
        %v2037 = vand.u32 %v904, 4294901760
        %v2038 = vsub.f32 %v904, %v2037
        %v2039 = vand.u32 %v2038, 4294901760
        %2040 = vmatprep.subr.mxu0 %v2039
        %v2041 = vand.u32 %v903, 4294901760
        %v2042 = vsub.f32 %v903, %v2041
        %v2043 = vand.u32 %v2042, 4294901760
        %2044 = vmatpush1.msra.mxu0 %v2043
        %v2045 = vand.u32 %v908, 4294901760
        %v2046 = vsub.f32 %v908, %v2045
        %v2047 = vand.u32 %v2046, 4294901760
        %2048 = vmatprep.subr.mxu0 %v2047
        %v2049 = vand.u32 %v907, 4294901760
        %v2050 = vsub.f32 %v907, %v2049
        %v2051 = vand.u32 %v2050, 4294901760
        %2052 = vmatpush1.msra.mxu0 %v2051
        %v2053 = vand.u32 %v912, 4294901760
        %v2054 = vsub.f32 %v912, %v2053
        %v2055 = vand.u32 %v2054, 4294901760
        %2056 = vmatprep.subr.mxu0 %v2055
        %v2057 = vand.u32 %v911, 4294901760
        %v2058 = vsub.f32 %v911, %v2057
        %v2059 = vand.u32 %v2058, 4294901760
        %2060 = vmatpush1.msra.mxu0 %v2059
        %v2061 = vand.u32 %v916, 4294901760
        %v2062 = vsub.f32 %v916, %v2061
        %v2063 = vand.u32 %v2062, 4294901760
        %2064 = vmatprep.subr.mxu0 %v2063
        %v2065 = vand.u32 %v915, 4294901760
        %v2066 = vsub.f32 %v915, %v2065
        %v2067 = vand.u32 %v2066, 4294901760
        %2068 = vmatpush1.msra.mxu0 %v2067
        %v2069 = vand.u32 %v920, 4294901760
        %v2070 = vsub.f32 %v920, %v2069
        %v2071 = vand.u32 %v2070, 4294901760
        %2072 = vmatprep.subr.mxu0 %v2071
        %v2073 = vand.u32 %v919, 4294901760
        %v2074 = vsub.f32 %v919, %v2073
        %v2075 = vand.u32 %v2074, 4294901760
        %2076 = vmatpush1.msra.mxu0 %v2075
        %v2077 = vand.u32 %v924, 4294901760
        %v2078 = vsub.f32 %v924, %v2077
        %v2079 = vand.u32 %v2078, 4294901760
        %2080 = vmatprep.subr.mxu0 %v2079
        %v2081 = vand.u32 %v923, 4294901760
        %v2082 = vsub.f32 %v923, %v2081
        %v2083 = vand.u32 %v2082, 4294901760
        %2084 = vmatpush1.msra.mxu0 %v2083
        %v2085 = vand.u32 %v928, 4294901760
        %v2086 = vsub.f32 %v928, %v2085
        %v2087 = vand.u32 %v2086, 4294901760
        %2088 = vmatprep.subr.mxu0 %v2087
        %v2089 = vand.u32 %v927, 4294901760
        %v2090 = vsub.f32 %v927, %v2089
        %v2091 = vand.u32 %v2090, 4294901760
        %2092 = vmatpush1.msra.mxu0 %v2091
        %v2093 = vand.u32 %v932, 4294901760
        %v2094 = vsub.f32 %v932, %v2093
        %v2095 = vand.u32 %v2094, 4294901760
        %2096 = vmatprep.subr.mxu0 %v2095
        %v2097 = vand.u32 %v931, 4294901760
        %v2098 = vsub.f32 %v931, %v2097
        %v2099 = vand.u32 %v2098, 4294901760
        %2100 = vmatpush1.msra.mxu0 %v2099
        %v2101 = vand.u32 %v936, 4294901760
        %v2102 = vsub.f32 %v936, %v2101
        %v2103 = vand.u32 %v2102, 4294901760
        %2104 = vmatprep.subr.mxu0 %v2103
        %v2105 = vand.u32 %v935, 4294901760
        %v2106 = vsub.f32 %v935, %v2105
        %v2107 = vand.u32 %v2106, 4294901760
        %2108 = vmatpush1.msra.mxu0 %v2107
        %v2109 = vand.u32 %v940, 4294901760
        %v2110 = vsub.f32 %v940, %v2109
        %v2111 = vand.u32 %v2110, 4294901760
        %2112 = vmatprep.subr.mxu0 %v2111
        %v2113 = vand.u32 %v939, 4294901760
        %v2114 = vsub.f32 %v939, %v2113
        %v2115 = vand.u32 %v2114, 4294901760
        %2116 = vmatpush1.msra.mxu0 %v2115
        %v2117 = vand.u32 %v944, 4294901760
        %v2118 = vsub.f32 %v944, %v2117
        %v2119 = vand.u32 %v2118, 4294901760
        %2120 = vmatprep.subr.mxu0 %v2119
        %v2121 = vand.u32 %v943, 4294901760
        %v2122 = vsub.f32 %v943, %v2121
        %v2123 = vand.u32 %v2122, 4294901760
        %2124 = vmatpush1.msra.mxu0 %v2123
        %v2125 = vand.u32 %v948, 4294901760
        %v2126 = vsub.f32 %v948, %v2125
        %v2127 = vand.u32 %v2126, 4294901760
        %2128 = vmatprep.subr.mxu0 %v2127
        %v2129 = vand.u32 %v947, 4294901760
        %v2130 = vsub.f32 %v947, %v2129
        %v2131 = vand.u32 %v2130, 4294901760
        %2132 = vmatpush1.msra.mxu0 %v2131
        %v2133 = vand.u32 %v952, 4294901760
        %v2134 = vsub.f32 %v952, %v2133
        %v2135 = vand.u32 %v2134, 4294901760
        %2136 = vmatprep.subr.mxu0 %v2135
        %v2137 = vand.u32 %v951, 4294901760
        %v2138 = vsub.f32 %v951, %v2137
        %v2139 = vand.u32 %v2138, 4294901760
        %2140 = vmatpush1.msra.mxu0 %v2139
        %v2141 = vand.u32 %v956, 4294901760
        %v2142 = vsub.f32 %v956, %v2141
        %v2143 = vand.u32 %v2142, 4294901760
        %2144 = vmatprep.subr.mxu0 %v2143
        %v2145 = vand.u32 %v955, 4294901760
        %v2146 = vsub.f32 %v955, %v2145
        %v2147 = vand.u32 %v2146, 4294901760
        %2148 = vmatpush1.msra.mxu0 %v2147
        %v2149 = vand.u32 %v960, 4294901760
        %v2150 = vsub.f32 %v960, %v2149
        %v2151 = vand.u32 %v2150, 4294901760
        %2152 = vmatprep.subr.mxu0 %v2151
        %v2153 = vand.u32 %v959, 4294901760
        %v2154 = vsub.f32 %v959, %v2153
        %v2155 = vand.u32 %v2154, 4294901760
        %2156 = vmatpush1.msra.mxu0 %v2155
        %v2157 = vand.u32 %v964, 4294901760
        %v2158 = vsub.f32 %v964, %v2157
        %v2159 = vand.u32 %v2158, 4294901760
        %2160 = vmatprep.subr.mxu0 %v2159
        %v2161 = vand.u32 %v963, 4294901760
        %v2162 = vsub.f32 %v963, %v2161
        %v2163 = vand.u32 %v2162, 4294901760
        %2164 = vmatpush1.msra.mxu0 %v2163
        %v2165 = vand.u32 %v968, 4294901760
        %v2166 = vsub.f32 %v968, %v2165
        %v2167 = vand.u32 %v2166, 4294901760
        %2168 = vmatprep.subr.mxu0 %v2167
        %v2169 = vand.u32 %v967, 4294901760
        %v2170 = vsub.f32 %v967, %v2169
        %v2171 = vand.u32 %v2170, 4294901760
        %2172 = vmatpush1.msra.mxu0 %v2171
        %v2173 = vand.u32 %v972, 4294901760
        %v2174 = vsub.f32 %v972, %v2173
        %v2175 = vand.u32 %v2174, 4294901760
        %2176 = vmatprep.subr.mxu0 %v2175
        %v2177 = vand.u32 %v971, 4294901760
        %v2178 = vsub.f32 %v971, %v2177
        %v2179 = vand.u32 %v2178, 4294901760
        %2180 = vmatpush1.msra.mxu0 %v2179
        %v2181 = vand.u32 %v844, 4294901760
        %2182 = vmatprep.mubr.f32.mxu0 %v2181
        %v2183 = vand.u32 %v843, 4294901760
        %2184 = vmatmul.mubr.f32.gmra.mrb[0].mxu0 %v2183
        %v2185 = vpop.f32.mrb[0].mxu0
        %v2186 = vadd.f32 %v1909, %v2185
        %v2187 = vpop.f32.mrb[0].mxu0
        %v2188 = vadd.f32 %v1911, %v2187
        %v2189 = vand.u32 %v846, 4294901760
        %2190 = vmatprep.mubr.f32.mxu0 %v2189
        %v2191 = vand.u32 %v845, 4294901760
        %2192 = vmatmul.mubr.f32.gmra.mrb[0].mxu0 %v2191
        %v2193 = vpop.f32.mrb[0].mxu0
        %v2194 = vadd.f32 %v1921, %v2193
        %v2195 = vpop.f32.mrb[0].mxu0
        %v2196 = vadd.f32 %v1923, %v2195
        %2197 = vdwg.mxu0
        %v2198 = vand.u32 %v848, 4294901760
        %2199 = vmatprep.subr.mxu0 %v2198
        %v2200 = vand.u32 %v847, 4294901760
        %2201 = vmatpush1.msra.mxu0 %v2200
        %v2202 = vand.u32 %v852, 4294901760
        %2203 = vmatprep.subr.mxu0 %v2202
        %v2204 = vand.u32 %v851, 4294901760
        %2205 = vmatpush1.msra.mxu0 %v2204
        %v2206 = vand.u32 %v856, 4294901760
        %2207 = vmatprep.subr.mxu0 %v2206
        %v2208 = vand.u32 %v855, 4294901760
        %2209 = vmatpush1.msra.mxu0 %v2208
        %v2210 = vand.u32 %v860, 4294901760
        %2211 = vmatprep.subr.mxu0 %v2210
        %v2212 = vand.u32 %v859, 4294901760
        %2213 = vmatpush1.msra.mxu0 %v2212
        %v2214 = vand.u32 %v864, 4294901760
        %2215 = vmatprep.subr.mxu0 %v2214
        %v2216 = vand.u32 %v863, 4294901760
        %2217 = vmatpush1.msra.mxu0 %v2216
        %v2218 = vand.u32 %v868, 4294901760
        %2219 = vmatprep.subr.mxu0 %v2218
        %v2220 = vand.u32 %v867, 4294901760
        %2221 = vmatpush1.msra.mxu0 %v2220
        %v2222 = vand.u32 %v872, 4294901760
        %2223 = vmatprep.subr.mxu0 %v2222
        %v2224 = vand.u32 %v871, 4294901760
        %2225 = vmatpush1.msra.mxu0 %v2224
        %v2226 = vand.u32 %v876, 4294901760
        %2227 = vmatprep.subr.mxu0 %v2226
        %v2228 = vand.u32 %v875, 4294901760
        %2229 = vmatpush1.msra.mxu0 %v2228
        %v2230 = vand.u32 %v880, 4294901760
        %2231 = vmatprep.subr.mxu0 %v2230
        %v2232 = vand.u32 %v879, 4294901760
        %2233 = vmatpush1.msra.mxu0 %v2232
        %v2234 = vand.u32 %v884, 4294901760
        %2235 = vmatprep.subr.mxu0 %v2234
        %v2236 = vand.u32 %v883, 4294901760
        %2237 = vmatpush1.msra.mxu0 %v2236
        %v2238 = vand.u32 %v888, 4294901760
        %2239 = vmatprep.subr.mxu0 %v2238
        %v2240 = vand.u32 %v887, 4294901760
        %2241 = vmatpush1.msra.mxu0 %v2240
        %v2242 = vand.u32 %v892, 4294901760
        %2243 = vmatprep.subr.mxu0 %v2242
        %v2244 = vand.u32 %v891, 4294901760
        %2245 = vmatpush1.msra.mxu0 %v2244
        %v2246 = vand.u32 %v896, 4294901760
        %2247 = vmatprep.subr.mxu0 %v2246
        %v2248 = vand.u32 %v895, 4294901760
        %2249 = vmatpush1.msra.mxu0 %v2248
        %v2250 = vand.u32 %v900, 4294901760
        %2251 = vmatprep.subr.mxu0 %v2250
        %v2252 = vand.u32 %v899, 4294901760
        %2253 = vmatpush1.msra.mxu0 %v2252
        %v2254 = vand.u32 %v904, 4294901760
        %2255 = vmatprep.subr.mxu0 %v2254
        %v2256 = vand.u32 %v903, 4294901760
        %2257 = vmatpush1.msra.mxu0 %v2256
        %v2258 = vand.u32 %v908, 4294901760
        %2259 = vmatprep.subr.mxu0 %v2258
        %v2260 = vand.u32 %v907, 4294901760
        %2261 = vmatpush1.msra.mxu0 %v2260
        %v2262 = vand.u32 %v912, 4294901760
        %2263 = vmatprep.subr.mxu0 %v2262
        %v2264 = vand.u32 %v911, 4294901760
        %2265 = vmatpush1.msra.mxu0 %v2264
        %v2266 = vand.u32 %v916, 4294901760
        %2267 = vmatprep.subr.mxu0 %v2266
        %v2268 = vand.u32 %v915, 4294901760
        %2269 = vmatpush1.msra.mxu0 %v2268
        %v2270 = vand.u32 %v920, 4294901760
        %2271 = vmatprep.subr.mxu0 %v2270
        %v2272 = vand.u32 %v919, 4294901760
        %2273 = vmatpush1.msra.mxu0 %v2272
        %v2274 = vand.u32 %v924, 4294901760
        %2275 = vmatprep.subr.mxu0 %v2274
        %v2276 = vand.u32 %v923, 4294901760
        %2277 = vmatpush1.msra.mxu0 %v2276
        %v2278 = vand.u32 %v928, 4294901760
        %2279 = vmatprep.subr.mxu0 %v2278
        %v2280 = vand.u32 %v927, 4294901760
        %2281 = vmatpush1.msra.mxu0 %v2280
        %v2282 = vand.u32 %v932, 4294901760
        %2283 = vmatprep.subr.mxu0 %v2282
        %v2284 = vand.u32 %v931, 4294901760
        %2285 = vmatpush1.msra.mxu0 %v2284
        %v2286 = vand.u32 %v936, 4294901760
        %2287 = vmatprep.subr.mxu0 %v2286
        %v2288 = vand.u32 %v935, 4294901760
        %2289 = vmatpush1.msra.mxu0 %v2288
        %v2290 = vand.u32 %v940, 4294901760
        %2291 = vmatprep.subr.mxu0 %v2290
        %v2292 = vand.u32 %v939, 4294901760
        %2293 = vmatpush1.msra.mxu0 %v2292
        %v2294 = vand.u32 %v944, 4294901760
        %2295 = vmatprep.subr.mxu0 %v2294
        %v2296 = vand.u32 %v943, 4294901760
        %2297 = vmatpush1.msra.mxu0 %v2296
        %v2298 = vand.u32 %v948, 4294901760
        %2299 = vmatprep.subr.mxu0 %v2298
        %v2300 = vand.u32 %v947, 4294901760
        %2301 = vmatpush1.msra.mxu0 %v2300
        %v2302 = vand.u32 %v952, 4294901760
        %2303 = vmatprep.subr.mxu0 %v2302
        %v2304 = vand.u32 %v951, 4294901760
        %2305 = vmatpush1.msra.mxu0 %v2304
        %v2306 = vand.u32 %v956, 4294901760
        %2307 = vmatprep.subr.mxu0 %v2306
        %v2308 = vand.u32 %v955, 4294901760
        %2309 = vmatpush1.msra.mxu0 %v2308
        %v2310 = vand.u32 %v960, 4294901760
        %2311 = vmatprep.subr.mxu0 %v2310
        %v2312 = vand.u32 %v959, 4294901760
        %2313 = vmatpush1.msra.mxu0 %v2312
        %v2314 = vand.u32 %v964, 4294901760
        %2315 = vmatprep.subr.mxu0 %v2314
        %v2316 = vand.u32 %v963, 4294901760
        %2317 = vmatpush1.msra.mxu0 %v2316
        %v2318 = vand.u32 %v968, 4294901760
        %2319 = vmatprep.subr.mxu0 %v2318
        %v2320 = vand.u32 %v967, 4294901760
        %2321 = vmatpush1.msra.mxu0 %v2320
        %v2322 = vand.u32 %v972, 4294901760
        %2323 = vmatprep.subr.mxu0 %v2322
        %v2324 = vand.u32 %v971, 4294901760
        %2325 = vmatpush1.msra.mxu0 %v2324
        %v2326 = vand.u32 %v844, 4294901760
        %2327 = vmatprep.mubr.f32.mxu0 %v2326
        %v2328 = vand.u32 %v843, 4294901760
        %2329 = vmatmul.mubr.f32.gmra.mrb[0].mxu0 %v2328
        %v2330 = vpop.f32.mrb[0].mxu0
        %v2331 = vadd.f32 %v2186, %v2330
        %v2332 = vpop.f32.mrb[0].mxu0
        %v2333 = vadd.f32 %v2188, %v2332
        %v2334 = vand.u32 %v846, 4294901760
        %2335 = vmatprep.mubr.f32.mxu0 %v2334
        %v2336 = vand.u32 %v845, 4294901760
        %2337 = vmatmul.mubr.f32.gmra.mrb[0].mxu0 %v2336
        %v2338 = vpop.f32.mrb[0].mxu0
        %v2339 = vadd.f32 %v2194, %v2338
        %v2340 = vpop.f32.mrb[0].mxu0
        %v2341 = vadd.f32 %v2196, %v2340
        %2342 = vdwg.mxu0
        %v2343 = vand.u32 %v850, 4294901760
        %2344 = vmatprep.subr.mxu0 %v2343
        %v2345 = vand.u32 %v849, 4294901760
        %2346 = vmatpush1.msra.mxu0 %v2345
        %v2347 = vand.u32 %v854, 4294901760
        %2348 = vmatprep.subr.mxu0 %v2347
        %v2349 = vand.u32 %v853, 4294901760
        %2350 = vmatpush1.msra.mxu0 %v2349
        %v2351 = vand.u32 %v858, 4294901760
        %2352 = vmatprep.subr.mxu0 %v2351
        %v2353 = vand.u32 %v857, 4294901760
        %2354 = vmatpush1.msra.mxu0 %v2353
        %v2355 = vand.u32 %v862, 4294901760
        %2356 = vmatprep.subr.mxu0 %v2355
        %v2357 = vand.u32 %v861, 4294901760
        %2358 = vmatpush1.msra.mxu0 %v2357
        %v2359 = vand.u32 %v866, 4294901760
        %2360 = vmatprep.subr.mxu0 %v2359
        %v2361 = vand.u32 %v865, 4294901760
        %2362 = vmatpush1.msra.mxu0 %v2361
        %v2363 = vand.u32 %v870, 4294901760
        %2364 = vmatprep.subr.mxu0 %v2363
        %v2365 = vand.u32 %v869, 4294901760
        %2366 = vmatpush1.msra.mxu0 %v2365
        %v2367 = vand.u32 %v874, 4294901760
        %2368 = vmatprep.subr.mxu0 %v2367
        %v2369 = vand.u32 %v873, 4294901760
        %2370 = vmatpush1.msra.mxu0 %v2369
        %v2371 = vand.u32 %v878, 4294901760
        %2372 = vmatprep.subr.mxu0 %v2371
        %v2373 = vand.u32 %v877, 4294901760
        %2374 = vmatpush1.msra.mxu0 %v2373
        %v2375 = vand.u32 %v882, 4294901760
        %2376 = vmatprep.subr.mxu0 %v2375
        %v2377 = vand.u32 %v881, 4294901760
        %2378 = vmatpush1.msra.mxu0 %v2377
        %v2379 = vand.u32 %v886, 4294901760
        %2380 = vmatprep.subr.mxu0 %v2379
        %v2381 = vand.u32 %v885, 4294901760
        %2382 = vmatpush1.msra.mxu0 %v2381
        %v2383 = vand.u32 %v890, 4294901760
        %2384 = vmatprep.subr.mxu0 %v2383
        %v2385 = vand.u32 %v889, 4294901760
        %2386 = vmatpush1.msra.mxu0 %v2385
        %v2387 = vand.u32 %v894, 4294901760
        %2388 = vmatprep.subr.mxu0 %v2387
        %v2389 = vand.u32 %v893, 4294901760
        %2390 = vmatpush1.msra.mxu0 %v2389
        %v2391 = vand.u32 %v898, 4294901760
        %2392 = vmatprep.subr.mxu0 %v2391
        %v2393 = vand.u32 %v897, 4294901760
        %2394 = vmatpush1.msra.mxu0 %v2393
        %v2395 = vand.u32 %v902, 4294901760
        %2396 = vmatprep.subr.mxu0 %v2395
        %v2397 = vand.u32 %v901, 4294901760
        %2398 = vmatpush1.msra.mxu0 %v2397
        %v2399 = vand.u32 %v906, 4294901760
        %2400 = vmatprep.subr.mxu0 %v2399
        %v2401 = vand.u32 %v905, 4294901760
        %2402 = vmatpush1.msra.mxu0 %v2401
        %v2403 = vand.u32 %v910, 4294901760
        %2404 = vmatprep.subr.mxu0 %v2403
        %v2405 = vand.u32 %v909, 4294901760
        %2406 = vmatpush1.msra.mxu0 %v2405
        %v2407 = vand.u32 %v914, 4294901760
        %2408 = vmatprep.subr.mxu0 %v2407
        %v2409 = vand.u32 %v913, 4294901760
        %2410 = vmatpush1.msra.mxu0 %v2409
        %v2411 = vand.u32 %v918, 4294901760
        %2412 = vmatprep.subr.mxu0 %v2411
        %v2413 = vand.u32 %v917, 4294901760
        %2414 = vmatpush1.msra.mxu0 %v2413
        %v2415 = vand.u32 %v922, 4294901760
        %2416 = vmatprep.subr.mxu0 %v2415
        %v2417 = vand.u32 %v921, 4294901760
        %2418 = vmatpush1.msra.mxu0 %v2417
        %v2419 = vand.u32 %v926, 4294901760
        %2420 = vmatprep.subr.mxu0 %v2419
        %v2421 = vand.u32 %v925, 4294901760
        %2422 = vmatpush1.msra.mxu0 %v2421
        %v2423 = vand.u32 %v930, 4294901760
        %2424 = vmatprep.subr.mxu0 %v2423
        %v2425 = vand.u32 %v929, 4294901760
        %2426 = vmatpush1.msra.mxu0 %v2425
        %v2427 = vand.u32 %v934, 4294901760
        %2428 = vmatprep.subr.mxu0 %v2427
        %v2429 = vand.u32 %v933, 4294901760
        %2430 = vmatpush1.msra.mxu0 %v2429
        %v2431 = vand.u32 %v938, 4294901760
        %2432 = vmatprep.subr.mxu0 %v2431
        %v2433 = vand.u32 %v937, 4294901760
        %2434 = vmatpush1.msra.mxu0 %v2433
        %v2435 = vand.u32 %v942, 4294901760
        %2436 = vmatprep.subr.mxu0 %v2435
        %v2437 = vand.u32 %v941, 4294901760
        %2438 = vmatpush1.msra.mxu0 %v2437
        %v2439 = vand.u32 %v946, 4294901760
        %2440 = vmatprep.subr.mxu0 %v2439
        %v2441 = vand.u32 %v945, 4294901760
        %2442 = vmatpush1.msra.mxu0 %v2441
        %v2443 = vand.u32 %v950, 4294901760
        %2444 = vmatprep.subr.mxu0 %v2443
        %v2445 = vand.u32 %v949, 4294901760
        %2446 = vmatpush1.msra.mxu0 %v2445
        %v2447 = vand.u32 %v954, 4294901760
        %2448 = vmatprep.subr.mxu0 %v2447
        %v2449 = vand.u32 %v953, 4294901760
        %2450 = vmatpush1.msra.mxu0 %v2449
        %v2451 = vand.u32 %v958, 4294901760
        %2452 = vmatprep.subr.mxu0 %v2451
        %v2453 = vand.u32 %v957, 4294901760
        %2454 = vmatpush1.msra.mxu0 %v2453
        %v2455 = vand.u32 %v962, 4294901760
        %2456 = vmatprep.subr.mxu0 %v2455
        %v2457 = vand.u32 %v961, 4294901760
        %2458 = vmatpush1.msra.mxu0 %v2457
        %v2459 = vand.u32 %v966, 4294901760
        %2460 = vmatprep.subr.mxu0 %v2459
        %v2461 = vand.u32 %v965, 4294901760
        %2462 = vmatpush1.msra.mxu0 %v2461
        %v2463 = vand.u32 %v970, 4294901760
        %2464 = vmatprep.subr.mxu0 %v2463
        %v2465 = vand.u32 %v969, 4294901760
        %2466 = vmatpush1.msra.mxu0 %v2465
        %v2467 = vand.u32 %v974, 4294901760
        %2468 = vmatprep.subr.mxu0 %v2467
        %v2469 = vand.u32 %v973, 4294901760
        %2470 = vmatpush1.msra.mxu0 %v2469
        %v2471 = vand.u32 %v844, 4294901760
        %v2472 = vsub.f32 %v844, %v2471
        %v2473 = vand.u32 %v2472, 4294901760
        %v2474 = vsub.f32 %v2472, %v2473
        %v2475 = vand.u32 %v2474, 4294901760
        %2476 = vmatprep.mubr.f32.mxu0 %v2475
        %v2477 = vand.u32 %v843, 4294901760
        %v2478 = vsub.f32 %v843, %v2477
        %v2479 = vand.u32 %v2478, 4294901760
        %v2480 = vsub.f32 %v2478, %v2479
        %v2481 = vand.u32 %v2480, 4294901760
        %2482 = vmatmul.mubr.f32.gmra.mrb[0].mxu0 %v2481
        %v2483 = vpop.f32.mrb[0].mxu0
        %v2484 = vadd.f32 %v988, %v2483
        %v2485 = vpop.f32.mrb[0].mxu0
        %v2486 = vadd.f32 %v992, %v2485
        %v2487 = vand.u32 %v846, 4294901760
        %v2488 = vsub.f32 %v846, %v2487
        %v2489 = vand.u32 %v2488, 4294901760
        %v2490 = vsub.f32 %v2488, %v2489
        %v2491 = vand.u32 %v2490, 4294901760
        %2492 = vmatprep.mubr.f32.mxu0 %v2491
        %v2493 = vand.u32 %v845, 4294901760
        %v2494 = vsub.f32 %v845, %v2493
        %v2495 = vand.u32 %v2494, 4294901760
        %v2496 = vsub.f32 %v2494, %v2495
        %v2497 = vand.u32 %v2496, 4294901760
        %2498 = vmatmul.mubr.f32.gmra.mrb[0].mxu0 %v2497
        %v2499 = vpop.f32.mrb[0].mxu0
        %v2500 = vadd.f32 %v988, %v2499
        %v2501 = vpop.f32.mrb[0].mxu0
        %v2502 = vadd.f32 %v992, %v2501
        %2503 = vdwg.mxu0
        %v2504 = vand.u32 %v850, 4294901760
        %v2505 = vsub.f32 %v850, %v2504
        %v2506 = vand.u32 %v2505, 4294901760
        %v2507 = vsub.f32 %v2505, %v2506
        %v2508 = vand.u32 %v2507, 4294901760
        %2509 = vmatprep.subr.mxu0 %v2508
        %v2510 = vand.u32 %v849, 4294901760
        %v2511 = vsub.f32 %v849, %v2510
        %v2512 = vand.u32 %v2511, 4294901760
        %v2513 = vsub.f32 %v2511, %v2512
        %v2514 = vand.u32 %v2513, 4294901760
        %2515 = vmatpush1.msra.mxu0 %v2514
        %v2516 = vand.u32 %v854, 4294901760
        %v2517 = vsub.f32 %v854, %v2516
        %v2518 = vand.u32 %v2517, 4294901760
        %v2519 = vsub.f32 %v2517, %v2518
        %v2520 = vand.u32 %v2519, 4294901760
        %2521 = vmatprep.subr.mxu0 %v2520
        %v2522 = vand.u32 %v853, 4294901760
        %v2523 = vsub.f32 %v853, %v2522
        %v2524 = vand.u32 %v2523, 4294901760
        %v2525 = vsub.f32 %v2523, %v2524
        %v2526 = vand.u32 %v2525, 4294901760
        %2527 = vmatpush1.msra.mxu0 %v2526
        %v2528 = vand.u32 %v858, 4294901760
        %v2529 = vsub.f32 %v858, %v2528
        %v2530 = vand.u32 %v2529, 4294901760
        %v2531 = vsub.f32 %v2529, %v2530
        %v2532 = vand.u32 %v2531, 4294901760
        %2533 = vmatprep.subr.mxu0 %v2532
        %v2534 = vand.u32 %v857, 4294901760
        %v2535 = vsub.f32 %v857, %v2534
        %v2536 = vand.u32 %v2535, 4294901760
        %v2537 = vsub.f32 %v2535, %v2536
        %v2538 = vand.u32 %v2537, 4294901760
        %2539 = vmatpush1.msra.mxu0 %v2538
        %v2540 = vand.u32 %v862, 4294901760
        %v2541 = vsub.f32 %v862, %v2540
        %v2542 = vand.u32 %v2541, 4294901760
        %v2543 = vsub.f32 %v2541, %v2542
        %v2544 = vand.u32 %v2543, 4294901760
        %2545 = vmatprep.subr.mxu0 %v2544
        %v2546 = vand.u32 %v861, 4294901760
        %v2547 = vsub.f32 %v861, %v2546
        %v2548 = vand.u32 %v2547, 4294901760
        %v2549 = vsub.f32 %v2547, %v2548
        %v2550 = vand.u32 %v2549, 4294901760
        %2551 = vmatpush1.msra.mxu0 %v2550
        %v2552 = vand.u32 %v866, 4294901760
        %v2553 = vsub.f32 %v866, %v2552
        %v2554 = vand.u32 %v2553, 4294901760
        %v2555 = vsub.f32 %v2553, %v2554
        %v2556 = vand.u32 %v2555, 4294901760
        %2557 = vmatprep.subr.mxu0 %v2556
        %v2558 = vand.u32 %v865, 4294901760
        %v2559 = vsub.f32 %v865, %v2558
        %v2560 = vand.u32 %v2559, 4294901760
        %v2561 = vsub.f32 %v2559, %v2560
        %v2562 = vand.u32 %v2561, 4294901760
        %2563 = vmatpush1.msra.mxu0 %v2562
        %v2564 = vand.u32 %v870, 4294901760
        %v2565 = vsub.f32 %v870, %v2564
        %v2566 = vand.u32 %v2565, 4294901760
        %v2567 = vsub.f32 %v2565, %v2566
        %v2568 = vand.u32 %v2567, 4294901760
        %2569 = vmatprep.subr.mxu0 %v2568
        %v2570 = vand.u32 %v869, 4294901760
        %v2571 = vsub.f32 %v869, %v2570
        %v2572 = vand.u32 %v2571, 4294901760
        %v2573 = vsub.f32 %v2571, %v2572
        %v2574 = vand.u32 %v2573, 4294901760
        %2575 = vmatpush1.msra.mxu0 %v2574
        %v2576 = vand.u32 %v874, 4294901760
        %v2577 = vsub.f32 %v874, %v2576
        %v2578 = vand.u32 %v2577, 4294901760
        %v2579 = vsub.f32 %v2577, %v2578
        %v2580 = vand.u32 %v2579, 4294901760
        %2581 = vmatprep.subr.mxu0 %v2580
        %v2582 = vand.u32 %v873, 4294901760
        %v2583 = vsub.f32 %v873, %v2582
        %v2584 = vand.u32 %v2583, 4294901760
        %v2585 = vsub.f32 %v2583, %v2584
        %v2586 = vand.u32 %v2585, 4294901760
        %2587 = vmatpush1.msra.mxu0 %v2586
        %v2588 = vand.u32 %v878, 4294901760
        %v2589 = vsub.f32 %v878, %v2588
        %v2590 = vand.u32 %v2589, 4294901760
        %v2591 = vsub.f32 %v2589, %v2590
        %v2592 = vand.u32 %v2591, 4294901760
        %2593 = vmatprep.subr.mxu0 %v2592
        %v2594 = vand.u32 %v877, 4294901760
        %v2595 = vsub.f32 %v877, %v2594
        %v2596 = vand.u32 %v2595, 4294901760
        %v2597 = vsub.f32 %v2595, %v2596
        %v2598 = vand.u32 %v2597, 4294901760
        %2599 = vmatpush1.msra.mxu0 %v2598
        %v2600 = vand.u32 %v882, 4294901760
        %v2601 = vsub.f32 %v882, %v2600
        %v2602 = vand.u32 %v2601, 4294901760
        %v2603 = vsub.f32 %v2601, %v2602
        %v2604 = vand.u32 %v2603, 4294901760
        %2605 = vmatprep.subr.mxu0 %v2604
        %v2606 = vand.u32 %v881, 4294901760
        %v2607 = vsub.f32 %v881, %v2606
        %v2608 = vand.u32 %v2607, 4294901760
        %v2609 = vsub.f32 %v2607, %v2608
        %v2610 = vand.u32 %v2609, 4294901760
        %2611 = vmatpush1.msra.mxu0 %v2610
        %v2612 = vand.u32 %v886, 4294901760
        %v2613 = vsub.f32 %v886, %v2612
        %v2614 = vand.u32 %v2613, 4294901760
        %v2615 = vsub.f32 %v2613, %v2614
        %v2616 = vand.u32 %v2615, 4294901760
        %2617 = vmatprep.subr.mxu0 %v2616
        %v2618 = vand.u32 %v885, 4294901760
        %v2619 = vsub.f32 %v885, %v2618
        %v2620 = vand.u32 %v2619, 4294901760
        %v2621 = vsub.f32 %v2619, %v2620
        %v2622 = vand.u32 %v2621, 4294901760
        %2623 = vmatpush1.msra.mxu0 %v2622
        %v2624 = vand.u32 %v890, 4294901760
        %v2625 = vsub.f32 %v890, %v2624
        %v2626 = vand.u32 %v2625, 4294901760
        %v2627 = vsub.f32 %v2625, %v2626
        %v2628 = vand.u32 %v2627, 4294901760
        %2629 = vmatprep.subr.mxu0 %v2628
        %v2630 = vand.u32 %v889, 4294901760
        %v2631 = vsub.f32 %v889, %v2630
        %v2632 = vand.u32 %v2631, 4294901760
        %v2633 = vsub.f32 %v2631, %v2632
        %v2634 = vand.u32 %v2633, 4294901760
        %2635 = vmatpush1.msra.mxu0 %v2634
        %v2636 = vand.u32 %v894, 4294901760
        %v2637 = vsub.f32 %v894, %v2636
        %v2638 = vand.u32 %v2637, 4294901760
        %v2639 = vsub.f32 %v2637, %v2638
        %v2640 = vand.u32 %v2639, 4294901760
        %2641 = vmatprep.subr.mxu0 %v2640
        %v2642 = vand.u32 %v893, 4294901760
        %v2643 = vsub.f32 %v893, %v2642
        %v2644 = vand.u32 %v2643, 4294901760
        %v2645 = vsub.f32 %v2643, %v2644
        %v2646 = vand.u32 %v2645, 4294901760
        %2647 = vmatpush1.msra.mxu0 %v2646
        %v2648 = vand.u32 %v898, 4294901760
        %v2649 = vsub.f32 %v898, %v2648
        %v2650 = vand.u32 %v2649, 4294901760
        %v2651 = vsub.f32 %v2649, %v2650
        %v2652 = vand.u32 %v2651, 4294901760
        %2653 = vmatprep.subr.mxu0 %v2652
        %v2654 = vand.u32 %v897, 4294901760
        %v2655 = vsub.f32 %v897, %v2654
        %v2656 = vand.u32 %v2655, 4294901760
        %v2657 = vsub.f32 %v2655, %v2656
        %v2658 = vand.u32 %v2657, 4294901760
        %2659 = vmatpush1.msra.mxu0 %v2658
        %v2660 = vand.u32 %v902, 4294901760
        %v2661 = vsub.f32 %v902, %v2660
        %v2662 = vand.u32 %v2661, 4294901760
        %v2663 = vsub.f32 %v2661, %v2662
        %v2664 = vand.u32 %v2663, 4294901760
        %2665 = vmatprep.subr.mxu0 %v2664
        %v2666 = vand.u32 %v901, 4294901760
        %v2667 = vsub.f32 %v901, %v2666
        %v2668 = vand.u32 %v2667, 4294901760
        %v2669 = vsub.f32 %v2667, %v2668
        %v2670 = vand.u32 %v2669, 4294901760
        %2671 = vmatpush1.msra.mxu0 %v2670
        %v2672 = vand.u32 %v906, 4294901760
        %v2673 = vsub.f32 %v906, %v2672
        %v2674 = vand.u32 %v2673, 4294901760
        %v2675 = vsub.f32 %v2673, %v2674
        %v2676 = vand.u32 %v2675, 4294901760
        %2677 = vmatprep.subr.mxu0 %v2676
        %v2678 = vand.u32 %v905, 4294901760
        %v2679 = vsub.f32 %v905, %v2678
        %v2680 = vand.u32 %v2679, 4294901760
        %v2681 = vsub.f32 %v2679, %v2680
        %v2682 = vand.u32 %v2681, 4294901760
        %2683 = vmatpush1.msra.mxu0 %v2682
        %v2684 = vand.u32 %v910, 4294901760
        %v2685 = vsub.f32 %v910, %v2684
        %v2686 = vand.u32 %v2685, 4294901760
        %v2687 = vsub.f32 %v2685, %v2686
        %v2688 = vand.u32 %v2687, 4294901760
        %2689 = vmatprep.subr.mxu0 %v2688
        %v2690 = vand.u32 %v909, 4294901760
        %v2691 = vsub.f32 %v909, %v2690
        %v2692 = vand.u32 %v2691, 4294901760
        %v2693 = vsub.f32 %v2691, %v2692
        %v2694 = vand.u32 %v2693, 4294901760
        %2695 = vmatpush1.msra.mxu0 %v2694
        %v2696 = vand.u32 %v914, 4294901760
        %v2697 = vsub.f32 %v914, %v2696
        %v2698 = vand.u32 %v2697, 4294901760
        %v2699 = vsub.f32 %v2697, %v2698
        %v2700 = vand.u32 %v2699, 4294901760
        %2701 = vmatprep.subr.mxu0 %v2700
        %v2702 = vand.u32 %v913, 4294901760
        %v2703 = vsub.f32 %v913, %v2702
        %v2704 = vand.u32 %v2703, 4294901760
        %v2705 = vsub.f32 %v2703, %v2704
        %v2706 = vand.u32 %v2705, 4294901760
        %2707 = vmatpush1.msra.mxu0 %v2706
        %v2708 = vand.u32 %v918, 4294901760
        %v2709 = vsub.f32 %v918, %v2708
        %v2710 = vand.u32 %v2709, 4294901760
        %v2711 = vsub.f32 %v2709, %v2710
        %v2712 = vand.u32 %v2711, 4294901760
        %2713 = vmatprep.subr.mxu0 %v2712
        %v2714 = vand.u32 %v917, 4294901760
        %v2715 = vsub.f32 %v917, %v2714
        %v2716 = vand.u32 %v2715, 4294901760
        %v2717 = vsub.f32 %v2715, %v2716
        %v2718 = vand.u32 %v2717, 4294901760
        %2719 = vmatpush1.msra.mxu0 %v2718
        %v2720 = vand.u32 %v922, 4294901760
        %v2721 = vsub.f32 %v922, %v2720
        %v2722 = vand.u32 %v2721, 4294901760
        %v2723 = vsub.f32 %v2721, %v2722
        %v2724 = vand.u32 %v2723, 4294901760
        %2725 = vmatprep.subr.mxu0 %v2724
        %v2726 = vand.u32 %v921, 4294901760
        %v2727 = vsub.f32 %v921, %v2726
        %v2728 = vand.u32 %v2727, 4294901760
        %v2729 = vsub.f32 %v2727, %v2728
        %v2730 = vand.u32 %v2729, 4294901760
        %2731 = vmatpush1.msra.mxu0 %v2730
        %v2732 = vand.u32 %v926, 4294901760
        %v2733 = vsub.f32 %v926, %v2732
        %v2734 = vand.u32 %v2733, 4294901760
        %v2735 = vsub.f32 %v2733, %v2734
        %v2736 = vand.u32 %v2735, 4294901760
        %2737 = vmatprep.subr.mxu0 %v2736
        %v2738 = vand.u32 %v925, 4294901760
        %v2739 = vsub.f32 %v925, %v2738
        %v2740 = vand.u32 %v2739, 4294901760
        %v2741 = vsub.f32 %v2739, %v2740
        %v2742 = vand.u32 %v2741, 4294901760
        %2743 = vmatpush1.msra.mxu0 %v2742
        %v2744 = vand.u32 %v930, 4294901760
        %v2745 = vsub.f32 %v930, %v2744
        %v2746 = vand.u32 %v2745, 4294901760
        %v2747 = vsub.f32 %v2745, %v2746
        %v2748 = vand.u32 %v2747, 4294901760
        %2749 = vmatprep.subr.mxu0 %v2748
        %v2750 = vand.u32 %v929, 4294901760
        %v2751 = vsub.f32 %v929, %v2750
        %v2752 = vand.u32 %v2751, 4294901760
        %v2753 = vsub.f32 %v2751, %v2752
        %v2754 = vand.u32 %v2753, 4294901760
        %2755 = vmatpush1.msra.mxu0 %v2754
        %v2756 = vand.u32 %v934, 4294901760
        %v2757 = vsub.f32 %v934, %v2756
        %v2758 = vand.u32 %v2757, 4294901760
        %v2759 = vsub.f32 %v2757, %v2758
        %v2760 = vand.u32 %v2759, 4294901760
        %2761 = vmatprep.subr.mxu0 %v2760
        %v2762 = vand.u32 %v933, 4294901760
        %v2763 = vsub.f32 %v933, %v2762
        %v2764 = vand.u32 %v2763, 4294901760
        %v2765 = vsub.f32 %v2763, %v2764
        %v2766 = vand.u32 %v2765, 4294901760
        %2767 = vmatpush1.msra.mxu0 %v2766
        %v2768 = vand.u32 %v938, 4294901760
        %v2769 = vsub.f32 %v938, %v2768
        %v2770 = vand.u32 %v2769, 4294901760
        %v2771 = vsub.f32 %v2769, %v2770
        %v2772 = vand.u32 %v2771, 4294901760
        %2773 = vmatprep.subr.mxu0 %v2772
        %v2774 = vand.u32 %v937, 4294901760
        %v2775 = vsub.f32 %v937, %v2774
        %v2776 = vand.u32 %v2775, 4294901760
        %v2777 = vsub.f32 %v2775, %v2776
        %v2778 = vand.u32 %v2777, 4294901760
        %2779 = vmatpush1.msra.mxu0 %v2778
        %v2780 = vand.u32 %v942, 4294901760
        %v2781 = vsub.f32 %v942, %v2780
        %v2782 = vand.u32 %v2781, 4294901760
        %v2783 = vsub.f32 %v2781, %v2782
        %v2784 = vand.u32 %v2783, 4294901760
        %2785 = vmatprep.subr.mxu0 %v2784
        %v2786 = vand.u32 %v941, 4294901760
        %v2787 = vsub.f32 %v941, %v2786
        %v2788 = vand.u32 %v2787, 4294901760
        %v2789 = vsub.f32 %v2787, %v2788
        %v2790 = vand.u32 %v2789, 4294901760
        %2791 = vmatpush1.msra.mxu0 %v2790
        %v2792 = vand.u32 %v946, 4294901760
        %v2793 = vsub.f32 %v946, %v2792
        %v2794 = vand.u32 %v2793, 4294901760
        %v2795 = vsub.f32 %v2793, %v2794
        %v2796 = vand.u32 %v2795, 4294901760
        %2797 = vmatprep.subr.mxu0 %v2796
        %v2798 = vand.u32 %v945, 4294901760
        %v2799 = vsub.f32 %v945, %v2798
        %v2800 = vand.u32 %v2799, 4294901760
        %v2801 = vsub.f32 %v2799, %v2800
        %v2802 = vand.u32 %v2801, 4294901760
        %2803 = vmatpush1.msra.mxu0 %v2802
        %v2804 = vand.u32 %v950, 4294901760
        %v2805 = vsub.f32 %v950, %v2804
        %v2806 = vand.u32 %v2805, 4294901760
        %v2807 = vsub.f32 %v2805, %v2806
        %v2808 = vand.u32 %v2807, 4294901760
        %2809 = vmatprep.subr.mxu0 %v2808
        %v2810 = vand.u32 %v949, 4294901760
        %v2811 = vsub.f32 %v949, %v2810
        %v2812 = vand.u32 %v2811, 4294901760
        %v2813 = vsub.f32 %v2811, %v2812
        %v2814 = vand.u32 %v2813, 4294901760
        %2815 = vmatpush1.msra.mxu0 %v2814
        %v2816 = vand.u32 %v954, 4294901760
        %v2817 = vsub.f32 %v954, %v2816
        %v2818 = vand.u32 %v2817, 4294901760
        %v2819 = vsub.f32 %v2817, %v2818
        %v2820 = vand.u32 %v2819, 4294901760
        %2821 = vmatprep.subr.mxu0 %v2820
        %v2822 = vand.u32 %v953, 4294901760
        %v2823 = vsub.f32 %v953, %v2822
        %v2824 = vand.u32 %v2823, 4294901760
        %v2825 = vsub.f32 %v2823, %v2824
        %v2826 = vand.u32 %v2825, 4294901760
        %2827 = vmatpush1.msra.mxu0 %v2826
        %v2828 = vand.u32 %v958, 4294901760
        %v2829 = vsub.f32 %v958, %v2828
        %v2830 = vand.u32 %v2829, 4294901760
        %v2831 = vsub.f32 %v2829, %v2830
        %v2832 = vand.u32 %v2831, 4294901760
        %2833 = vmatprep.subr.mxu0 %v2832
        %v2834 = vand.u32 %v957, 4294901760
        %v2835 = vsub.f32 %v957, %v2834
        %v2836 = vand.u32 %v2835, 4294901760
        %v2837 = vsub.f32 %v2835, %v2836
        %v2838 = vand.u32 %v2837, 4294901760
        %2839 = vmatpush1.msra.mxu0 %v2838
        %v2840 = vand.u32 %v962, 4294901760
        %v2841 = vsub.f32 %v962, %v2840
        %v2842 = vand.u32 %v2841, 4294901760
        %v2843 = vsub.f32 %v2841, %v2842
        %v2844 = vand.u32 %v2843, 4294901760
        %2845 = vmatprep.subr.mxu0 %v2844
        %v2846 = vand.u32 %v961, 4294901760
        %v2847 = vsub.f32 %v961, %v2846
        %v2848 = vand.u32 %v2847, 4294901760
        %v2849 = vsub.f32 %v2847, %v2848
        %v2850 = vand.u32 %v2849, 4294901760
        %2851 = vmatpush1.msra.mxu0 %v2850
        %v2852 = vand.u32 %v966, 4294901760
        %v2853 = vsub.f32 %v966, %v2852
        %v2854 = vand.u32 %v2853, 4294901760
        %v2855 = vsub.f32 %v2853, %v2854
        %v2856 = vand.u32 %v2855, 4294901760
        %2857 = vmatprep.subr.mxu0 %v2856
        %v2858 = vand.u32 %v965, 4294901760
        %v2859 = vsub.f32 %v965, %v2858
        %v2860 = vand.u32 %v2859, 4294901760
        %v2861 = vsub.f32 %v2859, %v2860
        %v2862 = vand.u32 %v2861, 4294901760
        %2863 = vmatpush1.msra.mxu0 %v2862
        %v2864 = vand.u32 %v970, 4294901760
        %v2865 = vsub.f32 %v970, %v2864
        %v2866 = vand.u32 %v2865, 4294901760
        %v2867 = vsub.f32 %v2865, %v2866
        %v2868 = vand.u32 %v2867, 4294901760
        %2869 = vmatprep.subr.mxu0 %v2868
        %v2870 = vand.u32 %v969, 4294901760
        %v2871 = vsub.f32 %v969, %v2870
        %v2872 = vand.u32 %v2871, 4294901760
        %v2873 = vsub.f32 %v2871, %v2872
        %v2874 = vand.u32 %v2873, 4294901760
        %2875 = vmatpush1.msra.mxu0 %v2874
        %v2876 = vand.u32 %v974, 4294901760
        %v2877 = vsub.f32 %v974, %v2876
        %v2878 = vand.u32 %v2877, 4294901760
        %v2879 = vsub.f32 %v2877, %v2878
        %v2880 = vand.u32 %v2879, 4294901760
        %2881 = vmatprep.subr.mxu0 %v2880
        %v2882 = vand.u32 %v973, 4294901760
        %v2883 = vsub.f32 %v973, %v2882
        %v2884 = vand.u32 %v2883, 4294901760
        %v2885 = vsub.f32 %v2883, %v2884
        %v2886 = vand.u32 %v2885, 4294901760
        %2887 = vmatpush1.msra.mxu0 %v2886
        %v2888 = vand.u32 %v844, 4294901760
        %2889 = vmatprep.mubr.f32.mxu0 %v2888
        %v2890 = vand.u32 %v843, 4294901760
        %2891 = vmatmul.mubr.f32.gmra.mrb[0].mxu0 %v2890
        %v2892 = vpop.f32.mrb[0].mxu0
        %v2893 = vadd.f32 %v2484, %v2892
        %v2894 = vpop.f32.mrb[0].mxu0
        %v2895 = vadd.f32 %v2486, %v2894
        %v2896 = vand.u32 %v846, 4294901760
        %2897 = vmatprep.mubr.f32.mxu0 %v2896
        %v2898 = vand.u32 %v845, 4294901760
        %2899 = vmatmul.mubr.f32.gmra.mrb[0].mxu0 %v2898
        %v2900 = vpop.f32.mrb[0].mxu0
        %v2901 = vadd.f32 %v2500, %v2900
        %v2902 = vpop.f32.mrb[0].mxu0
        %v2903 = vadd.f32 %v2502, %v2902
        %2904 = vdwg.mxu0
        %v2905 = vand.u32 %v850, 4294901760
        %v2906 = vsub.f32 %v850, %v2905
        %2907 = vmatprep.subr.mxu0 %v2906
        %v2908 = vand.u32 %v849, 4294901760
        %v2909 = vsub.f32 %v849, %v2908
        %2910 = vmatpush1.msra.mxu0 %v2909
        %v2911 = vand.u32 %v854, 4294901760
        %v2912 = vsub.f32 %v854, %v2911
        %2913 = vmatprep.subr.mxu0 %v2912
        %v2914 = vand.u32 %v853, 4294901760
        %v2915 = vsub.f32 %v853, %v2914
        %2916 = vmatpush1.msra.mxu0 %v2915
        %v2917 = vand.u32 %v858, 4294901760
        %v2918 = vsub.f32 %v858, %v2917
        %2919 = vmatprep.subr.mxu0 %v2918
        %v2920 = vand.u32 %v857, 4294901760
        %v2921 = vsub.f32 %v857, %v2920
        %2922 = vmatpush1.msra.mxu0 %v2921
        %v2923 = vand.u32 %v862, 4294901760
        %v2924 = vsub.f32 %v862, %v2923
        %2925 = vmatprep.subr.mxu0 %v2924
        %v2926 = vand.u32 %v861, 4294901760
        %v2927 = vsub.f32 %v861, %v2926
        %2928 = vmatpush1.msra.mxu0 %v2927
        %v2929 = vand.u32 %v866, 4294901760
        %v2930 = vsub.f32 %v866, %v2929
        %2931 = vmatprep.subr.mxu0 %v2930
        %v2932 = vand.u32 %v865, 4294901760
        %v2933 = vsub.f32 %v865, %v2932
        %2934 = vmatpush1.msra.mxu0 %v2933
        %v2935 = vand.u32 %v870, 4294901760
        %v2936 = vsub.f32 %v870, %v2935
        %2937 = vmatprep.subr.mxu0 %v2936
        %v2938 = vand.u32 %v869, 4294901760
        %v2939 = vsub.f32 %v869, %v2938
        %2940 = vmatpush1.msra.mxu0 %v2939
        %v2941 = vand.u32 %v874, 4294901760
        %v2942 = vsub.f32 %v874, %v2941
        %2943 = vmatprep.subr.mxu0 %v2942
        %v2944 = vand.u32 %v873, 4294901760
        %v2945 = vsub.f32 %v873, %v2944
        %2946 = vmatpush1.msra.mxu0 %v2945
        %v2947 = vand.u32 %v878, 4294901760
        %v2948 = vsub.f32 %v878, %v2947
        %2949 = vmatprep.subr.mxu0 %v2948
        %v2950 = vand.u32 %v877, 4294901760
        %v2951 = vsub.f32 %v877, %v2950
        %2952 = vmatpush1.msra.mxu0 %v2951
        %v2953 = vand.u32 %v882, 4294901760
        %v2954 = vsub.f32 %v882, %v2953
        %2955 = vmatprep.subr.mxu0 %v2954
        %v2956 = vand.u32 %v881, 4294901760
        %v2957 = vsub.f32 %v881, %v2956
        %2958 = vmatpush1.msra.mxu0 %v2957
        %v2959 = vand.u32 %v886, 4294901760
        %v2960 = vsub.f32 %v886, %v2959
        %2961 = vmatprep.subr.mxu0 %v2960
        %v2962 = vand.u32 %v885, 4294901760
        %v2963 = vsub.f32 %v885, %v2962
        %2964 = vmatpush1.msra.mxu0 %v2963
        %v2965 = vand.u32 %v890, 4294901760
        %v2966 = vsub.f32 %v890, %v2965
        %2967 = vmatprep.subr.mxu0 %v2966
        %v2968 = vand.u32 %v889, 4294901760
        %v2969 = vsub.f32 %v889, %v2968
        %2970 = vmatpush1.msra.mxu0 %v2969
        %v2971 = vand.u32 %v894, 4294901760
        %v2972 = vsub.f32 %v894, %v2971
        %2973 = vmatprep.subr.mxu0 %v2972
        %v2974 = vand.u32 %v893, 4294901760
        %v2975 = vsub.f32 %v893, %v2974
        %2976 = vmatpush1.msra.mxu0 %v2975
        %v2977 = vand.u32 %v898, 4294901760
        %v2978 = vsub.f32 %v898, %v2977
        %2979 = vmatprep.subr.mxu0 %v2978
        %v2980 = vand.u32 %v897, 4294901760
        %v2981 = vsub.f32 %v897, %v2980
        %2982 = vmatpush1.msra.mxu0 %v2981
        %v2983 = vand.u32 %v902, 4294901760
        %v2984 = vsub.f32 %v902, %v2983
        %2985 = vmatprep.subr.mxu0 %v2984
        %v2986 = vand.u32 %v901, 4294901760
        %v2987 = vsub.f32 %v901, %v2986
        %2988 = vmatpush1.msra.mxu0 %v2987
        %v2989 = vand.u32 %v906, 4294901760
        %v2990 = vsub.f32 %v906, %v2989
        %2991 = vmatprep.subr.mxu0 %v2990
        %v2992 = vand.u32 %v905, 4294901760
        %v2993 = vsub.f32 %v905, %v2992
        %2994 = vmatpush1.msra.mxu0 %v2993
        %v2995 = vand.u32 %v910, 4294901760
        %v2996 = vsub.f32 %v910, %v2995
        %2997 = vmatprep.subr.mxu0 %v2996
        %v2998 = vand.u32 %v909, 4294901760
        %v2999 = vsub.f32 %v909, %v2998
        %3000 = vmatpush1.msra.mxu0 %v2999
        %v3001 = vand.u32 %v914, 4294901760
        %v3002 = vsub.f32 %v914, %v3001
        %3003 = vmatprep.subr.mxu0 %v3002
        %v3004 = vand.u32 %v913, 4294901760
        %v3005 = vsub.f32 %v913, %v3004
        %3006 = vmatpush1.msra.mxu0 %v3005
        %v3007 = vand.u32 %v918, 4294901760
        %v3008 = vsub.f32 %v918, %v3007
        %3009 = vmatprep.subr.mxu0 %v3008
        %v3010 = vand.u32 %v917, 4294901760
        %v3011 = vsub.f32 %v917, %v3010
        %3012 = vmatpush1.msra.mxu0 %v3011
        %v3013 = vand.u32 %v922, 4294901760
        %v3014 = vsub.f32 %v922, %v3013
        %3015 = vmatprep.subr.mxu0 %v3014
        %v3016 = vand.u32 %v921, 4294901760
        %v3017 = vsub.f32 %v921, %v3016
        %3018 = vmatpush1.msra.mxu0 %v3017
        %v3019 = vand.u32 %v926, 4294901760
        %v3020 = vsub.f32 %v926, %v3019
        %3021 = vmatprep.subr.mxu0 %v3020
        %v3022 = vand.u32 %v925, 4294901760
        %v3023 = vsub.f32 %v925, %v3022
        %3024 = vmatpush1.msra.mxu0 %v3023
        %v3025 = vand.u32 %v930, 4294901760
        %v3026 = vsub.f32 %v930, %v3025
        %3027 = vmatprep.subr.mxu0 %v3026
        %v3028 = vand.u32 %v929, 4294901760
        %v3029 = vsub.f32 %v929, %v3028
        %3030 = vmatpush1.msra.mxu0 %v3029
        %v3031 = vand.u32 %v934, 4294901760
        %v3032 = vsub.f32 %v934, %v3031
        %3033 = vmatprep.subr.mxu0 %v3032
        %v3034 = vand.u32 %v933, 4294901760
        %v3035 = vsub.f32 %v933, %v3034
        %3036 = vmatpush1.msra.mxu0 %v3035
        %v3037 = vand.u32 %v938, 4294901760
        %v3038 = vsub.f32 %v938, %v3037
        %3039 = vmatprep.subr.mxu0 %v3038
        %v3040 = vand.u32 %v937, 4294901760
        %v3041 = vsub.f32 %v937, %v3040
        %3042 = vmatpush1.msra.mxu0 %v3041
        %v3043 = vand.u32 %v942, 4294901760
        %v3044 = vsub.f32 %v942, %v3043
        %3045 = vmatprep.subr.mxu0 %v3044
        %v3046 = vand.u32 %v941, 4294901760
        %v3047 = vsub.f32 %v941, %v3046
        %3048 = vmatpush1.msra.mxu0 %v3047
        %v3049 = vand.u32 %v946, 4294901760
        %v3050 = vsub.f32 %v946, %v3049
        %3051 = vmatprep.subr.mxu0 %v3050
        %v3052 = vand.u32 %v945, 4294901760
        %v3053 = vsub.f32 %v945, %v3052
        %3054 = vmatpush1.msra.mxu0 %v3053
        %v3055 = vand.u32 %v950, 4294901760
        %v3056 = vsub.f32 %v950, %v3055
        %3057 = vmatprep.subr.mxu0 %v3056
        %v3058 = vand.u32 %v949, 4294901760
        %v3059 = vsub.f32 %v949, %v3058
        %3060 = vmatpush1.msra.mxu0 %v3059
        %v3061 = vand.u32 %v954, 4294901760
        %v3062 = vsub.f32 %v954, %v3061
        %3063 = vmatprep.subr.mxu0 %v3062
        %v3064 = vand.u32 %v953, 4294901760
        %v3065 = vsub.f32 %v953, %v3064
        %3066 = vmatpush1.msra.mxu0 %v3065
        %v3067 = vand.u32 %v958, 4294901760
        %v3068 = vsub.f32 %v958, %v3067
        %3069 = vmatprep.subr.mxu0 %v3068
        %v3070 = vand.u32 %v957, 4294901760
        %v3071 = vsub.f32 %v957, %v3070
        %3072 = vmatpush1.msra.mxu0 %v3071
        %v3073 = vand.u32 %v962, 4294901760
        %v3074 = vsub.f32 %v962, %v3073
        %3075 = vmatprep.subr.mxu0 %v3074
        %v3076 = vand.u32 %v961, 4294901760
        %v3077 = vsub.f32 %v961, %v3076
        %3078 = vmatpush1.msra.mxu0 %v3077
        %v3079 = vand.u32 %v966, 4294901760
        %v3080 = vsub.f32 %v966, %v3079
        %3081 = vmatprep.subr.mxu0 %v3080
        %v3082 = vand.u32 %v965, 4294901760
        %v3083 = vsub.f32 %v965, %v3082
        %3084 = vmatpush1.msra.mxu0 %v3083
        %v3085 = vand.u32 %v970, 4294901760
        %v3086 = vsub.f32 %v970, %v3085
        %3087 = vmatprep.subr.mxu0 %v3086
        %v3088 = vand.u32 %v969, 4294901760
        %v3089 = vsub.f32 %v969, %v3088
        %3090 = vmatpush1.msra.mxu0 %v3089
        %v3091 = vand.u32 %v974, 4294901760
        %v3092 = vsub.f32 %v974, %v3091
        %3093 = vmatprep.subr.mxu0 %v3092
        %v3094 = vand.u32 %v973, 4294901760
        %v3095 = vsub.f32 %v973, %v3094
        %3096 = vmatpush1.msra.mxu0 %v3095
        %v3097 = vand.u32 %v844, 4294901760
        %v3098 = vsub.f32 %v844, %v3097
        %3099 = vmatprep.mubr.f32.mxu0 %v3098
        %v3100 = vand.u32 %v843, 4294901760
        %v3101 = vsub.f32 %v843, %v3100
        %3102 = vmatmul.mubr.f32.gmra.mrb[0].mxu0 %v3101
        %v3103 = vpop.f32.mrb[0].mxu0
        %v3104 = vadd.f32 %v2893, %v3103
        %v3105 = vpop.f32.mrb[0].mxu0
        %v3106 = vadd.f32 %v2895, %v3105
        %v3107 = vand.u32 %v846, 4294901760
        %v3108 = vsub.f32 %v846, %v3107
        %3109 = vmatprep.mubr.f32.mxu0 %v3108
        %v3110 = vand.u32 %v845, 4294901760
        %v3111 = vsub.f32 %v845, %v3110
        %3112 = vmatmul.mubr.f32.gmra.mrb[0].mxu0 %v3111
        %v3113 = vpop.f32.mrb[0].mxu0
        %v3114 = vadd.f32 %v2901, %v3113
        %v3115 = vpop.f32.mrb[0].mxu0
        %v3116 = vadd.f32 %v2903, %v3115
        %3117 = vdwg.mxu0
        %v3118 = vand.u32 %v850, 4294901760
        %3119 = vmatprep.subr.mxu0 %v3118
        %v3120 = vand.u32 %v849, 4294901760
        %3121 = vmatpush1.msra.mxu0 %v3120
        %v3122 = vand.u32 %v854, 4294901760
        %3123 = vmatprep.subr.mxu0 %v3122
        %v3124 = vand.u32 %v853, 4294901760
        %3125 = vmatpush1.msra.mxu0 %v3124
        %v3126 = vand.u32 %v858, 4294901760
        %3127 = vmatprep.subr.mxu0 %v3126
        %v3128 = vand.u32 %v857, 4294901760
        %3129 = vmatpush1.msra.mxu0 %v3128
        %v3130 = vand.u32 %v862, 4294901760
        %3131 = vmatprep.subr.mxu0 %v3130
        %v3132 = vand.u32 %v861, 4294901760
        %3133 = vmatpush1.msra.mxu0 %v3132
        %v3134 = vand.u32 %v866, 4294901760
        %3135 = vmatprep.subr.mxu0 %v3134
        %v3136 = vand.u32 %v865, 4294901760
        %3137 = vmatpush1.msra.mxu0 %v3136
        %v3138 = vand.u32 %v870, 4294901760
        %3139 = vmatprep.subr.mxu0 %v3138
        %v3140 = vand.u32 %v869, 4294901760
        %3141 = vmatpush1.msra.mxu0 %v3140
        %v3142 = vand.u32 %v874, 4294901760
        %3143 = vmatprep.subr.mxu0 %v3142
        %v3144 = vand.u32 %v873, 4294901760
        %3145 = vmatpush1.msra.mxu0 %v3144
        %v3146 = vand.u32 %v878, 4294901760
        %3147 = vmatprep.subr.mxu0 %v3146
        %v3148 = vand.u32 %v877, 4294901760
        %3149 = vmatpush1.msra.mxu0 %v3148
        %v3150 = vand.u32 %v882, 4294901760
        %3151 = vmatprep.subr.mxu0 %v3150
        %v3152 = vand.u32 %v881, 4294901760
        %3153 = vmatpush1.msra.mxu0 %v3152
        %v3154 = vand.u32 %v886, 4294901760
        %3155 = vmatprep.subr.mxu0 %v3154
        %v3156 = vand.u32 %v885, 4294901760
        %3157 = vmatpush1.msra.mxu0 %v3156
        %v3158 = vand.u32 %v890, 4294901760
        %3159 = vmatprep.subr.mxu0 %v3158
        %v3160 = vand.u32 %v889, 4294901760
        %3161 = vmatpush1.msra.mxu0 %v3160
        %v3162 = vand.u32 %v894, 4294901760
        %3163 = vmatprep.subr.mxu0 %v3162
        %v3164 = vand.u32 %v893, 4294901760
        %3165 = vmatpush1.msra.mxu0 %v3164
        %v3166 = vand.u32 %v898, 4294901760
        %3167 = vmatprep.subr.mxu0 %v3166
        %v3168 = vand.u32 %v897, 4294901760
        %3169 = vmatpush1.msra.mxu0 %v3168
        %v3170 = vand.u32 %v902, 4294901760
        %3171 = vmatprep.subr.mxu0 %v3170
        %v3172 = vand.u32 %v901, 4294901760
        %3173 = vmatpush1.msra.mxu0 %v3172
        %v3174 = vand.u32 %v906, 4294901760
        %3175 = vmatprep.subr.mxu0 %v3174
        %v3176 = vand.u32 %v905, 4294901760
        %3177 = vmatpush1.msra.mxu0 %v3176
        %v3178 = vand.u32 %v910, 4294901760
        %3179 = vmatprep.subr.mxu0 %v3178
        %v3180 = vand.u32 %v909, 4294901760
        %3181 = vmatpush1.msra.mxu0 %v3180
        %v3182 = vand.u32 %v914, 4294901760
        %3183 = vmatprep.subr.mxu0 %v3182
        %v3184 = vand.u32 %v913, 4294901760
        %3185 = vmatpush1.msra.mxu0 %v3184
        %v3186 = vand.u32 %v918, 4294901760
        %3187 = vmatprep.subr.mxu0 %v3186
        %v3188 = vand.u32 %v917, 4294901760
        %3189 = vmatpush1.msra.mxu0 %v3188
        %v3190 = vand.u32 %v922, 4294901760
        %3191 = vmatprep.subr.mxu0 %v3190
        %v3192 = vand.u32 %v921, 4294901760
        %3193 = vmatpush1.msra.mxu0 %v3192
        %v3194 = vand.u32 %v926, 4294901760
        %3195 = vmatprep.subr.mxu0 %v3194
        %v3196 = vand.u32 %v925, 4294901760
        %3197 = vmatpush1.msra.mxu0 %v3196
        %v3198 = vand.u32 %v930, 4294901760
        %3199 = vmatprep.subr.mxu0 %v3198
        %v3200 = vand.u32 %v929, 4294901760
        %3201 = vmatpush1.msra.mxu0 %v3200
        %v3202 = vand.u32 %v934, 4294901760
        %3203 = vmatprep.subr.mxu0 %v3202
        %v3204 = vand.u32 %v933, 4294901760
        %3205 = vmatpush1.msra.mxu0 %v3204
        %v3206 = vand.u32 %v938, 4294901760
        %3207 = vmatprep.subr.mxu0 %v3206
        %v3208 = vand.u32 %v937, 4294901760
        %3209 = vmatpush1.msra.mxu0 %v3208
        %v3210 = vand.u32 %v942, 4294901760
        %3211 = vmatprep.subr.mxu0 %v3210
        %v3212 = vand.u32 %v941, 4294901760
        %3213 = vmatpush1.msra.mxu0 %v3212
        %v3214 = vand.u32 %v946, 4294901760
        %3215 = vmatprep.subr.mxu0 %v3214
        %v3216 = vand.u32 %v945, 4294901760
        %3217 = vmatpush1.msra.mxu0 %v3216
        %v3218 = vand.u32 %v950, 4294901760
        %3219 = vmatprep.subr.mxu0 %v3218
        %v3220 = vand.u32 %v949, 4294901760
        %3221 = vmatpush1.msra.mxu0 %v3220
        %v3222 = vand.u32 %v954, 4294901760
        %3223 = vmatprep.subr.mxu0 %v3222
        %v3224 = vand.u32 %v953, 4294901760
        %3225 = vmatpush1.msra.mxu0 %v3224
        %v3226 = vand.u32 %v958, 4294901760
        %3227 = vmatprep.subr.mxu0 %v3226
        %v3228 = vand.u32 %v957, 4294901760
        %3229 = vmatpush1.msra.mxu0 %v3228
        %v3230 = vand.u32 %v962, 4294901760
        %3231 = vmatprep.subr.mxu0 %v3230
        %v3232 = vand.u32 %v961, 4294901760
        %3233 = vmatpush1.msra.mxu0 %v3232
        %v3234 = vand.u32 %v966, 4294901760
        %3235 = vmatprep.subr.mxu0 %v3234
        %v3236 = vand.u32 %v965, 4294901760
        %3237 = vmatpush1.msra.mxu0 %v3236
        %v3238 = vand.u32 %v970, 4294901760
        %3239 = vmatprep.subr.mxu0 %v3238
        %v3240 = vand.u32 %v969, 4294901760
        %3241 = vmatpush1.msra.mxu0 %v3240
        %v3242 = vand.u32 %v974, 4294901760
        %3243 = vmatprep.subr.mxu0 %v3242
        %v3244 = vand.u32 %v973, 4294901760
        %3245 = vmatpush1.msra.mxu0 %v3244
        %v3246 = vand.u32 %v844, 4294901760
        %v3247 = vsub.f32 %v844, %v3246
        %v3248 = vand.u32 %v3247, 4294901760
        %3249 = vmatprep.mubr.f32.mxu0 %v3248
        %v3250 = vand.u32 %v843, 4294901760
        %v3251 = vsub.f32 %v843, %v3250
        %v3252 = vand.u32 %v3251, 4294901760
        %3253 = vmatmul.mubr.f32.gmra.mrb[0].mxu0 %v3252
        %v3254 = vpop.f32.mrb[0].mxu0
        %v3255 = vadd.f32 %v3104, %v3254
        %v3256 = vpop.f32.mrb[0].mxu0
        %v3257 = vadd.f32 %v3106, %v3256
        %v3258 = vand.u32 %v846, 4294901760
        %v3259 = vsub.f32 %v846, %v3258
        %v3260 = vand.u32 %v3259, 4294901760
        %3261 = vmatprep.mubr.f32.mxu0 %v3260
        %v3262 = vand.u32 %v845, 4294901760
        %v3263 = vsub.f32 %v845, %v3262
        %v3264 = vand.u32 %v3263, 4294901760
        %3265 = vmatmul.mubr.f32.gmra.mrb[0].mxu0 %v3264
        %v3266 = vpop.f32.mrb[0].mxu0
        %v3267 = vadd.f32 %v3114, %v3266
        %v3268 = vpop.f32.mrb[0].mxu0
        %v3269 = vadd.f32 %v3116, %v3268
        %3270 = vdwg.mxu0
        %v3271 = vand.u32 %v850, 4294901760
        %v3272 = vsub.f32 %v850, %v3271
        %v3273 = vand.u32 %v3272, 4294901760
        %3274 = vmatprep.subr.mxu0 %v3273
        %v3275 = vand.u32 %v849, 4294901760
        %v3276 = vsub.f32 %v849, %v3275
        %v3277 = vand.u32 %v3276, 4294901760
        %3278 = vmatpush1.msra.mxu0 %v3277
        %v3279 = vand.u32 %v854, 4294901760
        %v3280 = vsub.f32 %v854, %v3279
        %v3281 = vand.u32 %v3280, 4294901760
        %3282 = vmatprep.subr.mxu0 %v3281
        %v3283 = vand.u32 %v853, 4294901760
        %v3284 = vsub.f32 %v853, %v3283
        %v3285 = vand.u32 %v3284, 4294901760
        %3286 = vmatpush1.msra.mxu0 %v3285
        %v3287 = vand.u32 %v858, 4294901760
        %v3288 = vsub.f32 %v858, %v3287
        %v3289 = vand.u32 %v3288, 4294901760
        %3290 = vmatprep.subr.mxu0 %v3289
        %v3291 = vand.u32 %v857, 4294901760
        %v3292 = vsub.f32 %v857, %v3291
        %v3293 = vand.u32 %v3292, 4294901760
        %3294 = vmatpush1.msra.mxu0 %v3293
        %v3295 = vand.u32 %v862, 4294901760
        %v3296 = vsub.f32 %v862, %v3295
        %v3297 = vand.u32 %v3296, 4294901760
        %3298 = vmatprep.subr.mxu0 %v3297
        %v3299 = vand.u32 %v861, 4294901760
        %v3300 = vsub.f32 %v861, %v3299
        %v3301 = vand.u32 %v3300, 4294901760
        %3302 = vmatpush1.msra.mxu0 %v3301
        %v3303 = vand.u32 %v866, 4294901760
        %v3304 = vsub.f32 %v866, %v3303
        %v3305 = vand.u32 %v3304, 4294901760
        %3306 = vmatprep.subr.mxu0 %v3305
        %v3307 = vand.u32 %v865, 4294901760
        %v3308 = vsub.f32 %v865, %v3307
        %v3309 = vand.u32 %v3308, 4294901760
        %3310 = vmatpush1.msra.mxu0 %v3309
        %v3311 = vand.u32 %v870, 4294901760
        %v3312 = vsub.f32 %v870, %v3311
        %v3313 = vand.u32 %v3312, 4294901760
        %3314 = vmatprep.subr.mxu0 %v3313
        %v3315 = vand.u32 %v869, 4294901760
        %v3316 = vsub.f32 %v869, %v3315
        %v3317 = vand.u32 %v3316, 4294901760
        %3318 = vmatpush1.msra.mxu0 %v3317
        %v3319 = vand.u32 %v874, 4294901760
        %v3320 = vsub.f32 %v874, %v3319
        %v3321 = vand.u32 %v3320, 4294901760
        %3322 = vmatprep.subr.mxu0 %v3321
        %v3323 = vand.u32 %v873, 4294901760
        %v3324 = vsub.f32 %v873, %v3323
        %v3325 = vand.u32 %v3324, 4294901760
        %3326 = vmatpush1.msra.mxu0 %v3325
        %v3327 = vand.u32 %v878, 4294901760
        %v3328 = vsub.f32 %v878, %v3327
        %v3329 = vand.u32 %v3328, 4294901760
        %3330 = vmatprep.subr.mxu0 %v3329
        %v3331 = vand.u32 %v877, 4294901760
        %v3332 = vsub.f32 %v877, %v3331
        %v3333 = vand.u32 %v3332, 4294901760
        %3334 = vmatpush1.msra.mxu0 %v3333
        %v3335 = vand.u32 %v882, 4294901760
        %v3336 = vsub.f32 %v882, %v3335
        %v3337 = vand.u32 %v3336, 4294901760
        %3338 = vmatprep.subr.mxu0 %v3337
        %v3339 = vand.u32 %v881, 4294901760
        %v3340 = vsub.f32 %v881, %v3339
        %v3341 = vand.u32 %v3340, 4294901760
        %3342 = vmatpush1.msra.mxu0 %v3341
        %v3343 = vand.u32 %v886, 4294901760
        %v3344 = vsub.f32 %v886, %v3343
        %v3345 = vand.u32 %v3344, 4294901760
        %3346 = vmatprep.subr.mxu0 %v3345
        %v3347 = vand.u32 %v885, 4294901760
        %v3348 = vsub.f32 %v885, %v3347
        %v3349 = vand.u32 %v3348, 4294901760
        %3350 = vmatpush1.msra.mxu0 %v3349
        %v3351 = vand.u32 %v890, 4294901760
        %v3352 = vsub.f32 %v890, %v3351
        %v3353 = vand.u32 %v3352, 4294901760
        %3354 = vmatprep.subr.mxu0 %v3353
        %v3355 = vand.u32 %v889, 4294901760
        %v3356 = vsub.f32 %v889, %v3355
        %v3357 = vand.u32 %v3356, 4294901760
        %3358 = vmatpush1.msra.mxu0 %v3357
        %v3359 = vand.u32 %v894, 4294901760
        %v3360 = vsub.f32 %v894, %v3359
        %v3361 = vand.u32 %v3360, 4294901760
        %3362 = vmatprep.subr.mxu0 %v3361
        %v3363 = vand.u32 %v893, 4294901760
        %v3364 = vsub.f32 %v893, %v3363
        %v3365 = vand.u32 %v3364, 4294901760
        %3366 = vmatpush1.msra.mxu0 %v3365
        %v3367 = vand.u32 %v898, 4294901760
        %v3368 = vsub.f32 %v898, %v3367
        %v3369 = vand.u32 %v3368, 4294901760
        %3370 = vmatprep.subr.mxu0 %v3369
        %v3371 = vand.u32 %v897, 4294901760
        %v3372 = vsub.f32 %v897, %v3371
        %v3373 = vand.u32 %v3372, 4294901760
        %3374 = vmatpush1.msra.mxu0 %v3373
        %v3375 = vand.u32 %v902, 4294901760
        %v3376 = vsub.f32 %v902, %v3375
        %v3377 = vand.u32 %v3376, 4294901760
        %3378 = vmatprep.subr.mxu0 %v3377
        %v3379 = vand.u32 %v901, 4294901760
        %v3380 = vsub.f32 %v901, %v3379
        %v3381 = vand.u32 %v3380, 4294901760
        %3382 = vmatpush1.msra.mxu0 %v3381
        %v3383 = vand.u32 %v906, 4294901760
        %v3384 = vsub.f32 %v906, %v3383
        %v3385 = vand.u32 %v3384, 4294901760
        %3386 = vmatprep.subr.mxu0 %v3385
        %v3387 = vand.u32 %v905, 4294901760
        %v3388 = vsub.f32 %v905, %v3387
        %v3389 = vand.u32 %v3388, 4294901760
        %3390 = vmatpush1.msra.mxu0 %v3389
        %v3391 = vand.u32 %v910, 4294901760
        %v3392 = vsub.f32 %v910, %v3391
        %v3393 = vand.u32 %v3392, 4294901760
        %3394 = vmatprep.subr.mxu0 %v3393
        %v3395 = vand.u32 %v909, 4294901760
        %v3396 = vsub.f32 %v909, %v3395
        %v3397 = vand.u32 %v3396, 4294901760
        %3398 = vmatpush1.msra.mxu0 %v3397
        %v3399 = vand.u32 %v914, 4294901760
        %v3400 = vsub.f32 %v914, %v3399
        %v3401 = vand.u32 %v3400, 4294901760
        %3402 = vmatprep.subr.mxu0 %v3401
        %v3403 = vand.u32 %v913, 4294901760
        %v3404 = vsub.f32 %v913, %v3403
        %v3405 = vand.u32 %v3404, 4294901760
        %3406 = vmatpush1.msra.mxu0 %v3405
        %v3407 = vand.u32 %v918, 4294901760
        %v3408 = vsub.f32 %v918, %v3407
        %v3409 = vand.u32 %v3408, 4294901760
        %3410 = vmatprep.subr.mxu0 %v3409
        %v3411 = vand.u32 %v917, 4294901760
        %v3412 = vsub.f32 %v917, %v3411
        %v3413 = vand.u32 %v3412, 4294901760
        %3414 = vmatpush1.msra.mxu0 %v3413
        %v3415 = vand.u32 %v922, 4294901760
        %v3416 = vsub.f32 %v922, %v3415
        %v3417 = vand.u32 %v3416, 4294901760
        %3418 = vmatprep.subr.mxu0 %v3417
        %v3419 = vand.u32 %v921, 4294901760
        %v3420 = vsub.f32 %v921, %v3419
        %v3421 = vand.u32 %v3420, 4294901760
        %3422 = vmatpush1.msra.mxu0 %v3421
        %v3423 = vand.u32 %v926, 4294901760
        %v3424 = vsub.f32 %v926, %v3423
        %v3425 = vand.u32 %v3424, 4294901760
        %3426 = vmatprep.subr.mxu0 %v3425
        %v3427 = vand.u32 %v925, 4294901760
        %v3428 = vsub.f32 %v925, %v3427
        %v3429 = vand.u32 %v3428, 4294901760
        %3430 = vmatpush1.msra.mxu0 %v3429
        %v3431 = vand.u32 %v930, 4294901760
        %v3432 = vsub.f32 %v930, %v3431
        %v3433 = vand.u32 %v3432, 4294901760
        %3434 = vmatprep.subr.mxu0 %v3433
        %v3435 = vand.u32 %v929, 4294901760
        %v3436 = vsub.f32 %v929, %v3435
        %v3437 = vand.u32 %v3436, 4294901760
        %3438 = vmatpush1.msra.mxu0 %v3437
        %v3439 = vand.u32 %v934, 4294901760
        %v3440 = vsub.f32 %v934, %v3439
        %v3441 = vand.u32 %v3440, 4294901760
        %3442 = vmatprep.subr.mxu0 %v3441
        %v3443 = vand.u32 %v933, 4294901760
        %v3444 = vsub.f32 %v933, %v3443
        %v3445 = vand.u32 %v3444, 4294901760
        %3446 = vmatpush1.msra.mxu0 %v3445
        %v3447 = vand.u32 %v938, 4294901760
        %v3448 = vsub.f32 %v938, %v3447
        %v3449 = vand.u32 %v3448, 4294901760
        %3450 = vmatprep.subr.mxu0 %v3449
        %v3451 = vand.u32 %v937, 4294901760
        %v3452 = vsub.f32 %v937, %v3451
        %v3453 = vand.u32 %v3452, 4294901760
        %3454 = vmatpush1.msra.mxu0 %v3453
        %v3455 = vand.u32 %v942, 4294901760
        %v3456 = vsub.f32 %v942, %v3455
        %v3457 = vand.u32 %v3456, 4294901760
        %3458 = vmatprep.subr.mxu0 %v3457
        %v3459 = vand.u32 %v941, 4294901760
        %v3460 = vsub.f32 %v941, %v3459
        %v3461 = vand.u32 %v3460, 4294901760
        %3462 = vmatpush1.msra.mxu0 %v3461
        %v3463 = vand.u32 %v946, 4294901760
        %v3464 = vsub.f32 %v946, %v3463
        %v3465 = vand.u32 %v3464, 4294901760
        %3466 = vmatprep.subr.mxu0 %v3465
        %v3467 = vand.u32 %v945, 4294901760
        %v3468 = vsub.f32 %v945, %v3467
        %v3469 = vand.u32 %v3468, 4294901760
        %3470 = vmatpush1.msra.mxu0 %v3469
        %v3471 = vand.u32 %v950, 4294901760
        %v3472 = vsub.f32 %v950, %v3471
        %v3473 = vand.u32 %v3472, 4294901760
        %3474 = vmatprep.subr.mxu0 %v3473
        %v3475 = vand.u32 %v949, 4294901760
        %v3476 = vsub.f32 %v949, %v3475
        %v3477 = vand.u32 %v3476, 4294901760
        %3478 = vmatpush1.msra.mxu0 %v3477
        %v3479 = vand.u32 %v954, 4294901760
        %v3480 = vsub.f32 %v954, %v3479
        %v3481 = vand.u32 %v3480, 4294901760
        %3482 = vmatprep.subr.mxu0 %v3481
        %v3483 = vand.u32 %v953, 4294901760
        %v3484 = vsub.f32 %v953, %v3483
        %v3485 = vand.u32 %v3484, 4294901760
        %3486 = vmatpush1.msra.mxu0 %v3485
        %v3487 = vand.u32 %v958, 4294901760
        %v3488 = vsub.f32 %v958, %v3487
        %v3489 = vand.u32 %v3488, 4294901760
        %3490 = vmatprep.subr.mxu0 %v3489
        %v3491 = vand.u32 %v957, 4294901760
        %v3492 = vsub.f32 %v957, %v3491
        %v3493 = vand.u32 %v3492, 4294901760
        %3494 = vmatpush1.msra.mxu0 %v3493
        %v3495 = vand.u32 %v962, 4294901760
        %v3496 = vsub.f32 %v962, %v3495
        %v3497 = vand.u32 %v3496, 4294901760
        %3498 = vmatprep.subr.mxu0 %v3497
        %v3499 = vand.u32 %v961, 4294901760
        %v3500 = vsub.f32 %v961, %v3499
        %v3501 = vand.u32 %v3500, 4294901760
        %3502 = vmatpush1.msra.mxu0 %v3501
        %v3503 = vand.u32 %v966, 4294901760
        %v3504 = vsub.f32 %v966, %v3503
        %v3505 = vand.u32 %v3504, 4294901760
        %3506 = vmatprep.subr.mxu0 %v3505
        %v3507 = vand.u32 %v965, 4294901760
        %v3508 = vsub.f32 %v965, %v3507
        %v3509 = vand.u32 %v3508, 4294901760
        %3510 = vmatpush1.msra.mxu0 %v3509
        %v3511 = vand.u32 %v970, 4294901760
        %v3512 = vsub.f32 %v970, %v3511
        %v3513 = vand.u32 %v3512, 4294901760
        %3514 = vmatprep.subr.mxu0 %v3513
        %v3515 = vand.u32 %v969, 4294901760
        %v3516 = vsub.f32 %v969, %v3515
        %v3517 = vand.u32 %v3516, 4294901760
        %3518 = vmatpush1.msra.mxu0 %v3517
        %v3519 = vand.u32 %v974, 4294901760
        %v3520 = vsub.f32 %v974, %v3519
        %v3521 = vand.u32 %v3520, 4294901760
        %3522 = vmatprep.subr.mxu0 %v3521
        %v3523 = vand.u32 %v973, 4294901760
        %v3524 = vsub.f32 %v973, %v3523
        %v3525 = vand.u32 %v3524, 4294901760
        %3526 = vmatpush1.msra.mxu0 %v3525
        %v3527 = vand.u32 %v844, 4294901760
        %3528 = vmatprep.mubr.f32.mxu0 %v3527
        %v3529 = vand.u32 %v843, 4294901760
        %3530 = vmatmul.mubr.f32.gmra.mrb[0].mxu0 %v3529
        %v3531 = vpop.f32.mrb[0].mxu0
        %v3532 = vadd.f32 %v3255, %v3531
        %v3533 = vpop.f32.mrb[0].mxu0
        %v3534 = vadd.f32 %v3257, %v3533
        %v3535 = vand.u32 %v846, 4294901760
        %3536 = vmatprep.mubr.f32.mxu0 %v3535
        %v3537 = vand.u32 %v845, 4294901760
        %3538 = vmatmul.mubr.f32.gmra.mrb[0].mxu0 %v3537
        %v3539 = vpop.f32.mrb[0].mxu0
        %v3540 = vadd.f32 %v3267, %v3539
        %v3541 = vpop.f32.mrb[0].mxu0
        %v3542 = vadd.f32 %v3269, %v3541
        %3543 = vdwg.mxu0
        %v3544 = vand.u32 %v850, 4294901760
        %3545 = vmatprep.subr.mxu0 %v3544
        %v3546 = vand.u32 %v849, 4294901760
        %3547 = vmatpush1.msra.mxu0 %v3546
        %v3548 = vand.u32 %v854, 4294901760
        %3549 = vmatprep.subr.mxu0 %v3548
        %v3550 = vand.u32 %v853, 4294901760
        %3551 = vmatpush1.msra.mxu0 %v3550
        %v3552 = vand.u32 %v858, 4294901760
        %3553 = vmatprep.subr.mxu0 %v3552
        %v3554 = vand.u32 %v857, 4294901760
        %3555 = vmatpush1.msra.mxu0 %v3554
        %v3556 = vand.u32 %v862, 4294901760
        %3557 = vmatprep.subr.mxu0 %v3556
        %v3558 = vand.u32 %v861, 4294901760
        %3559 = vmatpush1.msra.mxu0 %v3558
        %v3560 = vand.u32 %v866, 4294901760
        %3561 = vmatprep.subr.mxu0 %v3560
        %v3562 = vand.u32 %v865, 4294901760
        %3563 = vmatpush1.msra.mxu0 %v3562
        %v3564 = vand.u32 %v870, 4294901760
        %3565 = vmatprep.subr.mxu0 %v3564
        %v3566 = vand.u32 %v869, 4294901760
        %3567 = vmatpush1.msra.mxu0 %v3566
        %v3568 = vand.u32 %v874, 4294901760
        %3569 = vmatprep.subr.mxu0 %v3568
        %v3570 = vand.u32 %v873, 4294901760
        %3571 = vmatpush1.msra.mxu0 %v3570
        %v3572 = vand.u32 %v878, 4294901760
        %3573 = vmatprep.subr.mxu0 %v3572
        %v3574 = vand.u32 %v877, 4294901760
        %3575 = vmatpush1.msra.mxu0 %v3574
        %v3576 = vand.u32 %v882, 4294901760
        %3577 = vmatprep.subr.mxu0 %v3576
        %v3578 = vand.u32 %v881, 4294901760
        %3579 = vmatpush1.msra.mxu0 %v3578
        %v3580 = vand.u32 %v886, 4294901760
        %3581 = vmatprep.subr.mxu0 %v3580
        %v3582 = vand.u32 %v885, 4294901760
        %3583 = vmatpush1.msra.mxu0 %v3582
        %v3584 = vand.u32 %v890, 4294901760
        %3585 = vmatprep.subr.mxu0 %v3584
        %v3586 = vand.u32 %v889, 4294901760
        %3587 = vmatpush1.msra.mxu0 %v3586
        %v3588 = vand.u32 %v894, 4294901760
        %3589 = vmatprep.subr.mxu0 %v3588
        %v3590 = vand.u32 %v893, 4294901760
        %3591 = vmatpush1.msra.mxu0 %v3590
        %v3592 = vand.u32 %v898, 4294901760
        %3593 = vmatprep.subr.mxu0 %v3592
        %v3594 = vand.u32 %v897, 4294901760
        %3595 = vmatpush1.msra.mxu0 %v3594
        %v3596 = vand.u32 %v902, 4294901760
        %3597 = vmatprep.subr.mxu0 %v3596
        %v3598 = vand.u32 %v901, 4294901760
        %3599 = vmatpush1.msra.mxu0 %v3598
        %v3600 = vand.u32 %v906, 4294901760
        %3601 = vmatprep.subr.mxu0 %v3600
        %v3602 = vand.u32 %v905, 4294901760
        %3603 = vmatpush1.msra.mxu0 %v3602
        %v3604 = vand.u32 %v910, 4294901760
        %3605 = vmatprep.subr.mxu0 %v3604
        %v3606 = vand.u32 %v909, 4294901760
        %3607 = vmatpush1.msra.mxu0 %v3606
        %v3608 = vand.u32 %v914, 4294901760
        %3609 = vmatprep.subr.mxu0 %v3608
        %v3610 = vand.u32 %v913, 4294901760
        %3611 = vmatpush1.msra.mxu0 %v3610
        %v3612 = vand.u32 %v918, 4294901760
        %3613 = vmatprep.subr.mxu0 %v3612
        %v3614 = vand.u32 %v917, 4294901760
        %3615 = vmatpush1.msra.mxu0 %v3614
        %v3616 = vand.u32 %v922, 4294901760
        %3617 = vmatprep.subr.mxu0 %v3616
        %v3618 = vand.u32 %v921, 4294901760
        %3619 = vmatpush1.msra.mxu0 %v3618
        %v3620 = vand.u32 %v926, 4294901760
        %3621 = vmatprep.subr.mxu0 %v3620
        %v3622 = vand.u32 %v925, 4294901760
        %3623 = vmatpush1.msra.mxu0 %v3622
        %v3624 = vand.u32 %v930, 4294901760
        %3625 = vmatprep.subr.mxu0 %v3624
        %v3626 = vand.u32 %v929, 4294901760
        %3627 = vmatpush1.msra.mxu0 %v3626
        %v3628 = vand.u32 %v934, 4294901760
        %3629 = vmatprep.subr.mxu0 %v3628
        %v3630 = vand.u32 %v933, 4294901760
        %3631 = vmatpush1.msra.mxu0 %v3630
        %v3632 = vand.u32 %v938, 4294901760
        %3633 = vmatprep.subr.mxu0 %v3632
        %v3634 = vand.u32 %v937, 4294901760
        %3635 = vmatpush1.msra.mxu0 %v3634
        %v3636 = vand.u32 %v942, 4294901760
        %3637 = vmatprep.subr.mxu0 %v3636
        %v3638 = vand.u32 %v941, 4294901760
        %3639 = vmatpush1.msra.mxu0 %v3638
        %v3640 = vand.u32 %v946, 4294901760
        %3641 = vmatprep.subr.mxu0 %v3640
        %v3642 = vand.u32 %v945, 4294901760
        %3643 = vmatpush1.msra.mxu0 %v3642
        %v3644 = vand.u32 %v950, 4294901760
        %3645 = vmatprep.subr.mxu0 %v3644
        %v3646 = vand.u32 %v949, 4294901760
        %3647 = vmatpush1.msra.mxu0 %v3646
        %v3648 = vand.u32 %v954, 4294901760
        %3649 = vmatprep.subr.mxu0 %v3648
        %v3650 = vand.u32 %v953, 4294901760
        %3651 = vmatpush1.msra.mxu0 %v3650
        %v3652 = vand.u32 %v958, 4294901760
        %3653 = vmatprep.subr.mxu0 %v3652
        %v3654 = vand.u32 %v957, 4294901760
        %3655 = vmatpush1.msra.mxu0 %v3654
        %v3656 = vand.u32 %v962, 4294901760
        %3657 = vmatprep.subr.mxu0 %v3656
        %v3658 = vand.u32 %v961, 4294901760
        %3659 = vmatpush1.msra.mxu0 %v3658
        %v3660 = vand.u32 %v966, 4294901760
        %3661 = vmatprep.subr.mxu0 %v3660
        %v3662 = vand.u32 %v965, 4294901760
        %3663 = vmatpush1.msra.mxu0 %v3662
        %v3664 = vand.u32 %v970, 4294901760
        %3665 = vmatprep.subr.mxu0 %v3664
        %v3666 = vand.u32 %v969, 4294901760
        %3667 = vmatpush1.msra.mxu0 %v3666
        %v3668 = vand.u32 %v974, 4294901760
        %3669 = vmatprep.subr.mxu0 %v3668
        %v3670 = vand.u32 %v973, 4294901760
        %3671 = vmatpush1.msra.mxu0 %v3670
        %v3672 = vand.u32 %v844, 4294901760
        %3673 = vmatprep.mubr.f32.mxu0 %v3672
        %v3674 = vand.u32 %v843, 4294901760
        %3675 = vmatmul.mubr.f32.gmra.mrb[0].mxu0 %v3674
        %v3676 = vpop.f32.mrb[0].mxu0
        %v3677 = vadd.f32 %v3532, %v3676
        %v3678 = vpop.f32.mrb[0].mxu0
        %v3679 = vadd.f32 %v3534, %v3678
        %v3680 = vand.u32 %v846, 4294901760
        %3681 = vmatprep.mubr.f32.mxu0 %v3680
        %v3682 = vand.u32 %v845, 4294901760
        %3683 = vmatmul.mubr.f32.gmra.mrb[0].mxu0 %v3682
        %v3684 = vpop.f32.mrb[0].mxu0
        %v3685 = vadd.f32 %v3540, %v3684
        %v3686 = vpop.f32.mrb[0].mxu0
        %v3687 = vadd.f32 %v3542, %v3686
        %3688 = vdwg.mxu0
        %v3689 = vxor.u32 %v2331, 2147483648
        %v3690 = vxor.u32 %v2339, 2147483648
        %v3691 = vmul.f32 %v3689, 1.442695
        %v3692 = vpow.pop %v3691
        %v3693 = vmul.f32 %v3690, 1.442695
        %v3694 = vpow.pop %v3693
        %v3695 = vadd.f32 %v3692, 1.0
        %v3696 = vadd.f32 %v3694, 1.0
        %v3697 = vrcp.pop %v3695
        %v3698 = vmul.f32 1.0, %v3697
        %v3699 = vrcp.pop %v3696
        %v3700 = vmul.f32 1.0, %v3699
        %v3701 = vxor.u32 %v2333, 2147483648
        %v3702 = vxor.u32 %v2341, 2147483648
        %v3703 = vmul.f32 %v3701, 1.442695
        %v3704 = vpow.pop %v3703
        %v3705 = vmul.f32 %v3702, 1.442695
        %v3706 = vpow.pop %v3705
        %v3707 = vadd.f32 %v3704, 1.0
        %v3708 = vadd.f32 %v3706, 1.0
        %v3709 = vrcp.pop %v3707
        %v3710 = vmul.f32 1.0, %v3709
        %v3711 = vrcp.pop %v3708
        %v3712 = vmul.f32 1.0, %v3711
        %v3713 = vmul.f32 %v837, %v3710
        %v3714 = vmul.f32 %v838, %v3712
        %v3715 = vld [vmem:[#allocation12] sm:$0xff]
        %v3716 = vld [vmem:[#allocation12 + $0x8] sm:$0xff]
        %v3717 = vld [vmem:[#allocation12 + $0x10] sm:$0xff]
        %v3718 = vld [vmem:[#allocation12 + $0x18] sm:$0xff]
        %v3719 = vld [vmem:[#allocation12 + $0x20] sm:$0xff]
        %v3720 = vld [vmem:[#allocation12 + $0x28] sm:$0xff]
        %v3721 = vld [vmem:[#allocation12 + $0x30] sm:$0xff]
        %v3722 = vld [vmem:[#allocation12 + $0x38] sm:$0xff]
        %v3723 = vld [vmem:[#allocation12 + $0x40] sm:$0xff]
        %v3724 = vld [vmem:[#allocation12 + $0x48] sm:$0xff]
        %v3725 = vld [vmem:[#allocation12 + $0x50] sm:$0xff]
        %v3726 = vld [vmem:[#allocation12 + $0x58] sm:$0xff]
        %v3727 = vld [vmem:[#allocation12 + $0x60] sm:$0xff]
        %v3728 = vld [vmem:[#allocation12 + $0x68] sm:$0xff]
        %v3729 = vld [vmem:[#allocation12 + $0x70] sm:$0xff]
        %v3730 = vld [vmem:[#allocation12 + $0x78] sm:$0xff]
        %3731 = vmatprep.subr.mxu0 0.0
        %v3732 = vand.u32 %v3715, 4294901760
        %3733 = vmatpush1.msra.mxu0 %v3732
        %3734 = vmatprep.subr.mxu0 0.0
        %v3735 = vand.u32 %v3716, 4294901760
        %3736 = vmatpush1.msra.mxu0 %v3735
        %3737 = vmatprep.subr.mxu0 0.0
        %v3738 = vand.u32 %v3717, 4294901760
        %3739 = vmatpush1.msra.mxu0 %v3738
        %3740 = vmatprep.subr.mxu0 0.0
        %v3741 = vand.u32 %v3718, 4294901760
        %3742 = vmatpush1.msra.mxu0 %v3741
        %3743 = vmatprep.subr.mxu0 0.0
        %v3744 = vand.u32 %v3719, 4294901760
        %3745 = vmatpush1.msra.mxu0 %v3744
        %3746 = vmatprep.subr.mxu0 0.0
        %v3747 = vand.u32 %v3720, 4294901760
        %3748 = vmatpush1.msra.mxu0 %v3747
        %3749 = vmatprep.subr.mxu0 0.0
        %v3750 = vand.u32 %v3721, 4294901760
        %3751 = vmatpush1.msra.mxu0 %v3750
        %3752 = vmatprep.subr.mxu0 0.0
        %v3753 = vand.u32 %v3722, 4294901760
        %3754 = vmatpush1.msra.mxu0 %v3753
        %3755 = vmatprep.subr.mxu0 0.0
        %v3756 = vand.u32 %v3723, 4294901760
        %3757 = vmatpush1.msra.mxu0 %v3756
        %3758 = vmatprep.subr.mxu0 0.0
        %v3759 = vand.u32 %v3724, 4294901760
        %3760 = vmatpush1.msra.mxu0 %v3759
        %3761 = vmatprep.subr.mxu0 0.0
        %v3762 = vand.u32 %v3725, 4294901760
        %3763 = vmatpush1.msra.mxu0 %v3762
        %3764 = vmatprep.subr.mxu0 0.0
        %v3765 = vand.u32 %v3726, 4294901760
        %3766 = vmatpush1.msra.mxu0 %v3765
        %3767 = vmatprep.subr.mxu0 0.0
        %v3768 = vand.u32 %v3727, 4294901760
        %3769 = vmatpush1.msra.mxu0 %v3768
        %3770 = vmatprep.subr.mxu0 0.0
        %v3771 = vand.u32 %v3728, 4294901760
        %3772 = vmatpush1.msra.mxu0 %v3771
        %3773 = vmatprep.subr.mxu0 0.0
        %v3774 = vand.u32 %v3729, 4294901760
        %3775 = vmatpush1.msra.mxu0 %v3774
        %3776 = vmatprep.subr.mxu0 0.0
        %v3777 = vand.u32 %v3730, 4294901760
        %3778 = vmatpush1.msra.mxu0 %v3777
        %3779 = vmatprep.subr.mxu0 0.0
        %3780 = vmatpush1.msra.mxu0 0.0
        %3781 = vmatprep.subr.mxu0 0.0
        %3782 = vmatpush1.msra.mxu0 0.0
        %3783 = vmatprep.subr.mxu0 0.0
        %3784 = vmatpush1.msra.mxu0 0.0
        %3785 = vmatprep.subr.mxu0 0.0
        %3786 = vmatpush1.msra.mxu0 0.0
        %3787 = vmatprep.subr.mxu0 0.0
        %3788 = vmatpush1.msra.mxu0 0.0
        %3789 = vmatprep.subr.mxu0 0.0
        %3790 = vmatpush1.msra.mxu0 0.0
        %3791 = vmatprep.subr.mxu0 0.0
        %3792 = vmatpush1.msra.mxu0 0.0
        %3793 = vmatprep.subr.mxu0 0.0
        %3794 = vmatpush1.msra.mxu0 0.0
        %3795 = vmatprep.subr.mxu0 0.0
        %3796 = vmatpush1.msra.mxu0 0.0
        %3797 = vmatprep.subr.mxu0 0.0
        %3798 = vmatpush1.msra.mxu0 0.0
        %3799 = vmatprep.subr.mxu0 0.0
        %3800 = vmatpush1.msra.mxu0 0.0
        %3801 = vmatprep.subr.mxu0 0.0
        %3802 = vmatpush1.msra.mxu0 0.0
        %3803 = vmatprep.subr.mxu0 0.0
        %3804 = vmatpush1.msra.mxu0 0.0
        %3805 = vmatprep.subr.mxu0 0.0
        %3806 = vmatpush1.msra.mxu0 0.0
        %3807 = vmatprep.subr.mxu0 0.0
        %3808 = vmatpush1.msra.mxu0 0.0
        %3809 = vmatprep.subr.mxu0 0.0
        %3810 = vmatpush1.msra.mxu0 0.0
        %3811 = vmatprep.mubr.f32.mxu0 0.0
        %v3812 = vand.u32 %v3713, 4294901760
        %v3813 = vsub.f32 %v3713, %v3812
        %v3814 = vand.u32 %v3813, 4294901760
        %v3815 = vsub.f32 %v3813, %v3814
        %v3816 = vand.u32 %v3815, 4294901760
        %3817 = vmatmul.mubr.f32.gmra.mrb[0].mxu0 %v3816
        %v3818 = vpop.f32.mrb[0].mxu0
        %v3819 = vadd.f32 0.0, %v3818
        %v3820 = vpop.f32.mrb[0].mxu0
        %3821 = vmatprep.mubr.f32.mxu0 0.0
        %v3822 = vand.u32 %v3714, 4294901760
        %v3823 = vsub.f32 %v3714, %v3822
        %v3824 = vand.u32 %v3823, 4294901760
        %v3825 = vsub.f32 %v3823, %v3824
        %v3826 = vand.u32 %v3825, 4294901760
        %3827 = vmatmul.mubr.f32.gmra.mrb[0].mxu0 %v3826
        %v3828 = vpop.f32.mrb[0].mxu0
        %v3829 = vadd.f32 0.0, %v3828
        %v3830 = vpop.f32.mrb[0].mxu0
        %3831 = vdwg.mxu0
        %3832 = vmatprep.subr.mxu0 0.0
        %v3833 = vand.u32 %v3715, 4294901760
        %v3834 = vsub.f32 %v3715, %v3833
        %v3835 = vand.u32 %v3834, 4294901760
        %v3836 = vsub.f32 %v3834, %v3835
        %v3837 = vand.u32 %v3836, 4294901760
        %3838 = vmatpush1.msra.mxu0 %v3837
        %3839 = vmatprep.subr.mxu0 0.0
        %v3840 = vand.u32 %v3716, 4294901760
        %v3841 = vsub.f32 %v3716, %v3840
        %v3842 = vand.u32 %v3841, 4294901760
        %v3843 = vsub.f32 %v3841, %v3842
        %v3844 = vand.u32 %v3843, 4294901760
        %3845 = vmatpush1.msra.mxu0 %v3844
        %3846 = vmatprep.subr.mxu0 0.0
        %v3847 = vand.u32 %v3717, 4294901760
        %v3848 = vsub.f32 %v3717, %v3847
        %v3849 = vand.u32 %v3848, 4294901760
        %v3850 = vsub.f32 %v3848, %v3849
        %v3851 = vand.u32 %v3850, 4294901760
        %3852 = vmatpush1.msra.mxu0 %v3851
        %3853 = vmatprep.subr.mxu0 0.0
        %v3854 = vand.u32 %v3718, 4294901760
        %v3855 = vsub.f32 %v3718, %v3854
        %v3856 = vand.u32 %v3855, 4294901760
        %v3857 = vsub.f32 %v3855, %v3856
        %v3858 = vand.u32 %v3857, 4294901760
        %3859 = vmatpush1.msra.mxu0 %v3858
        %3860 = vmatprep.subr.mxu0 0.0
        %v3861 = vand.u32 %v3719, 4294901760
        %v3862 = vsub.f32 %v3719, %v3861
        %v3863 = vand.u32 %v3862, 4294901760
        %v3864 = vsub.f32 %v3862, %v3863
        %v3865 = vand.u32 %v3864, 4294901760
        %3866 = vmatpush1.msra.mxu0 %v3865
        %3867 = vmatprep.subr.mxu0 0.0
        %v3868 = vand.u32 %v3720, 4294901760
        %v3869 = vsub.f32 %v3720, %v3868
        %v3870 = vand.u32 %v3869, 4294901760
        %v3871 = vsub.f32 %v3869, %v3870
        %v3872 = vand.u32 %v3871, 4294901760
        %3873 = vmatpush1.msra.mxu0 %v3872
        %3874 = vmatprep.subr.mxu0 0.0
        %v3875 = vand.u32 %v3721, 4294901760
        %v3876 = vsub.f32 %v3721, %v3875
        %v3877 = vand.u32 %v3876, 4294901760
        %v3878 = vsub.f32 %v3876, %v3877
        %v3879 = vand.u32 %v3878, 4294901760
        %3880 = vmatpush1.msra.mxu0 %v3879
        %3881 = vmatprep.subr.mxu0 0.0
        %v3882 = vand.u32 %v3722, 4294901760
        %v3883 = vsub.f32 %v3722, %v3882
        %v3884 = vand.u32 %v3883, 4294901760
        %v3885 = vsub.f32 %v3883, %v3884
        %v3886 = vand.u32 %v3885, 4294901760
        %3887 = vmatpush1.msra.mxu0 %v3886
        %3888 = vmatprep.subr.mxu0 0.0
        %v3889 = vand.u32 %v3723, 4294901760
        %v3890 = vsub.f32 %v3723, %v3889
        %v3891 = vand.u32 %v3890, 4294901760
        %v3892 = vsub.f32 %v3890, %v3891
        %v3893 = vand.u32 %v3892, 4294901760
        %3894 = vmatpush1.msra.mxu0 %v3893
        %3895 = vmatprep.subr.mxu0 0.0
        %v3896 = vand.u32 %v3724, 4294901760
        %v3897 = vsub.f32 %v3724, %v3896
        %v3898 = vand.u32 %v3897, 4294901760
        %v3899 = vsub.f32 %v3897, %v3898
        %v3900 = vand.u32 %v3899, 4294901760
        %3901 = vmatpush1.msra.mxu0 %v3900
        %3902 = vmatprep.subr.mxu0 0.0
        %v3903 = vand.u32 %v3725, 4294901760
        %v3904 = vsub.f32 %v3725, %v3903
        %v3905 = vand.u32 %v3904, 4294901760
        %v3906 = vsub.f32 %v3904, %v3905
        %v3907 = vand.u32 %v3906, 4294901760
        %3908 = vmatpush1.msra.mxu0 %v3907
        %3909 = vmatprep.subr.mxu0 0.0
        %v3910 = vand.u32 %v3726, 4294901760
        %v3911 = vsub.f32 %v3726, %v3910
        %v3912 = vand.u32 %v3911, 4294901760
        %v3913 = vsub.f32 %v3911, %v3912
        %v3914 = vand.u32 %v3913, 4294901760
        %3915 = vmatpush1.msra.mxu0 %v3914
        %3916 = vmatprep.subr.mxu0 0.0
        %v3917 = vand.u32 %v3727, 4294901760
        %v3918 = vsub.f32 %v3727, %v3917
        %v3919 = vand.u32 %v3918, 4294901760
        %v3920 = vsub.f32 %v3918, %v3919
        %v3921 = vand.u32 %v3920, 4294901760
        %3922 = vmatpush1.msra.mxu0 %v3921
        %3923 = vmatprep.subr.mxu0 0.0
        %v3924 = vand.u32 %v3728, 4294901760
        %v3925 = vsub.f32 %v3728, %v3924
        %v3926 = vand.u32 %v3925, 4294901760
        %v3927 = vsub.f32 %v3925, %v3926
        %v3928 = vand.u32 %v3927, 4294901760
        %3929 = vmatpush1.msra.mxu0 %v3928
        %3930 = vmatprep.subr.mxu0 0.0
        %v3931 = vand.u32 %v3729, 4294901760
        %v3932 = vsub.f32 %v3729, %v3931
        %v3933 = vand.u32 %v3932, 4294901760
        %v3934 = vsub.f32 %v3932, %v3933
        %v3935 = vand.u32 %v3934, 4294901760
        %3936 = vmatpush1.msra.mxu0 %v3935
        %3937 = vmatprep.subr.mxu0 0.0
        %v3938 = vand.u32 %v3730, 4294901760
        %v3939 = vsub.f32 %v3730, %v3938
        %v3940 = vand.u32 %v3939, 4294901760
        %v3941 = vsub.f32 %v3939, %v3940
        %v3942 = vand.u32 %v3941, 4294901760
        %3943 = vmatpush1.msra.mxu0 %v3942
        %3944 = vmatprep.subr.mxu0 0.0
        %3945 = vmatpush1.msra.mxu0 0.0
        %3946 = vmatprep.subr.mxu0 0.0
        %3947 = vmatpush1.msra.mxu0 0.0
        %3948 = vmatprep.subr.mxu0 0.0
        %3949 = vmatpush1.msra.mxu0 0.0
        %3950 = vmatprep.subr.mxu0 0.0
        %3951 = vmatpush1.msra.mxu0 0.0
        %3952 = vmatprep.subr.mxu0 0.0
        %3953 = vmatpush1.msra.mxu0 0.0
        %3954 = vmatprep.subr.mxu0 0.0
        %3955 = vmatpush1.msra.mxu0 0.0
        %3956 = vmatprep.subr.mxu0 0.0
        %3957 = vmatpush1.msra.mxu0 0.0
        %3958 = vmatprep.subr.mxu0 0.0
        %3959 = vmatpush1.msra.mxu0 0.0
        %3960 = vmatprep.subr.mxu0 0.0
        %3961 = vmatpush1.msra.mxu0 0.0
        %3962 = vmatprep.subr.mxu0 0.0
        %3963 = vmatpush1.msra.mxu0 0.0
        %3964 = vmatprep.subr.mxu0 0.0
        %3965 = vmatpush1.msra.mxu0 0.0
        %3966 = vmatprep.subr.mxu0 0.0
        %3967 = vmatpush1.msra.mxu0 0.0
        %3968 = vmatprep.subr.mxu0 0.0
        %3969 = vmatpush1.msra.mxu0 0.0
        %3970 = vmatprep.subr.mxu0 0.0
        %3971 = vmatpush1.msra.mxu0 0.0
        %3972 = vmatprep.subr.mxu0 0.0
        %3973 = vmatpush1.msra.mxu0 0.0
        %3974 = vmatprep.subr.mxu0 0.0
        %3975 = vmatpush1.msra.mxu0 0.0
        %3976 = vmatprep.mubr.f32.mxu0 0.0
        %v3977 = vand.u32 %v3713, 4294901760
        %3978 = vmatmul.mubr.f32.gmra.mrb[0].mxu0 %v3977
        %v3979 = vpop.f32.mrb[0].mxu0
        %v3980 = vadd.f32 %v3819, %v3979
        %v3981 = vpop.f32.mrb[0].mxu0
        %3982 = vmatprep.mubr.f32.mxu0 0.0
        %v3983 = vand.u32 %v3714, 4294901760
        %3984 = vmatmul.mubr.f32.gmra.mrb[0].mxu0 %v3983
        %v3985 = vpop.f32.mrb[0].mxu0
        %v3986 = vadd.f32 %v3829, %v3985
        %v3987 = vpop.f32.mrb[0].mxu0
        %3988 = vdwg.mxu0
        %3989 = vmatprep.subr.mxu0 0.0
        %v3990 = vand.u32 %v3715, 4294901760
        %v3991 = vsub.f32 %v3715, %v3990
        %3992 = vmatpush1.msra.mxu0 %v3991
        %3993 = vmatprep.subr.mxu0 0.0
        %v3994 = vand.u32 %v3716, 4294901760
        %v3995 = vsub.f32 %v3716, %v3994
        %3996 = vmatpush1.msra.mxu0 %v3995
        %3997 = vmatprep.subr.mxu0 0.0
        %v3998 = vand.u32 %v3717, 4294901760
        %v3999 = vsub.f32 %v3717, %v3998
        %4000 = vmatpush1.msra.mxu0 %v3999
        %4001 = vmatprep.subr.mxu0 0.0
        %v4002 = vand.u32 %v3718, 4294901760
        %v4003 = vsub.f32 %v3718, %v4002
        %4004 = vmatpush1.msra.mxu0 %v4003
        %4005 = vmatprep.subr.mxu0 0.0
        %v4006 = vand.u32 %v3719, 4294901760
        %v4007 = vsub.f32 %v3719, %v4006
        %4008 = vmatpush1.msra.mxu0 %v4007
        %4009 = vmatprep.subr.mxu0 0.0
        %v4010 = vand.u32 %v3720, 4294901760
        %v4011 = vsub.f32 %v3720, %v4010
        %4012 = vmatpush1.msra.mxu0 %v4011
        %4013 = vmatprep.subr.mxu0 0.0
        %v4014 = vand.u32 %v3721, 4294901760
        %v4015 = vsub.f32 %v3721, %v4014
        %4016 = vmatpush1.msra.mxu0 %v4015
        %4017 = vmatprep.subr.mxu0 0.0
        %v4018 = vand.u32 %v3722, 4294901760
        %v4019 = vsub.f32 %v3722, %v4018
        %4020 = vmatpush1.msra.mxu0 %v4019
        %4021 = vmatprep.subr.mxu0 0.0
        %v4022 = vand.u32 %v3723, 4294901760
        %v4023 = vsub.f32 %v3723, %v4022
        %4024 = vmatpush1.msra.mxu0 %v4023
        %4025 = vmatprep.subr.mxu0 0.0
        %v4026 = vand.u32 %v3724, 4294901760
        %v4027 = vsub.f32 %v3724, %v4026
        %4028 = vmatpush1.msra.mxu0 %v4027
        %4029 = vmatprep.subr.mxu0 0.0
        %v4030 = vand.u32 %v3725, 4294901760
        %v4031 = vsub.f32 %v3725, %v4030
        %4032 = vmatpush1.msra.mxu0 %v4031
        %4033 = vmatprep.subr.mxu0 0.0
        %v4034 = vand.u32 %v3726, 4294901760
        %v4035 = vsub.f32 %v3726, %v4034
        %4036 = vmatpush1.msra.mxu0 %v4035
        %4037 = vmatprep.subr.mxu0 0.0
        %v4038 = vand.u32 %v3727, 4294901760
        %v4039 = vsub.f32 %v3727, %v4038
        %4040 = vmatpush1.msra.mxu0 %v4039
        %4041 = vmatprep.subr.mxu0 0.0
        %v4042 = vand.u32 %v3728, 4294901760
        %v4043 = vsub.f32 %v3728, %v4042
        %4044 = vmatpush1.msra.mxu0 %v4043
        %4045 = vmatprep.subr.mxu0 0.0
        %v4046 = vand.u32 %v3729, 4294901760
        %v4047 = vsub.f32 %v3729, %v4046
        %4048 = vmatpush1.msra.mxu0 %v4047
        %4049 = vmatprep.subr.mxu0 0.0
        %v4050 = vand.u32 %v3730, 4294901760
        %v4051 = vsub.f32 %v3730, %v4050
        %4052 = vmatpush1.msra.mxu0 %v4051
        %4053 = vmatprep.subr.mxu0 0.0
        %4054 = vmatpush1.msra.mxu0 0.0
        %4055 = vmatprep.subr.mxu0 0.0
        %4056 = vmatpush1.msra.mxu0 0.0
        %4057 = vmatprep.subr.mxu0 0.0
        %4058 = vmatpush1.msra.mxu0 0.0
        %4059 = vmatprep.subr.mxu0 0.0
        %4060 = vmatpush1.msra.mxu0 0.0
        %4061 = vmatprep.subr.mxu0 0.0
        %4062 = vmatpush1.msra.mxu0 0.0
        %4063 = vmatprep.subr.mxu0 0.0
        %4064 = vmatpush1.msra.mxu0 0.0
        %4065 = vmatprep.subr.mxu0 0.0
        %4066 = vmatpush1.msra.mxu0 0.0
        %4067 = vmatprep.subr.mxu0 0.0
        %4068 = vmatpush1.msra.mxu0 0.0
        %4069 = vmatprep.subr.mxu0 0.0
        %4070 = vmatpush1.msra.mxu0 0.0
        %4071 = vmatprep.subr.mxu0 0.0
        %4072 = vmatpush1.msra.mxu0 0.0
        %4073 = vmatprep.subr.mxu0 0.0
        %4074 = vmatpush1.msra.mxu0 0.0
        %4075 = vmatprep.subr.mxu0 0.0
        %4076 = vmatpush1.msra.mxu0 0.0
        %4077 = vmatprep.subr.mxu0 0.0
        %4078 = vmatpush1.msra.mxu0 0.0
        %4079 = vmatprep.subr.mxu0 0.0
        %4080 = vmatpush1.msra.mxu0 0.0
        %4081 = vmatprep.subr.mxu0 0.0
        %4082 = vmatpush1.msra.mxu0 0.0
        %4083 = vmatprep.subr.mxu0 0.0
        %4084 = vmatpush1.msra.mxu0 0.0
        %4085 = vmatprep.mubr.f32.mxu0 0.0
        %v4086 = vand.u32 %v3713, 4294901760
        %v4087 = vsub.f32 %v3713, %v4086
        %4088 = vmatmul.mubr.f32.gmra.mrb[0].mxu0 %v4087
        %v4089 = vpop.f32.mrb[0].mxu0
        %v4090 = vadd.f32 %v3980, %v4089
        %v4091 = vpop.f32.mrb[0].mxu0
        %4092 = vmatprep.mubr.f32.mxu0 0.0
        %v4093 = vand.u32 %v3714, 4294901760
        %v4094 = vsub.f32 %v3714, %v4093
        %4095 = vmatmul.mubr.f32.gmra.mrb[0].mxu0 %v4094
        %v4096 = vpop.f32.mrb[0].mxu0
        %v4097 = vadd.f32 %v3986, %v4096
        %v4098 = vpop.f32.mrb[0].mxu0
        %4099 = vdwg.mxu0
        %4100 = vmatprep.subr.mxu0 0.0
        %v4101 = vand.u32 %v3715, 4294901760
        %4102 = vmatpush1.msra.mxu0 %v4101
        %4103 = vmatprep.subr.mxu0 0.0
        %v4104 = vand.u32 %v3716, 4294901760
        %4105 = vmatpush1.msra.mxu0 %v4104
        %4106 = vmatprep.subr.mxu0 0.0
        %v4107 = vand.u32 %v3717, 4294901760
        %4108 = vmatpush1.msra.mxu0 %v4107
        %4109 = vmatprep.subr.mxu0 0.0
        %v4110 = vand.u32 %v3718, 4294901760
        %4111 = vmatpush1.msra.mxu0 %v4110
        %4112 = vmatprep.subr.mxu0 0.0
        %v4113 = vand.u32 %v3719, 4294901760
        %4114 = vmatpush1.msra.mxu0 %v4113
        %4115 = vmatprep.subr.mxu0 0.0
        %v4116 = vand.u32 %v3720, 4294901760
        %4117 = vmatpush1.msra.mxu0 %v4116
        %4118 = vmatprep.subr.mxu0 0.0
        %v4119 = vand.u32 %v3721, 4294901760
        %4120 = vmatpush1.msra.mxu0 %v4119
        %4121 = vmatprep.subr.mxu0 0.0
        %v4122 = vand.u32 %v3722, 4294901760
        %4123 = vmatpush1.msra.mxu0 %v4122
        %4124 = vmatprep.subr.mxu0 0.0
        %v4125 = vand.u32 %v3723, 4294901760
        %4126 = vmatpush1.msra.mxu0 %v4125
        %4127 = vmatprep.subr.mxu0 0.0
        %v4128 = vand.u32 %v3724, 4294901760
        %4129 = vmatpush1.msra.mxu0 %v4128
        %4130 = vmatprep.subr.mxu0 0.0
        %v4131 = vand.u32 %v3725, 4294901760
        %4132 = vmatpush1.msra.mxu0 %v4131
        %4133 = vmatprep.subr.mxu0 0.0
        %v4134 = vand.u32 %v3726, 4294901760
        %4135 = vmatpush1.msra.mxu0 %v4134
        %4136 = vmatprep.subr.mxu0 0.0
        %v4137 = vand.u32 %v3727, 4294901760
        %4138 = vmatpush1.msra.mxu0 %v4137
        %4139 = vmatprep.subr.mxu0 0.0
        %v4140 = vand.u32 %v3728, 4294901760
        %4141 = vmatpush1.msra.mxu0 %v4140
        %4142 = vmatprep.subr.mxu0 0.0
        %v4143 = vand.u32 %v3729, 4294901760
        %4144 = vmatpush1.msra.mxu0 %v4143
        %4145 = vmatprep.subr.mxu0 0.0
        %v4146 = vand.u32 %v3730, 4294901760
        %4147 = vmatpush1.msra.mxu0 %v4146
        %4148 = vmatprep.subr.mxu0 0.0
        %4149 = vmatpush1.msra.mxu0 0.0
        %4150 = vmatprep.subr.mxu0 0.0
        %4151 = vmatpush1.msra.mxu0 0.0
        %4152 = vmatprep.subr.mxu0 0.0
        %4153 = vmatpush1.msra.mxu0 0.0
        %4154 = vmatprep.subr.mxu0 0.0
        %4155 = vmatpush1.msra.mxu0 0.0
        %4156 = vmatprep.subr.mxu0 0.0
        %4157 = vmatpush1.msra.mxu0 0.0
        %4158 = vmatprep.subr.mxu0 0.0
        %4159 = vmatpush1.msra.mxu0 0.0
        %4160 = vmatprep.subr.mxu0 0.0
        %4161 = vmatpush1.msra.mxu0 0.0
        %4162 = vmatprep.subr.mxu0 0.0
        %4163 = vmatpush1.msra.mxu0 0.0
        %4164 = vmatprep.subr.mxu0 0.0
        %4165 = vmatpush1.msra.mxu0 0.0
        %4166 = vmatprep.subr.mxu0 0.0
        %4167 = vmatpush1.msra.mxu0 0.0
        %4168 = vmatprep.subr.mxu0 0.0
        %4169 = vmatpush1.msra.mxu0 0.0
        %4170 = vmatprep.subr.mxu0 0.0
        %4171 = vmatpush1.msra.mxu0 0.0
        %4172 = vmatprep.subr.mxu0 0.0
        %4173 = vmatpush1.msra.mxu0 0.0
        %4174 = vmatprep.subr.mxu0 0.0
        %4175 = vmatpush1.msra.mxu0 0.0
        %4176 = vmatprep.subr.mxu0 0.0
        %4177 = vmatpush1.msra.mxu0 0.0
        %4178 = vmatprep.subr.mxu0 0.0
        %4179 = vmatpush1.msra.mxu0 0.0
        %4180 = vmatprep.mubr.f32.mxu0 0.0
        %v4181 = vand.u32 %v3713, 4294901760
        %v4182 = vsub.f32 %v3713, %v4181
        %v4183 = vand.u32 %v4182, 4294901760
        %4184 = vmatmul.mubr.f32.gmra.mrb[0].mxu0 %v4183
        %v4185 = vpop.f32.mrb[0].mxu0
        %v4186 = vadd.f32 %v4090, %v4185
        %v4187 = vpop.f32.mrb[0].mxu0
        %4188 = vmatprep.mubr.f32.mxu0 0.0
        %v4189 = vand.u32 %v3714, 4294901760
        %v4190 = vsub.f32 %v3714, %v4189
        %v4191 = vand.u32 %v4190, 4294901760
        %4192 = vmatmul.mubr.f32.gmra.mrb[0].mxu0 %v4191
        %v4193 = vpop.f32.mrb[0].mxu0
        %v4194 = vadd.f32 %v4097, %v4193
        %v4195 = vpop.f32.mrb[0].mxu0
        %4196 = vdwg.mxu0
        %4197 = vmatprep.subr.mxu0 0.0
        %v4198 = vand.u32 %v3715, 4294901760
        %v4199 = vsub.f32 %v3715, %v4198
        %v4200 = vand.u32 %v4199, 4294901760
        %4201 = vmatpush1.msra.mxu0 %v4200
        %4202 = vmatprep.subr.mxu0 0.0
        %v4203 = vand.u32 %v3716, 4294901760
        %v4204 = vsub.f32 %v3716, %v4203
        %v4205 = vand.u32 %v4204, 4294901760
        %4206 = vmatpush1.msra.mxu0 %v4205
        %4207 = vmatprep.subr.mxu0 0.0
        %v4208 = vand.u32 %v3717, 4294901760
        %v4209 = vsub.f32 %v3717, %v4208
        %v4210 = vand.u32 %v4209, 4294901760
        %4211 = vmatpush1.msra.mxu0 %v4210
        %4212 = vmatprep.subr.mxu0 0.0
        %v4213 = vand.u32 %v3718, 4294901760
        %v4214 = vsub.f32 %v3718, %v4213
        %v4215 = vand.u32 %v4214, 4294901760
        %4216 = vmatpush1.msra.mxu0 %v4215
        %4217 = vmatprep.subr.mxu0 0.0
        %v4218 = vand.u32 %v3719, 4294901760
        %v4219 = vsub.f32 %v3719, %v4218
        %v4220 = vand.u32 %v4219, 4294901760
        %4221 = vmatpush1.msra.mxu0 %v4220
        %4222 = vmatprep.subr.mxu0 0.0
        %v4223 = vand.u32 %v3720, 4294901760
        %v4224 = vsub.f32 %v3720, %v4223
        %v4225 = vand.u32 %v4224, 4294901760
        %4226 = vmatpush1.msra.mxu0 %v4225
        %4227 = vmatprep.subr.mxu0 0.0
        %v4228 = vand.u32 %v3721, 4294901760
        %v4229 = vsub.f32 %v3721, %v4228
        %v4230 = vand.u32 %v4229, 4294901760
        %4231 = vmatpush1.msra.mxu0 %v4230
        %4232 = vmatprep.subr.mxu0 0.0
        %v4233 = vand.u32 %v3722, 4294901760
        %v4234 = vsub.f32 %v3722, %v4233
        %v4235 = vand.u32 %v4234, 4294901760
        %4236 = vmatpush1.msra.mxu0 %v4235
        %4237 = vmatprep.subr.mxu0 0.0
        %v4238 = vand.u32 %v3723, 4294901760
        %v4239 = vsub.f32 %v3723, %v4238
        %v4240 = vand.u32 %v4239, 4294901760
        %4241 = vmatpush1.msra.mxu0 %v4240
        %4242 = vmatprep.subr.mxu0 0.0
        %v4243 = vand.u32 %v3724, 4294901760
        %v4244 = vsub.f32 %v3724, %v4243
        %v4245 = vand.u32 %v4244, 4294901760
        %4246 = vmatpush1.msra.mxu0 %v4245
        %4247 = vmatprep.subr.mxu0 0.0
        %v4248 = vand.u32 %v3725, 4294901760
        %v4249 = vsub.f32 %v3725, %v4248
        %v4250 = vand.u32 %v4249, 4294901760
        %4251 = vmatpush1.msra.mxu0 %v4250
        %4252 = vmatprep.subr.mxu0 0.0
        %v4253 = vand.u32 %v3726, 4294901760
        %v4254 = vsub.f32 %v3726, %v4253
        %v4255 = vand.u32 %v4254, 4294901760
        %4256 = vmatpush1.msra.mxu0 %v4255
        %4257 = vmatprep.subr.mxu0 0.0
        %v4258 = vand.u32 %v3727, 4294901760
        %v4259 = vsub.f32 %v3727, %v4258
        %v4260 = vand.u32 %v4259, 4294901760
        %4261 = vmatpush1.msra.mxu0 %v4260
        %4262 = vmatprep.subr.mxu0 0.0
        %v4263 = vand.u32 %v3728, 4294901760
        %v4264 = vsub.f32 %v3728, %v4263
        %v4265 = vand.u32 %v4264, 4294901760
        %4266 = vmatpush1.msra.mxu0 %v4265
        %4267 = vmatprep.subr.mxu0 0.0
        %v4268 = vand.u32 %v3729, 4294901760
        %v4269 = vsub.f32 %v3729, %v4268
        %v4270 = vand.u32 %v4269, 4294901760
        %4271 = vmatpush1.msra.mxu0 %v4270
        %4272 = vmatprep.subr.mxu0 0.0
        %v4273 = vand.u32 %v3730, 4294901760
        %v4274 = vsub.f32 %v3730, %v4273
        %v4275 = vand.u32 %v4274, 4294901760
        %4276 = vmatpush1.msra.mxu0 %v4275
        %4277 = vmatprep.subr.mxu0 0.0
        %4278 = vmatpush1.msra.mxu0 0.0
        %4279 = vmatprep.subr.mxu0 0.0
        %4280 = vmatpush1.msra.mxu0 0.0
        %4281 = vmatprep.subr.mxu0 0.0
        %4282 = vmatpush1.msra.mxu0 0.0
        %4283 = vmatprep.subr.mxu0 0.0
        %4284 = vmatpush1.msra.mxu0 0.0
        %4285 = vmatprep.subr.mxu0 0.0
        %4286 = vmatpush1.msra.mxu0 0.0
        %4287 = vmatprep.subr.mxu0 0.0
        %4288 = vmatpush1.msra.mxu0 0.0
        %4289 = vmatprep.subr.mxu0 0.0
        %4290 = vmatpush1.msra.mxu0 0.0
        %4291 = vmatprep.subr.mxu0 0.0
        %4292 = vmatpush1.msra.mxu0 0.0
        %4293 = vmatprep.subr.mxu0 0.0
        %4294 = vmatpush1.msra.mxu0 0.0
        %4295 = vmatprep.subr.mxu0 0.0
        %4296 = vmatpush1.msra.mxu0 0.0
        %4297 = vmatprep.subr.mxu0 0.0
        %4298 = vmatpush1.msra.mxu0 0.0
        %4299 = vmatprep.subr.mxu0 0.0
        %4300 = vmatpush1.msra.mxu0 0.0
        %4301 = vmatprep.subr.mxu0 0.0
        %4302 = vmatpush1.msra.mxu0 0.0
        %4303 = vmatprep.subr.mxu0 0.0
        %4304 = vmatpush1.msra.mxu0 0.0
        %4305 = vmatprep.subr.mxu0 0.0
        %4306 = vmatpush1.msra.mxu0 0.0
        %4307 = vmatprep.subr.mxu0 0.0
        %4308 = vmatpush1.msra.mxu0 0.0
        %4309 = vmatprep.mubr.f32.mxu0 0.0
        %v4310 = vand.u32 %v3713, 4294901760
        %4311 = vmatmul.mubr.f32.gmra.mrb[0].mxu0 %v4310
        %v4312 = vpop.f32.mrb[0].mxu0
        %v4313 = vadd.f32 %v4186, %v4312
        %v4314 = vpop.f32.mrb[0].mxu0
        %4315 = vmatprep.mubr.f32.mxu0 0.0
        %v4316 = vand.u32 %v3714, 4294901760
        %4317 = vmatmul.mubr.f32.gmra.mrb[0].mxu0 %v4316
        %v4318 = vpop.f32.mrb[0].mxu0
        %v4319 = vadd.f32 %v4194, %v4318
        %v4320 = vpop.f32.mrb[0].mxu0
        %4321 = vdwg.mxu0
        %4322 = vmatprep.subr.mxu0 0.0
        %v4323 = vand.u32 %v3715, 4294901760
        %4324 = vmatpush1.msra.mxu0 %v4323
        %4325 = vmatprep.subr.mxu0 0.0
        %v4326 = vand.u32 %v3716, 4294901760
        %4327 = vmatpush1.msra.mxu0 %v4326
        %4328 = vmatprep.subr.mxu0 0.0
        %v4329 = vand.u32 %v3717, 4294901760
        %4330 = vmatpush1.msra.mxu0 %v4329
        %4331 = vmatprep.subr.mxu0 0.0
        %v4332 = vand.u32 %v3718, 4294901760
        %4333 = vmatpush1.msra.mxu0 %v4332
        %4334 = vmatprep.subr.mxu0 0.0
        %v4335 = vand.u32 %v3719, 4294901760
        %4336 = vmatpush1.msra.mxu0 %v4335
        %4337 = vmatprep.subr.mxu0 0.0
        %v4338 = vand.u32 %v3720, 4294901760
        %4339 = vmatpush1.msra.mxu0 %v4338
        %4340 = vmatprep.subr.mxu0 0.0
        %v4341 = vand.u32 %v3721, 4294901760
        %4342 = vmatpush1.msra.mxu0 %v4341
        %4343 = vmatprep.subr.mxu0 0.0
        %v4344 = vand.u32 %v3722, 4294901760
        %4345 = vmatpush1.msra.mxu0 %v4344
        %4346 = vmatprep.subr.mxu0 0.0
        %v4347 = vand.u32 %v3723, 4294901760
        %4348 = vmatpush1.msra.mxu0 %v4347
        %4349 = vmatprep.subr.mxu0 0.0
        %v4350 = vand.u32 %v3724, 4294901760
        %4351 = vmatpush1.msra.mxu0 %v4350
        %4352 = vmatprep.subr.mxu0 0.0
        %v4353 = vand.u32 %v3725, 4294901760
        %4354 = vmatpush1.msra.mxu0 %v4353
        %4355 = vmatprep.subr.mxu0 0.0
        %v4356 = vand.u32 %v3726, 4294901760
        %4357 = vmatpush1.msra.mxu0 %v4356
        %4358 = vmatprep.subr.mxu0 0.0
        %v4359 = vand.u32 %v3727, 4294901760
        %4360 = vmatpush1.msra.mxu0 %v4359
        %4361 = vmatprep.subr.mxu0 0.0
        %v4362 = vand.u32 %v3728, 4294901760
        %4363 = vmatpush1.msra.mxu0 %v4362
        %4364 = vmatprep.subr.mxu0 0.0
        %v4365 = vand.u32 %v3729, 4294901760
        %4366 = vmatpush1.msra.mxu0 %v4365
        %4367 = vmatprep.subr.mxu0 0.0
        %v4368 = vand.u32 %v3730, 4294901760
        %4369 = vmatpush1.msra.mxu0 %v4368
        %4370 = vmatprep.subr.mxu0 0.0
        %4371 = vmatpush1.msra.mxu0 0.0
        %4372 = vmatprep.subr.mxu0 0.0
        %4373 = vmatpush1.msra.mxu0 0.0
        %4374 = vmatprep.subr.mxu0 0.0
        %4375 = vmatpush1.msra.mxu0 0.0
        %4376 = vmatprep.subr.mxu0 0.0
        %4377 = vmatpush1.msra.mxu0 0.0
        %4378 = vmatprep.subr.mxu0 0.0
        %4379 = vmatpush1.msra.mxu0 0.0
        %4380 = vmatprep.subr.mxu0 0.0
        %4381 = vmatpush1.msra.mxu0 0.0
        %4382 = vmatprep.subr.mxu0 0.0
        %4383 = vmatpush1.msra.mxu0 0.0
        %4384 = vmatprep.subr.mxu0 0.0
        %4385 = vmatpush1.msra.mxu0 0.0
        %4386 = vmatprep.subr.mxu0 0.0
        %4387 = vmatpush1.msra.mxu0 0.0
        %4388 = vmatprep.subr.mxu0 0.0
        %4389 = vmatpush1.msra.mxu0 0.0
        %4390 = vmatprep.subr.mxu0 0.0
        %4391 = vmatpush1.msra.mxu0 0.0
        %4392 = vmatprep.subr.mxu0 0.0
        %4393 = vmatpush1.msra.mxu0 0.0
        %4394 = vmatprep.subr.mxu0 0.0
        %4395 = vmatpush1.msra.mxu0 0.0
        %4396 = vmatprep.subr.mxu0 0.0
        %4397 = vmatpush1.msra.mxu0 0.0
        %4398 = vmatprep.subr.mxu0 0.0
        %4399 = vmatpush1.msra.mxu0 0.0
        %4400 = vmatprep.subr.mxu0 0.0
        %4401 = vmatpush1.msra.mxu0 0.0
        %4402 = vmatprep.mubr.f32.mxu0 0.0
        %v4403 = vand.u32 %v3713, 4294901760
        %4404 = vmatmul.mubr.f32.gmra.mrb[0].mxu0 %v4403
        %v4405 = vpop.f32.mrb[0].mxu0
        %v4406 = vadd.f32 %v4313, %v4405
        %v4407 = vpop.f32.mrb[0].mxu0
        %4408 = vmatprep.mubr.f32.mxu0 0.0
        %v4409 = vand.u32 %v3714, 4294901760
        %4410 = vmatmul.mubr.f32.gmra.mrb[0].mxu0 %v4409
        %v4411 = vpop.f32.mrb[0].mxu0
        %v4412 = vadd.f32 %v4319, %v4411
        %v4413 = vpop.f32.mrb[0].mxu0
        %4414 = vdwg.mxu0
        %v4415 = vadd.f32 %v3677, %v4406
        %v4416 = vadd.f32 %v3685, %v4412
        %v4417 = vtanh.pop %v4415
        %v4418 = vtanh.pop %v4416
        %v4419 = vadd.f32 %v4417, %v3679
        %v4420 = vadd.f32 %v4418, %v3687
        %v4421 = vsub.f32 %v837, %v4419
        %v4422 = vsub.f32 %v838, %v4420
        %v4423 = vmul.f32 %v3698, %v4421
        %v4424 = vmul.f32 %v3700, %v4422
        %v4425 = vadd.f32 %v4419, %v4423
        %v4426 = vadd.f32 %v4420, %v4424
        %4427 = vst [vmem:[#allocation2] sm:$0xff] %v4425
        %4428 = vst [vmem:[#allocation2 + $0x8] sm:$0xff] %v4426
        %p4429 = scmp.eq.s32.totalorder %s23, 7
        // Predicated region
        $region69: #{tpu_custom_call.1} parent=43 // pred_check
          %p4430 = pneg %p4429
        $region70: #{tpu_custom_call.1} parent=43 // pred_check_branch
          %4432 = sbr.rel (%p4430) target = $region72
        $region71: #{tpu_custom_call.1} parent=43 // pred_region
          %4433 = vst [vmem:[#allocation13] sm:$0xff] %v4425
          %4434 = vst [vmem:[#allocation13 + $0x8] sm:$0xff] %v4426
        $region72: #{tpu_custom_call.1} parent=43 // pred_fallthru
          _
        // Predicated region
        $region73: #{tpu_custom_call.1} parent=43 // pred_check
          %p4435 = pneg %p167
        $region74: #{tpu_custom_call.1} parent=43 // pred_check_branch
          %4437 = sbr.rel (%p4435) target = $region76
        $region75: #{tpu_custom_call.1} parent=43 // pred_region
          %s4439 = ssub.s32 256, 256
          %4440 = vsyncadd [#allocation6], %s4439
          %s4441 = sshll.u32 [#allocation13], 4
          %s4442 = int_to_ptr.vmem [resolvable:$true] %s4441
          %4447 = dma.vmem_to_hbm [thread:$0]  %s4442, 256, %s6, [#allocation6], 128, 128, 8
        $region76: #{tpu_custom_call.1} parent=43 // pred_fallthru
          _
        // Predicated region
        $region77: #{tpu_custom_call.1} parent=43 // pred_check
          %p4448 = pneg %p167
        $region78: #{tpu_custom_call.1} parent=43 // pred_check_branch
          %4450 = sbr.rel (%p4448) target = $region80
        $region79: #{tpu_custom_call.1} parent=43 // pred_region
          %4451 = dma.done [#allocation6], 256
        $region80: #{tpu_custom_call.1} parent=43 // pred_fallthru
          _
      $region44: #{tpu_custom_call.1} parent=5 // pred_fallthru
        _
      %p4452 = scmp.le.s32.totalorder 2, %s18
      // Predicated region
      $region81: #{tpu_custom_call.1} parent=5 // pred_check
        %p4453 = pneg %p4452
      $region82: #{tpu_custom_call.1} parent=5 // pred_check_branch
        %4455 = sbr.rel (%p4453) target = $region84
      $region83: #{tpu_custom_call.1} parent=5 // pred_region
        %s4456 = ssub.s32 %s18, 2
      $region84: #{tpu_custom_call.1} parent=5 // pred_fallthru
        _
    $region6: #{tpu_custom_call.1} parent=1 // loop_footer
      %s22 = sadd.s32 1, %s18
    $region7: #{tpu_custom_call.1} parent=1 // loop_footer_branch
      %17 = sbr.rel target = $region3
    $region8: #{tpu_custom_call.1} parent=1 // loop_exit
      _
    %4457 = vsyncpa [#allocation5], 1
    %s4458 = scalar_lea.sflag [#allocation5], 1
    %4459 = vsyncpa %s4458, 1
    %4460 = vsyncpa [#allocation8], 1
    %s4461 = scalar_lea.sflag [#allocation8], 1
    %4462 = vsyncpa %s4461, 1
    %4463 = vsyncpa [#allocation11], 1
    %4464 = vsyncpa [#allocation6], 1
    %s4465 = scalar_lea.sflag [#allocation6], 1
    %4466 = vsyncpa %s4465, 1

</llo_original>
